<compile_context>
chip_gen: v5e
topology: v5e:2x2
jax: 0.10.0
libtpu: 0.0.40
codegen_flags: <defaults>
</compile_context>

<pallas_src>
import math

import jax
import jax.numpy as jnp
from jax import lax
from jax.experimental import pallas as pl
from jax.experimental.pallas import tpu as pltpu

PI = math.pi
F32 = jnp.float32

VN_NEG_SLOPE = 0.2     # VNLeakyReLU default negative slope
SCA_NEG_SLOPE = 0.01   # nn.LeakyReLU default
VN_EPS = 1e-6
LN_EPS = 1e-5


def _leaky_relu(x, slope):
    return jnp.where(x >= 0.0, x, slope * x)


def _round_up(x, m):
    return ((x + m - 1) // m) * m


def make_attention_interaction_block(hidden_channels, edge_channels,
                                     num_edge_types, cutoff=10.0):
    hs, hv = hidden_channels            # scalar / vector channels
    ec = edge_channels
    net = num_edge_types
    G = ec - net                        # number of gaussians
    step = cutoff / (G - 1)
    gs_coeff = -0.5 / (step * step)     # GaussianSmearing coefficient (static)

    # ------------------------------------------------------------------ params
    def gvlinear_shapes(prefix, in_s, in_v, out_s, out_v):
        hid = max(in_v, out_v)
        return [
            (prefix + "_Wlv", (in_v, hid)),      # VNLinear (no bias)
            (prefix + "_Wlv2", (hid, out_v)),    # VNLinear (no bias)
            (prefix + "_Wls_v", (hid, out_s)),   # lin_scalar weight, vnorm half
            (prefix + "_Wls_s", (in_s, out_s)),  # lin_scalar weight, scalar half
            (prefix + "_Wg", (out_s, out_v)),    # scalar->vector gates
            (prefix + "_bg", (1, out_v)),
        ]

    param_shapes = []
    param_shapes += [("gs_offset", (1, G)), ("ee_W", (1, ec))]
    param_shapes += gvlinear_shapes("mm_node", hs, hv, hs, hv)
    param_shapes += gvlinear_shapes("mm_edge", ec, ec, ec, ec)
    param_shapes += [("mm_edge_Wd", (ec, ec))]            # VNLeakyReLU dir map
    param_shapes += [("mm_sca_W", (ec, hs)), ("mm_sca_b", (1, hs)),
                     ("mm_e2n_W", (ec, hv)), ("mm_e2n_b", (1, hv)),
                     ("mm_n2e_W", (hs, hv)), ("mm_n2e_b", (1, hv)),
                     ("mm_evn_W", (ec, hv)), ("mm_evn_b", (1, hv))]
    param_shapes += gvlinear_shapes("mm_out", hs, hv, hs, hv)
    param_shapes += gvlinear_shapes("cl", hs, hv, hs, hv)       # centroid_lin
    param_shapes += [("ln_s_g", (1, hs)), ("ln_s_b", (1, hs)),
                     ("ln_v_g", (3, 1, hv)), ("ln_v_b", (3, 1, hv)),
                     ("av_Wd", (hv, hv))]                        # act_vec dir map
    param_shapes += gvlinear_shapes("ot", hs, hv, hs, hv)       # out_transform
    param_names = [n for n, _ in param_shapes]

    def init_params(key):
        params = {}
        keys = jax.random.split(key, len(param_shapes))
        for k, (name, shape) in zip(keys, param_shapes):
            if name == "gs_offset":
                params[name] = jnp.linspace(0.0, cutoff, G, dtype=F32).reshape(1, G)
            elif name.startswith("ln_") and name.endswith("_g"):
                params[name] = jnp.ones(shape, F32)
            elif name.startswith("ln_") and name.endswith("_b"):
                params[name] = jnp.zeros(shape, F32)
            else:
                params[name] = 0.2 * jax.random.normal(k, shape, F32)
        return params

    n_data = 7   # xs_j, xv_j, ev_t, e_feat, row, x_s, x_v
    n_par = len(param_names)

    # ------------------------------------------------------------------ kernel
    def build_kernel(N_pad, E_tile):
        def kernel(*refs):
            xsj_ref, xvj_ref, evt_ref, ef_ref, row_ref, xs_ref, xv_ref = refs[:n_data]
            P = {name: r[...] for name, r in zip(param_names,
                                                 refs[n_data:n_data + n_par])}
            out_s_ref, out_v_ref, aggr_s_ref, aggr_v_ref = refs[-4:]

            t = pl.program_id(0)
            last = pl.num_programs(0) - 1

            def sigmoid(x):
                # reciprocal on the EUP slot (free alongside VPU work)
                return pl.reciprocal(1.0 + jnp.exp(-x), approx=True)

            def vnlin(v, W, b=None):
                # v: (3, M, Fin) -> single MXU matmul on (3M, Fin)
                three, M, Fi = v.shape
                o = jnp.dot(v.reshape(3 * M, Fi), W, preferred_element_type=F32)
                o = o.reshape(3, M, W.shape[1])
                if b is not None:
                    o = o + b                      # (1, Fout) broadcast per component
                return o

            def gvlinear(s, v, prefix):
                vi = vnlin(v, P[prefix + "_Wlv"])                 # (3, M, hid)
                vnorm = jnp.sqrt(jnp.sum(vi * vi, axis=0))        # (M, hid)
                # split concat: vnorm @ Wls_v + s @ Wls_s
                o_s = (jnp.dot(vnorm, P[prefix + "_Wls_v"], preferred_element_type=F32)
                       + jnp.dot(s, P[prefix + "_Wls_s"], preferred_element_type=F32))
                o_v = vnlin(vi, P[prefix + "_Wlv2"])              # (3, M, out_v)
                gate = sigmoid(jnp.dot(o_s, P[prefix + "_Wg"],
                                       preferred_element_type=F32)
                               + P[prefix + "_bg"])               # (M, out_v)
                return o_s, gate[None] * o_v

            def vn_leaky_relu(v, Wd):
                d = vnlin(v, Wd)
                dot = jnp.sum(v * d, axis=0, keepdims=True)       # (1, M, F)
                mask = (dot >= 0.0).astype(F32)
                d_sq = jnp.sum(d * d, axis=0, keepdims=True)
                v_par = v - (dot / (d_sq + VN_EPS)) * d
                return (VN_NEG_SLOPE * v
                        + (1.0 - VN_NEG_SLOPE) * (mask * v + (1.0 - mask) * v_par))

            # ---- init accumulators on the first edge tile ----
            @pl.when(t == 0)
            def _():
                aggr_s_ref[...] = jnp.zeros_like(aggr_s_ref)
                aggr_v_ref[...] = jnp.zeros_like(aggr_v_ref)

            # ================= per-edge-tile message path =================
            xs_j = xsj_ref[...]          # (Et, hs)  gathered source-node scalars
            xv_j = xvj_ref[...]          # (3, Et, hv) gathered source-node vectors
            ev_t = evt_ref[...]          # (3, Et, 1) edge vector, component-major
            e_feat = ef_ref[...]         # (Et, net)
            row = row_ref[...]           # (Et, 1) int32  scatter destination

            # edge scalar feats: gaussian smearing of |r| ++ edge types
            dist = jnp.sqrt(jnp.sum(ev_t * ev_t, axis=0))         # (Et, 1)
            diff = dist - P["gs_offset"]                          # (Et, G)
            smear = jnp.exp(gs_coeff * diff * diff)
            edge_sca = jnp.concatenate([smear, e_feat], axis=-1)  # (Et, ec)

            # edge vector feats: EdgeExpansion (normalized dir ⊗ weight row)
            ev_n = ev_t / (dist[None] + 1e-7)                     # (3, Et, 1)
            edge_vec = ev_n * P["ee_W"][None]                     # (3, Et, ec)

            # MessageModule: node GVLinear applied per edge (row-pointwise,
            # identical to gather-after-linear)
            n_s_j, n_v_j = gvlinear(xs_j, xv_j, "mm_node")

            e_s, e_v = gvlinear(edge_sca, edge_vec, "mm_edge")    # GVPerceptronVN
            e_v = vn_leaky_relu(e_v, P["mm_edge_Wd"])
            e_s = _leaky_relu(e_s, SCA_NEG_SLOPE)

            y_s = n_s_j * (jnp.dot(e_s, P["mm_sca_W"],
                                   preferred_element_type=F32) + P["mm_sca_b"])
            g_e2n = jnp.dot(e_s, P["mm_e2n_W"],
                            preferred_element_type=F32) + P["mm_e2n_b"]
            g_n2e = jnp.dot(n_s_j, P["mm_n2e_W"],
                            preferred_element_type=F32) + P["mm_n2e_b"]
            y_v = g_e2n[None] * n_v_j \
                + g_n2e[None] * vnlin(e_v, P["mm_evn_W"], P["mm_evn_b"])

            msg_s, msg_v = gvlinear(y_s, y_v, "mm_out")

            # cosine-cutoff annealing
            C = 0.5 * (jnp.cos(dist * (PI / cutoff)) + 1.0)
            C = C * (dist <= cutoff).astype(F32)                  # (Et, 1)
            msg_s = msg_s * C
            msg_v = msg_v * C[None]

            # ---- scatter_sum into node accumulators (per-tile one-hot) ----
            ids = lax.broadcasted_iota(jnp.int32, (E_tile, N_pad), 1)
            onehot = (row == ids).astype(F32)                     # (Et, N_pad)
            dn = (((0,), (0,)), ((), ()))                         # contract over edges
            aggr_s_ref[...] += lax.dot_general(onehot, msg_s, dn,
                                               preferred_element_type=F32)
            for c in range(3):
                aggr_v_ref[c] += lax.dot_general(onehot, msg_v[c], dn,
                                                 preferred_element_type=F32)

            # ================= node-local epilogue on last tile =================
            @pl.when(t == last)
            def _():
                x_s = xs_ref[...]            # (N_pad, hs)
                x_v = xv_ref[...]            # (3, N_pad, hv)

                c_s, c_v = gvlinear(x_s, x_v, "cl")
                o_s = c_s + aggr_s_ref[...]
                o_v = c_v + aggr_v_ref[...]

                # LayerNorm over scalar channels
                mu = jnp.mean(o_s, axis=-1, keepdims=True)
                var = jnp.mean((o_s - mu) ** 2, axis=-1, keepdims=True)
                o_s = (o_s - mu) * lax.rsqrt(var + LN_EPS) * P["ln_s_g"] + P["ln_s_b"]

                # LayerNorm([hv, 3]): normalize each node over all 3*hv elements
                denom = 3.0 * hv
                sum_v = jnp.sum(jnp.sum(o_v, axis=0, keepdims=True),
                                axis=2, keepdims=True)
                mu_v = sum_v / denom                               # (1, N_pad, 1)
                dv = o_v - mu_v
                var_v = jnp.sum(jnp.sum(dv * dv, axis=0, keepdims=True),
                                axis=2, keepdims=True) / denom
                o_v = dv * lax.rsqrt(var_v + LN_EPS) * P["ln_v_g"] + P["ln_v_b"]

                # activations + out_transform
                o_s = _leaky_relu(o_s, SCA_NEG_SLOPE)
                o_v = vn_leaky_relu(o_v, P["av_Wd"])
                out_s, out_v = gvlinear(o_s, o_v, "ot")

                out_s_ref[...] = out_s
                out_v_ref[...] = out_v

        return kernel

    # ------------------------------------------------------------------ wrapper
    def forward(params, x_sca, x_vec, edge_index, edge_feature, edge_vector,
                edge_tile=256):
        N = x_sca.shape[0]
        E = edge_vector.shape[0]
        N_pad = _round_up(N, 8)
        E_tile = max(8, _round_up(min(edge_tile, E), 8))
        E_pad = _round_up(E, E_tile)
        T = E_pad // E_tile

        # node features (component-major vectors), sublane-padded
        x_s = jnp.pad(x_sca.astype(F32), ((0, N_pad - N), (0, 0)))
        x_v = jnp.pad(jnp.transpose(x_vec.astype(F32), (2, 0, 1)),
                      ((0, 0), (0, N_pad - N), (0, 0)))            # (3, N_pad, hv)

        row = edge_index[0].astype(jnp.int32)   # scatter destination
        col = edge_index[1].astype(jnp.int32)   # gather source
        pad_e = E_pad - E
        # padded edges scatter to index N_pad -> matches no one-hot column -> no-op
        row_p = jnp.pad(row, (0, pad_e), constant_values=N_pad).reshape(E_pad, 1)
        col_p = jnp.pad(col, (0, pad_e), constant_values=0)
        ev_p = jnp.pad(edge_vector.astype(F32), ((0, pad_e), (0, 0)))
        ef_p = jnp.pad(edge_feature.astype(F32), ((0, pad_e), (0, 0)))

        # node -> edge gather done as a plain XLA gather outside the kernel
        xs_j = x_s[col_p]                        # (E_pad, hs)
        xv_j = x_v[:, col_p, :]                  # (3, E_pad, hv)
        ev_t = jnp.transpose(ev_p)[:, :, None]   # (3, E_pad, 1)

        data_inputs = [xs_j, xv_j, ev_t, ef_p, row_p, x_s, x_v]
        param_inputs = [params[n] for n in param_names]
        inputs = data_inputs + param_inputs

        def resident(shape):
            nd = len(shape)
            return pl.BlockSpec(shape, lambda t, nd=nd: (0,) * nd)

        in_specs = [
            pl.BlockSpec((E_tile, hs), lambda t: (t, 0)),        # xs_j
            pl.BlockSpec((3, E_tile, hv), lambda t: (0, t, 0)),  # xv_j
            pl.BlockSpec((3, E_tile, 1), lambda t: (0, t, 0)),   # ev_t
            pl.BlockSpec((E_tile, net), lambda t: (t, 0)),       # edge_feature
            pl.BlockSpec((E_tile, 1), lambda t: (t, 0)),         # row
            resident((N_pad, hs)),                               # x_s (resident)
            resident((3, N_pad, hv)),                            # x_v (resident)
        ] + [resident(p.shape) for p in param_inputs]

        out_shape = (jax.ShapeDtypeStruct((N_pad, hs), F32),
                     jax.ShapeDtypeStruct((3, N_pad, hv), F32))
        out_specs = (resident((N_pad, hs)), resident((3, N_pad, hv)))

        grid_spec = pltpu.PrefetchScalarGridSpec(
            num_scalar_prefetch=0,
            grid=(T,),
            in_specs=in_specs,
            out_specs=out_specs,
            scratch_shapes=[pltpu.VMEM((N_pad, hs), F32),
                            pltpu.VMEM((3, N_pad, hv), F32)],
        )

        out_s, out_v = pl.pallas_call(
            build_kernel(N_pad, E_tile),
            grid_spec=grid_spec,
            out_shape=out_shape,
            compiler_params=pltpu.CompilerParams(
                dimension_semantics=("arbitrary",),      # edge axis = reduction
                vmem_limit_bytes=32 * 1024 * 1024),
        )(*inputs)

        # back to PyTorch layout: (N, hs), (N, hv, 3)
        return out_s[:N], jnp.transpose(out_v, (1, 2, 0))[:N]

    return init_params, forward


if __name__ == "__main__":
    hidden_channels = (32, 16)   # (scalar channels, vector channels)
    edge_channels = 16
    num_edge_types = 4
    cutoff = 10.0
    N, E = 8, 16

    init_params, forward = make_attention_interaction_block(
        hidden_channels, edge_channels, num_edge_types, cutoff=cutoff)

    key = jax.random.PRNGKey(0)
    kp, k1, k2, k3, k4, k5 = jax.random.split(key, 6)
    params = init_params(kp)

    x_sca = jax.random.normal(k1, (N, hidden_channels[0]), F32)
    x_vec = jax.random.normal(k2, (N, hidden_channels[1], 3), F32)
    edge_index = jax.random.randint(k3, (2, E), 0, N, dtype=jnp.int32)
    edge_type = jax.random.randint(k4, (E,), 0, num_edge_types)
    edge_feature = jax.nn.one_hot(edge_type, num_edge_types, dtype=F32)
    edge_vector = 3.0 * jax.random.normal(k5, (E, 3), F32)

    # edge_tile=8 -> grid of 2 edge tiles, exercising the accumulator path
    out_s, out_v = forward(params, x_sca, x_vec, edge_index, edge_feature,
                           edge_vector, edge_tile=8)
    jax.block_until_ready((out_s, out_v))
    assert out_s.shape == (N, hidden_channels[0])
    assert out_v.shape == (N, hidden_channels[1], 3)
    assert bool(jnp.all(jnp.isfinite(out_s))) and bool(jnp.all(jnp.isfinite(out_v)))
    print("KERNEL_OK")
</pallas_src>

<mosaic_0001>
module attributes {stable_mosaic.version = 11 : i64} {
  func.func @kernel(%arg0: i32, %arg1: memref<8x32xf32, #tpu.memory_space<vmem>>, %arg2: memref<3x8x16xf32, #tpu.memory_space<vmem>>, %arg3: memref<3x8x1xf32, #tpu.memory_space<vmem>>, %arg4: memref<8x4xf32, #tpu.memory_space<vmem>>, %arg5: memref<8x1xi32, #tpu.memory_space<vmem>>, %arg6: memref<8x32xf32, #tpu.memory_space<vmem>>, %arg7: memref<3x8x16xf32, #tpu.memory_space<vmem>>, %arg8: memref<1x12xf32, #tpu.memory_space<vmem>>, %arg9: memref<1x16xf32, #tpu.memory_space<vmem>>, %arg10: memref<16x16xf32, #tpu.memory_space<vmem>>, %arg11: memref<16x16xf32, #tpu.memory_space<vmem>>, %arg12: memref<16x32xf32, #tpu.memory_space<vmem>>, %arg13: memref<32x32xf32, #tpu.memory_space<vmem>>, %arg14: memref<32x16xf32, #tpu.memory_space<vmem>>, %arg15: memref<1x16xf32, #tpu.memory_space<vmem>>, %arg16: memref<16x16xf32, #tpu.memory_space<vmem>>, %arg17: memref<16x16xf32, #tpu.memory_space<vmem>>, %arg18: memref<16x16xf32, #tpu.memory_space<vmem>>, %arg19: memref<16x16xf32, #tpu.memory_space<vmem>>, %arg20: memref<16x16xf32, #tpu.memory_space<vmem>>, %arg21: memref<1x16xf32, #tpu.memory_space<vmem>>, %arg22: memref<16x16xf32, #tpu.memory_space<vmem>>, %arg23: memref<16x32xf32, #tpu.memory_space<vmem>>, %arg24: memref<1x32xf32, #tpu.memory_space<vmem>>, %arg25: memref<16x16xf32, #tpu.memory_space<vmem>>, %arg26: memref<1x16xf32, #tpu.memory_space<vmem>>, %arg27: memref<32x16xf32, #tpu.memory_space<vmem>>, %arg28: memref<1x16xf32, #tpu.memory_space<vmem>>, %arg29: memref<16x16xf32, #tpu.memory_space<vmem>>, %arg30: memref<1x16xf32, #tpu.memory_space<vmem>>, %arg31: memref<16x16xf32, #tpu.memory_space<vmem>>, %arg32: memref<16x16xf32, #tpu.memory_space<vmem>>, %arg33: memref<16x32xf32, #tpu.memory_space<vmem>>, %arg34: memref<32x32xf32, #tpu.memory_space<vmem>>, %arg35: memref<32x16xf32, #tpu.memory_space<vmem>>, %arg36: memref<1x16xf32, #tpu.memory_space<vmem>>, %arg37: memref<16x16xf32, #tpu.memory_space<vmem>>, %arg38: memref<16x16xf32, #tpu.memory_space<vmem>>, %arg39: memref<16x32xf32, #tpu.memory_space<vmem>>, %arg40: memref<32x32xf32, #tpu.memory_space<vmem>>, %arg41: memref<32x16xf32, #tpu.memory_space<vmem>>, %arg42: memref<1x16xf32, #tpu.memory_space<vmem>>, %arg43: memref<1x32xf32, #tpu.memory_space<vmem>>, %arg44: memref<1x32xf32, #tpu.memory_space<vmem>>, %arg45: memref<3x1x16xf32, #tpu.memory_space<vmem>>, %arg46: memref<3x1x16xf32, #tpu.memory_space<vmem>>, %arg47: memref<16x16xf32, #tpu.memory_space<vmem>>, %arg48: memref<16x16xf32, #tpu.memory_space<vmem>>, %arg49: memref<16x16xf32, #tpu.memory_space<vmem>>, %arg50: memref<16x32xf32, #tpu.memory_space<vmem>>, %arg51: memref<32x32xf32, #tpu.memory_space<vmem>>, %arg52: memref<32x16xf32, #tpu.memory_space<vmem>>, %arg53: memref<1x16xf32, #tpu.memory_space<vmem>>, %arg54: memref<8x32xf32, #tpu.memory_space<vmem>>, %arg55: memref<3x8x16xf32, #tpu.memory_space<vmem>>, %arg56: memref<8x32xf32, #tpu.memory_space<vmem>>, %arg57: memref<3x8x16xf32, #tpu.memory_space<vmem>>) attributes {dimension_semantics = [#tpu.dimension_semantics<arbitrary>], iteration_bounds = array<i64: 2>, scalar_prefetch = 0 : i64, scratch_operands = 2 : i64, tpu.core_type = #tpu.core_type<tc>, window_params = [{transform_indices = @transform_0, window_bounds = array<i64: 8, 32>}, {transform_indices = @transform_1, window_bounds = array<i64: 3, 8, 16>}, {transform_indices = @transform_2, window_bounds = array<i64: 3, 8, 1>}, {transform_indices = @transform_3, window_bounds = array<i64: 8, 4>}, {transform_indices = @transform_4, window_bounds = array<i64: 8, 1>}, {pipeline_mode = #tpu.pipeline_mode<synchronous>, transform_indices = @transform_5, window_bounds = array<i64: 8, 32>}, {pipeline_mode = #tpu.pipeline_mode<synchronous>, transform_indices = @transform_6, window_bounds = array<i64: 3, 8, 16>}, {pipeline_mode = #tpu.pipeline_mode<synchronous>, transform_indices = @transform_7, window_bounds = array<i64: 1, 12>}, {pipeline_mode = #tpu.pipeline_mode<synchronous>, transform_indices = @transform_8, window_bounds = array<i64: 1, 16>}, {pipeline_mode = #tpu.pipeline_mode<synchronous>, transform_indices = @transform_9, window_bounds = array<i64: 16, 16>}, {pipeline_mode = #tpu.pipeline_mode<synchronous>, transform_indices = @transform_10, window_bounds = array<i64: 16, 16>}, {pipeline_mode = #tpu.pipeline_mode<synchronous>, transform_indices = @transform_11, window_bounds = array<i64: 16, 32>}, {pipeline_mode = #tpu.pipeline_mode<synchronous>, transform_indices = @transform_12, window_bounds = array<i64: 32, 32>}, {pipeline_mode = #tpu.pipeline_mode<synchronous>, transform_indices = @transform_13, window_bounds = array<i64: 32, 16>}, {pipeline_mode = #tpu.pipeline_mode<synchronous>, transform_indices = @transform_14, window_bounds = array<i64: 1, 16>}, {pipeline_mode = #tpu.pipeline_mode<synchronous>, transform_indices = @transform_15, window_bounds = array<i64: 16, 16>}, {pipeline_mode = #tpu.pipeline_mode<synchronous>, transform_indices = @transform_16, window_bounds = array<i64: 16, 16>}, {pipeline_mode = #tpu.pipeline_mode<synchronous>, transform_indices = @transform_17, window_bounds = array<i64: 16, 16>}, {pipeline_mode = #tpu.pipeline_mode<synchronous>, transform_indices = @transform_18, window_bounds = array<i64: 16, 16>}, {pipeline_mode = #tpu.pipeline_mode<synchronous>, transform_indices = @transform_19, window_bounds = array<i64: 16, 16>}, {pipeline_mode = #tpu.pipeline_mode<synchronous>, transform_indices = @transform_20, window_bounds = array<i64: 1, 16>}, {pipeline_mode = #tpu.pipeline_mode<synchronous>, transform_indices = @transform_21, window_bounds = array<i64: 16, 16>}, {pipeline_mode = #tpu.pipeline_mode<synchronous>, transform_indices = @transform_22, window_bounds = array<i64: 16, 32>}, {pipeline_mode = #tpu.pipeline_mode<synchronous>, transform_indices = @transform_23, window_bounds = array<i64: 1, 32>}, {pipeline_mode = #tpu.pipeline_mode<synchronous>, transform_indices = @transform_24, window_bounds = array<i64: 16, 16>}, {pipeline_mode = #tpu.pipeline_mode<synchronous>, transform_indices = @transform_25, window_bounds = array<i64: 1, 16>}, {pipeline_mode = #tpu.pipeline_mode<synchronous>, transform_indices = @transform_26, window_bounds = array<i64: 32, 16>}, {pipeline_mode = #tpu.pipeline_mode<synchronous>, transform_indices = @transform_27, window_bounds = array<i64: 1, 16>}, {pipeline_mode = #tpu.pipeline_mode<synchronous>, transform_indices = @transform_28, window_bounds = array<i64: 16, 16>}, {pipeline_mode = #tpu.pipeline_mode<synchronous>, transform_indices = @transform_29, window_bounds = array<i64: 1, 16>}, {pipeline_mode = #tpu.pipeline_mode<synchronous>, transform_indices = @transform_30, window_bounds = array<i64: 16, 16>}, {pipeline_mode = #tpu.pipeline_mode<synchronous>, transform_indices = @transform_31, window_bounds = array<i64: 16, 16>}, {pipeline_mode = #tpu.pipeline_mode<synchronous>, transform_indices = @transform_32, window_bounds = array<i64: 16, 32>}, {pipeline_mode = #tpu.pipeline_mode<synchronous>, transform_indices = @transform_33, window_bounds = array<i64: 32, 32>}, {pipeline_mode = #tpu.pipeline_mode<synchronous>, transform_indices = @transform_34, window_bounds = array<i64: 32, 16>}, {pipeline_mode = #tpu.pipeline_mode<synchronous>, transform_indices = @transform_35, window_bounds = array<i64: 1, 16>}, {pipeline_mode = #tpu.pipeline_mode<synchronous>, transform_indices = @transform_36, window_bounds = array<i64: 16, 16>}, {pipeline_mode = #tpu.pipeline_mode<synchronous>, transform_indices = @transform_37, window_bounds = array<i64: 16, 16>}, {pipeline_mode = #tpu.pipeline_mode<synchronous>, transform_indices = @transform_38, window_bounds = array<i64: 16, 32>}, {pipeline_mode = #tpu.pipeline_mode<synchronous>, transform_indices = @transform_39, window_bounds = array<i64: 32, 32>}, {pipeline_mode = #tpu.pipeline_mode<synchronous>, transform_indices = @transform_40, window_bounds = array<i64: 32, 16>}, {pipeline_mode = #tpu.pipeline_mode<synchronous>, transform_indices = @transform_41, window_bounds = array<i64: 1, 16>}, {pipeline_mode = #tpu.pipeline_mode<synchronous>, transform_indices = @transform_42, window_bounds = array<i64: 1, 32>}, {pipeline_mode = #tpu.pipeline_mode<synchronous>, transform_indices = @transform_43, window_bounds = array<i64: 1, 32>}, {pipeline_mode = #tpu.pipeline_mode<synchronous>, transform_indices = @transform_44, window_bounds = array<i64: 3, 1, 16>}, {pipeline_mode = #tpu.pipeline_mode<synchronous>, transform_indices = @transform_45, window_bounds = array<i64: 3, 1, 16>}, {pipeline_mode = #tpu.pipeline_mode<synchronous>, transform_indices = @transform_46, window_bounds = array<i64: 16, 16>}, {pipeline_mode = #tpu.pipeline_mode<synchronous>, transform_indices = @transform_47, window_bounds = array<i64: 16, 16>}, {pipeline_mode = #tpu.pipeline_mode<synchronous>, transform_indices = @transform_48, window_bounds = array<i64: 16, 16>}, {pipeline_mode = #tpu.pipeline_mode<synchronous>, transform_indices = @transform_49, window_bounds = array<i64: 16, 32>}, {pipeline_mode = #tpu.pipeline_mode<synchronous>, transform_indices = @transform_50, window_bounds = array<i64: 32, 32>}, {pipeline_mode = #tpu.pipeline_mode<synchronous>, transform_indices = @transform_51, window_bounds = array<i64: 32, 16>}, {pipeline_mode = #tpu.pipeline_mode<synchronous>, transform_indices = @transform_52, window_bounds = array<i64: 1, 16>}, {pipeline_mode = #tpu.pipeline_mode<synchronous>, transform_indices = @transform_53, window_bounds = array<i64: 8, 32>}, {pipeline_mode = #tpu.pipeline_mode<synchronous>, transform_indices = @transform_54, window_bounds = array<i64: 3, 8, 16>}]} {
    %c0 = arith.constant 0 : index
    %c0_0 = arith.constant 0 : index
    %0 = vector.load %arg8[%c0, %c0_0] : memref<1x12xf32, #tpu.memory_space<vmem>>, vector<1x12xf32>
    %c0_1 = arith.constant 0 : index
    %c0_2 = arith.constant 0 : index
    %1 = vector.load %arg9[%c0_1, %c0_2] : memref<1x16xf32, #tpu.memory_space<vmem>>, vector<1x16xf32>
    %c0_3 = arith.constant 0 : index
    %c0_4 = arith.constant 0 : index
    %2 = vector.load %arg10[%c0_3, %c0_4] : memref<16x16xf32, #tpu.memory_space<vmem>>, vector<16x16xf32>
    %c0_5 = arith.constant 0 : index
    %c0_6 = arith.constant 0 : index
    %3 = vector.load %arg11[%c0_5, %c0_6] : memref<16x16xf32, #tpu.memory_space<vmem>>, vector<16x16xf32>
    %c0_7 = arith.constant 0 : index
    %c0_8 = arith.constant 0 : index
    %4 = vector.load %arg12[%c0_7, %c0_8] : memref<16x32xf32, #tpu.memory_space<vmem>>, vector<16x32xf32>
    %c0_9 = arith.constant 0 : index
    %c0_10 = arith.constant 0 : index
    %5 = vector.load %arg13[%c0_9, %c0_10] : memref<32x32xf32, #tpu.memory_space<vmem>>, vector<32x32xf32>
    %c0_11 = arith.constant 0 : index
    %c0_12 = arith.constant 0 : index
    %6 = vector.load %arg14[%c0_11, %c0_12] : memref<32x16xf32, #tpu.memory_space<vmem>>, vector<32x16xf32>
    %c0_13 = arith.constant 0 : index
    %c0_14 = arith.constant 0 : index
    %7 = vector.load %arg15[%c0_13, %c0_14] : memref<1x16xf32, #tpu.memory_space<vmem>>, vector<1x16xf32>
    %c0_15 = arith.constant 0 : index
    %c0_16 = arith.constant 0 : index
    %8 = vector.load %arg16[%c0_15, %c0_16] : memref<16x16xf32, #tpu.memory_space<vmem>>, vector<16x16xf32>
    %c0_17 = arith.constant 0 : index
    %c0_18 = arith.constant 0 : index
    %9 = vector.load %arg17[%c0_17, %c0_18] : memref<16x16xf32, #tpu.memory_space<vmem>>, vector<16x16xf32>
    %c0_19 = arith.constant 0 : index
    %c0_20 = arith.constant 0 : index
    %10 = vector.load %arg18[%c0_19, %c0_20] : memref<16x16xf32, #tpu.memory_space<vmem>>, vector<16x16xf32>
    %c0_21 = arith.constant 0 : index
    %c0_22 = arith.constant 0 : index
    %11 = vector.load %arg19[%c0_21, %c0_22] : memref<16x16xf32, #tpu.memory_space<vmem>>, vector<16x16xf32>
    %c0_23 = arith.constant 0 : index
    %c0_24 = arith.constant 0 : index
    %12 = vector.load %arg20[%c0_23, %c0_24] : memref<16x16xf32, #tpu.memory_space<vmem>>, vector<16x16xf32>
    %c0_25 = arith.constant 0 : index
    %c0_26 = arith.constant 0 : index
    %13 = vector.load %arg21[%c0_25, %c0_26] : memref<1x16xf32, #tpu.memory_space<vmem>>, vector<1x16xf32>
    %c0_27 = arith.constant 0 : index
    %c0_28 = arith.constant 0 : index
    %14 = vector.load %arg22[%c0_27, %c0_28] : memref<16x16xf32, #tpu.memory_space<vmem>>, vector<16x16xf32>
    %c0_29 = arith.constant 0 : index
    %c0_30 = arith.constant 0 : index
    %15 = vector.load %arg23[%c0_29, %c0_30] : memref<16x32xf32, #tpu.memory_space<vmem>>, vector<16x32xf32>
    %c0_31 = arith.constant 0 : index
    %c0_32 = arith.constant 0 : index
    %16 = vector.load %arg24[%c0_31, %c0_32] : memref<1x32xf32, #tpu.memory_space<vmem>>, vector<1x32xf32>
    %c0_33 = arith.constant 0 : index
    %c0_34 = arith.constant 0 : index
    %17 = vector.load %arg25[%c0_33, %c0_34] : memref<16x16xf32, #tpu.memory_space<vmem>>, vector<16x16xf32>
    %c0_35 = arith.constant 0 : index
    %c0_36 = arith.constant 0 : index
    %18 = vector.load %arg26[%c0_35, %c0_36] : memref<1x16xf32, #tpu.memory_space<vmem>>, vector<1x16xf32>
    %c0_37 = arith.constant 0 : index
    %c0_38 = arith.constant 0 : index
    %19 = vector.load %arg27[%c0_37, %c0_38] : memref<32x16xf32, #tpu.memory_space<vmem>>, vector<32x16xf32>
    %c0_39 = arith.constant 0 : index
    %c0_40 = arith.constant 0 : index
    %20 = vector.load %arg28[%c0_39, %c0_40] : memref<1x16xf32, #tpu.memory_space<vmem>>, vector<1x16xf32>
    %c0_41 = arith.constant 0 : index
    %c0_42 = arith.constant 0 : index
    %21 = vector.load %arg29[%c0_41, %c0_42] : memref<16x16xf32, #tpu.memory_space<vmem>>, vector<16x16xf32>
    %c0_43 = arith.constant 0 : index
    %c0_44 = arith.constant 0 : index
    %22 = vector.load %arg30[%c0_43, %c0_44] : memref<1x16xf32, #tpu.memory_space<vmem>>, vector<1x16xf32>
    %c0_45 = arith.constant 0 : index
    %c0_46 = arith.constant 0 : index
    %23 = vector.load %arg31[%c0_45, %c0_46] : memref<16x16xf32, #tpu.memory_space<vmem>>, vector<16x16xf32>
    %c0_47 = arith.constant 0 : index
    %c0_48 = arith.constant 0 : index
    %24 = vector.load %arg32[%c0_47, %c0_48] : memref<16x16xf32, #tpu.memory_space<vmem>>, vector<16x16xf32>
    %c0_49 = arith.constant 0 : index
    %c0_50 = arith.constant 0 : index
    %25 = vector.load %arg33[%c0_49, %c0_50] : memref<16x32xf32, #tpu.memory_space<vmem>>, vector<16x32xf32>
    %c0_51 = arith.constant 0 : index
    %c0_52 = arith.constant 0 : index
    %26 = vector.load %arg34[%c0_51, %c0_52] : memref<32x32xf32, #tpu.memory_space<vmem>>, vector<32x32xf32>
    %c0_53 = arith.constant 0 : index
    %c0_54 = arith.constant 0 : index
    %27 = vector.load %arg35[%c0_53, %c0_54] : memref<32x16xf32, #tpu.memory_space<vmem>>, vector<32x16xf32>
    %c0_55 = arith.constant 0 : index
    %c0_56 = arith.constant 0 : index
    %28 = vector.load %arg36[%c0_55, %c0_56] : memref<1x16xf32, #tpu.memory_space<vmem>>, vector<1x16xf32>
    %c0_57 = arith.constant 0 : index
    %c0_58 = arith.constant 0 : index
    %29 = vector.load %arg37[%c0_57, %c0_58] : memref<16x16xf32, #tpu.memory_space<vmem>>, vector<16x16xf32>
    %c0_59 = arith.constant 0 : index
    %c0_60 = arith.constant 0 : index
    %30 = vector.load %arg38[%c0_59, %c0_60] : memref<16x16xf32, #tpu.memory_space<vmem>>, vector<16x16xf32>
    %c0_61 = arith.constant 0 : index
    %c0_62 = arith.constant 0 : index
    %31 = vector.load %arg39[%c0_61, %c0_62] : memref<16x32xf32, #tpu.memory_space<vmem>>, vector<16x32xf32>
    %c0_63 = arith.constant 0 : index
    %c0_64 = arith.constant 0 : index
    %32 = vector.load %arg40[%c0_63, %c0_64] : memref<32x32xf32, #tpu.memory_space<vmem>>, vector<32x32xf32>
    %c0_65 = arith.constant 0 : index
    %c0_66 = arith.constant 0 : index
    %33 = vector.load %arg41[%c0_65, %c0_66] : memref<32x16xf32, #tpu.memory_space<vmem>>, vector<32x16xf32>
    %c0_67 = arith.constant 0 : index
    %c0_68 = arith.constant 0 : index
    %34 = vector.load %arg42[%c0_67, %c0_68] : memref<1x16xf32, #tpu.memory_space<vmem>>, vector<1x16xf32>
    %c0_69 = arith.constant 0 : index
    %c0_70 = arith.constant 0 : index
    %35 = vector.load %arg43[%c0_69, %c0_70] : memref<1x32xf32, #tpu.memory_space<vmem>>, vector<1x32xf32>
    %c0_71 = arith.constant 0 : index
    %c0_72 = arith.constant 0 : index
    %36 = vector.load %arg44[%c0_71, %c0_72] : memref<1x32xf32, #tpu.memory_space<vmem>>, vector<1x32xf32>
    %c0_73 = arith.constant 0 : index
    %c0_74 = arith.constant 0 : index
    %c0_75 = arith.constant 0 : index
    %37 = vector.load %arg45[%c0_73, %c0_74, %c0_75] : memref<3x1x16xf32, #tpu.memory_space<vmem>>, vector<3x1x16xf32>
    %c0_76 = arith.constant 0 : index
    %c0_77 = arith.constant 0 : index
    %c0_78 = arith.constant 0 : index
    %38 = vector.load %arg46[%c0_76, %c0_77, %c0_78] : memref<3x1x16xf32, #tpu.memory_space<vmem>>, vector<3x1x16xf32>
    %c0_79 = arith.constant 0 : index
    %c0_80 = arith.constant 0 : index
    %39 = vector.load %arg47[%c0_79, %c0_80] : memref<16x16xf32, #tpu.memory_space<vmem>>, vector<16x16xf32>
    %c0_81 = arith.constant 0 : index
    %c0_82 = arith.constant 0 : index
    %40 = vector.load %arg48[%c0_81, %c0_82] : memref<16x16xf32, #tpu.memory_space<vmem>>, vector<16x16xf32>
    %c0_83 = arith.constant 0 : index
    %c0_84 = arith.constant 0 : index
    %41 = vector.load %arg49[%c0_83, %c0_84] : memref<16x16xf32, #tpu.memory_space<vmem>>, vector<16x16xf32>
    %c0_85 = arith.constant 0 : index
    %c0_86 = arith.constant 0 : index
    %42 = vector.load %arg50[%c0_85, %c0_86] : memref<16x32xf32, #tpu.memory_space<vmem>>, vector<16x32xf32>
    %c0_87 = arith.constant 0 : index
    %c0_88 = arith.constant 0 : index
    %43 = vector.load %arg51[%c0_87, %c0_88] : memref<32x32xf32, #tpu.memory_space<vmem>>, vector<32x32xf32>
    %c0_89 = arith.constant 0 : index
    %c0_90 = arith.constant 0 : index
    %44 = vector.load %arg52[%c0_89, %c0_90] : memref<32x16xf32, #tpu.memory_space<vmem>>, vector<32x16xf32>
    %c0_91 = arith.constant 0 : index
    %c0_92 = arith.constant 0 : index
    %45 = vector.load %arg53[%c0_91, %c0_92] : memref<1x16xf32, #tpu.memory_space<vmem>>, vector<1x16xf32>
    %c0_i32 = arith.constant 0 : i32
    %46 = arith.cmpi eq, %arg0, %c0_i32 : i32
    %47 = arith.extui %46 : i1 to i32
    %c0_i32_93 = arith.constant 0 : i32
    %48 = arith.cmpi ne, %47, %c0_i32_93 : i32
    scf.if %48 {
      %cst_175 = arith.constant 0.000000e+00 : f32
      %261 = vector.broadcast %cst_175 : f32 to vector<8x32xf32>
      %c0_176 = arith.constant 0 : index
      %c0_177 = arith.constant 0 : index
      %262 = vector.load %arg56[%c0_176, %c0_177] : memref<8x32xf32, #tpu.memory_space<vmem>>, vector<8x32xf32>
      tpu.vector_store %arg56[%c0_176, %c0_177], %261 {strides = array<i32>} : memref<8x32xf32, #tpu.memory_space<vmem>>, vector<8x32xf32>,
      %cst_178 = arith.constant 0.000000e+00 : f32
      %263 = vector.broadcast %cst_178 : f32 to vector<3x8x16xf32>
      %c0_179 = arith.constant 0 : index
      %c0_180 = arith.constant 0 : index
      %c0_181 = arith.constant 0 : index
      %264 = vector.load %arg57[%c0_179, %c0_180, %c0_181] : memref<3x8x16xf32, #tpu.memory_space<vmem>>, vector<3x8x16xf32>
      tpu.vector_store %arg57[%c0_179, %c0_180, %c0_181], %263 {strides = array<i32>} : memref<3x8x16xf32, #tpu.memory_space<vmem>>, vector<3x8x16xf32>,
    } else {
    }
    %c0_94 = arith.constant 0 : index
    %c0_95 = arith.constant 0 : index
    %49 = vector.load %arg1[%c0_94, %c0_95] : memref<8x32xf32, #tpu.memory_space<vmem>>, vector<8x32xf32>
    %c0_96 = arith.constant 0 : index
    %c0_97 = arith.constant 0 : index
    %c0_98 = arith.constant 0 : index
    %50 = vector.load %arg2[%c0_96, %c0_97, %c0_98] : memref<3x8x16xf32, #tpu.memory_space<vmem>>, vector<3x8x16xf32>
    %c0_99 = arith.constant 0 : index
    %c0_100 = arith.constant 0 : index
    %c0_101 = arith.constant 0 : index
    %51 = vector.load %arg3[%c0_99, %c0_100, %c0_101] : memref<3x8x1xf32, #tpu.memory_space<vmem>>, vector<3x8x1xf32>
    %c0_102 = arith.constant 0 : index
    %c0_103 = arith.constant 0 : index
    %52 = vector.load %arg4[%c0_102, %c0_103] : memref<8x4xf32, #tpu.memory_space<vmem>>, vector<8x4xf32>
    %c0_104 = arith.constant 0 : index
    %c0_105 = arith.constant 0 : index
    %53 = vector.load %arg5[%c0_104, %c0_105] : memref<8x1xi32, #tpu.memory_space<vmem>>, vector<8x1xi32>
    %54 = arith.mulf %51, %51 : vector<3x8x1xf32>
    %cst = arith.constant dense<0.000000e+00> : vector<8x1xf32>
    %55 = vector.multi_reduction <add>, %54, %cst [0] : vector<3x8x1xf32> to vector<8x1xf32>
    %56 = math.sqrt %55 : vector<8x1xf32>
    %57 = vector.broadcast %56 : vector<8x1xf32> to vector<8x12xf32>
    %58 = vector.broadcast %0 : vector<1x12xf32> to vector<8x12xf32>
    %59 = arith.subf %57, %58 : vector<8x12xf32>
    %cst_106 = arith.constant -6.050000e-01 : f32
    %60 = vector.broadcast %cst_106 : f32 to vector<8x12xf32>
    %61 = arith.mulf %60, %59 : vector<8x12xf32>
    %62 = arith.mulf %61, %59 : vector<8x12xf32>
    %63 = math.exp %62 : vector<8x12xf32>
    %64 = tpu.concatenate %63, %52 in 1 : vector<8x12xf32>, vector<8x4xf32> -> vector<8x16xf32>
    %65 = vector.shape_cast %56 : vector<8x1xf32> to vector<1x8x1xf32>
    %cst_107 = arith.constant 1.000000e-07 : f32
    %66 = vector.broadcast %cst_107 : f32 to vector<1x8x1xf32>
    %67 = arith.addf %65, %66 : vector<1x8x1xf32>
    %68 = vector.broadcast %67 : vector<1x8x1xf32> to vector<3x8x1xf32>
    %69 = arith.divf %51, %68 : vector<3x8x1xf32>
    %70 = vector.shape_cast %1 : vector<1x16xf32> to vector<1x1x16xf32>
    %71 = vector.broadcast %69 : vector<3x8x1xf32> to vector<3x8x16xf32>
    %72 = vector.broadcast %70 : vector<1x1x16xf32> to vector<3x8x16xf32>
    %73 = arith.mulf %71, %72 : vector<3x8x16xf32>
    %74 = vector.shape_cast %50 : vector<3x8x16xf32> to vector<24x16xf32>
    %cst_108 = arith.constant dense<0.000000e+00> : vector<24x16xf32>
    %75 = tpu.matmul %74, %2, %cst_108 {dimension_numbers = #tpu.dot_dimension_numbers<[1], [0], [0], [1], [0, 0, 1, 1], [], []>} : vector<24x16xf32>, vector<16x16xf32>, vector<24x16xf32> -> vector<24x16xf32>
    %76 = vector.shape_cast %75 : vector<24x16xf32> to vector<3x8x16xf32>
    %77 = arith.mulf %76, %76 : vector<3x8x16xf32>
    %cst_109 = arith.constant dense<0.000000e+00> : vector<8x16xf32>
    %78 = vector.multi_reduction <add>, %77, %cst_109 [0] : vector<3x8x16xf32> to vector<8x16xf32>
    %79 = math.sqrt %78 : vector<8x16xf32>
    %cst_110 = arith.constant dense<0.000000e+00> : vector<8x32xf32>
    %80 = tpu.matmul %79, %4, %cst_110 {dimension_numbers = #tpu.dot_dimension_numbers<[1], [0], [0], [1], [0, 0, 1, 1], [], []>} : vector<8x16xf32>, vector<16x32xf32>, vector<8x32xf32> -> vector<8x32xf32>
    %cst_111 = arith.constant dense<0.000000e+00> : vector<8x32xf32>
    %81 = tpu.matmul %49, %5, %cst_111 {dimension_numbers = #tpu.dot_dimension_numbers<[1], [0], [0], [1], [0, 0, 1, 1], [], []>} : vector<8x32xf32>, vector<32x32xf32>, vector<8x32xf32> -> vector<8x32xf32>
    %82 = arith.addf %80, %81 : vector<8x32xf32>
    %83 = vector.shape_cast %76 : vector<3x8x16xf32> to vector<24x16xf32>
    %cst_112 = arith.constant dense<0.000000e+00> : vector<24x16xf32>
    %84 = tpu.matmul %83, %3, %cst_112 {dimension_numbers = #tpu.dot_dimension_numbers<[1], [0], [0], [1], [0, 0, 1, 1], [], []>} : vector<24x16xf32>, vector<16x16xf32>, vector<24x16xf32> -> vector<24x16xf32>
    %85 = vector.shape_cast %84 : vector<24x16xf32> to vector<3x8x16xf32>
    %cst_113 = arith.constant dense<0.000000e+00> : vector<8x16xf32>
    %86 = tpu.matmul %82, %6, %cst_113 {dimension_numbers = #tpu.dot_dimension_numbers<[1], [0], [0], [1], [0, 0, 1, 1], [], []>} : vector<8x32xf32>, vector<32x16xf32>, vector<8x16xf32> -> vector<8x16xf32>
    %87 = vector.broadcast %7 : vector<1x16xf32> to vector<8x16xf32>
    %88 = arith.addf %86, %87 : vector<8x16xf32>
    %cst_114 = arith.constant 0.000000e+00 : f32
    %89 = vector.broadcast %cst_114 : f32 to vector<8x16xf32>
    %90 = arith.subf %89, %88 : vector<8x16xf32>
    %91 = math.exp %90 : vector<8x16xf32>
    %cst_115 = arith.constant 1.000000e+00 : f32
    %92 = vector.broadcast %cst_115 : f32 to vector<8x16xf32>
    %93 = arith.addf %92, %91 : vector<8x16xf32>
    %94 = tpu.reciprocal %93 {approx = true} : vector<8x16xf32> -> vector<8x16xf32>
    %95 = vector.shape_cast %94 : vector<8x16xf32> to vector<1x8x16xf32>
    %96 = vector.broadcast %95 : vector<1x8x16xf32> to vector<3x8x16xf32>
    %97 = arith.mulf %96, %85 : vector<3x8x16xf32>
    %98 = vector.shape_cast %73 : vector<3x8x16xf32> to vector<24x16xf32>
    %cst_116 = arith.constant dense<0.000000e+00> : vector<24x16xf32>
    %99 = tpu.matmul %98, %8, %cst_116 {dimension_numbers = #tpu.dot_dimension_numbers<[1], [0], [0], [1], [0, 0, 1, 1], [], []>} : vector<24x16xf32>, vector<16x16xf32>, vector<24x16xf32> -> vector<24x16xf32>
    %100 = vector.shape_cast %99 : vector<24x16xf32> to vector<3x8x16xf32>
    %101 = arith.mulf %100, %100 : vector<3x8x16xf32>
    %cst_117 = arith.constant dense<0.000000e+00> : vector<8x16xf32>
    %102 = vector.multi_reduction <add>, %101, %cst_117 [0] : vector<3x8x16xf32> to vector<8x16xf32>
    %103 = math.sqrt %102 : vector<8x16xf32>
    %cst_118 = arith.constant dense<0.000000e+00> : vector<8x16xf32>
    %104 = tpu.matmul %103, %10, %cst_118 {dimension_numbers = #tpu.dot_dimension_numbers<[1], [0], [0], [1], [0, 0, 1, 1], [], []>} : vector<8x16xf32>, vector<16x16xf32>, vector<8x16xf32> -> vector<8x16xf32>
    %cst_119 = arith.constant dense<0.000000e+00> : vector<8x16xf32>
    %105 = tpu.matmul %64, %11, %cst_119 {dimension_numbers = #tpu.dot_dimension_numbers<[1], [0], [0], [1], [0, 0, 1, 1], [], []>} : vector<8x16xf32>, vector<16x16xf32>, vector<8x16xf32> -> vector<8x16xf32>
    %106 = arith.addf %104, %105 : vector<8x16xf32>
    %107 = vector.shape_cast %100 : vector<3x8x16xf32> to vector<24x16xf32>
    %cst_120 = arith.constant dense<0.000000e+00> : vector<24x16xf32>
    %108 = tpu.matmul %107, %9, %cst_120 {dimension_numbers = #tpu.dot_dimension_numbers<[1], [0], [0], [1], [0, 0, 1, 1], [], []>} : vector<24x16xf32>, vector<16x16xf32>, vector<24x16xf32> -> vector<24x16xf32>
    %109 = vector.shape_cast %108 : vector<24x16xf32> to vector<3x8x16xf32>
    %cst_121 = arith.constant dense<0.000000e+00> : vector<8x16xf32>
    %110 = tpu.matmul %106, %12, %cst_121 {dimension_numbers = #tpu.dot_dimension_numbers<[1], [0], [0], [1], [0, 0, 1, 1], [], []>} : vector<8x16xf32>, vector<16x16xf32>, vector<8x16xf32> -> vector<8x16xf32>
    %111 = vector.broadcast %13 : vector<1x16xf32> to vector<8x16xf32>
    %112 = arith.addf %110, %111 : vector<8x16xf32>
    %cst_122 = arith.constant 0.000000e+00 : f32
    %113 = vector.broadcast %cst_122 : f32 to vector<8x16xf32>
    %114 = arith.subf %113, %112 : vector<8x16xf32>
    %115 = math.exp %114 : vector<8x16xf32>
    %cst_123 = arith.constant 1.000000e+00 : f32
    %116 = vector.broadcast %cst_123 : f32 to vector<8x16xf32>
    %117 = arith.addf %116, %115 : vector<8x16xf32>
    %118 = tpu.reciprocal %117 {approx = true} : vector<8x16xf32> -> vector<8x16xf32>
    %119 = vector.shape_cast %118 : vector<8x16xf32> to vector<1x8x16xf32>
    %120 = vector.broadcast %119 : vector<1x8x16xf32> to vector<3x8x16xf32>
    %121 = arith.mulf %120, %109 : vector<3x8x16xf32>
    %122 = vector.shape_cast %121 : vector<3x8x16xf32> to vector<24x16xf32>
    %cst_124 = arith.constant dense<0.000000e+00> : vector<24x16xf32>
    %123 = tpu.matmul %122, %14, %cst_124 {dimension_numbers = #tpu.dot_dimension_numbers<[1], [0], [0], [1], [0, 0, 1, 1], [], []>} : vector<24x16xf32>, vector<16x16xf32>, vector<24x16xf32> -> vector<24x16xf32>
    %124 = vector.shape_cast %123 : vector<24x16xf32> to vector<3x8x16xf32>
    %125 = arith.mulf %121, %124 : vector<3x8x16xf32>
    %cst_125 = arith.constant dense<0.000000e+00> : vector<8x16xf32>
    %126 = vector.multi_reduction <add>, %125, %cst_125 [0] : vector<3x8x16xf32> to vector<8x16xf32>
    %127 = vector.shape_cast %126 : vector<8x16xf32> to vector<1x8x16xf32>
    %cst_126 = arith.constant 0.000000e+00 : f32
    %128 = vector.broadcast %cst_126 : f32 to vector<1x8x16xf32>
    %129 = arith.cmpf oge, %127, %128 : vector<1x8x16xf32>
    %130 = arith.extui %129 : vector<1x8x16xi1> to vector<1x8x16xi32>
    %131 = arith.sitofp %130 : vector<1x8x16xi32> to vector<1x8x16xf32>
    %132 = arith.mulf %124, %124 : vector<3x8x16xf32>
    %cst_127 = arith.constant dense<0.000000e+00> : vector<8x16xf32>
    %133 = vector.multi_reduction <add>, %132, %cst_127 [0] : vector<3x8x16xf32> to vector<8x16xf32>
    %134 = vector.shape_cast %133 : vector<8x16xf32> to vector<1x8x16xf32>
    %cst_128 = arith.constant 9.99999997E-7 : f32
    %135 = vector.broadcast %cst_128 : f32 to vector<1x8x16xf32>
    %136 = arith.addf %134, %135 : vector<1x8x16xf32>
    %137 = arith.divf %127, %136 : vector<1x8x16xf32>
    %138 = vector.broadcast %137 : vector<1x8x16xf32> to vector<3x8x16xf32>
    %139 = arith.mulf %138, %124 : vector<3x8x16xf32>
    %140 = arith.subf %121, %139 : vector<3x8x16xf32>
    %cst_129 = arith.constant 2.000000e-01 : f32
    %141 = vector.broadcast %cst_129 : f32 to vector<3x8x16xf32>
    %142 = arith.mulf %141, %121 : vector<3x8x16xf32>
    %143 = vector.broadcast %131 : vector<1x8x16xf32> to vector<3x8x16xf32>
    %144 = arith.mulf %143, %121 : vector<3x8x16xf32>
    %cst_130 = arith.constant 1.000000e+00 : f32
    %145 = vector.broadcast %cst_130 : f32 to vector<1x8x16xf32>
    %146 = arith.subf %145, %131 : vector<1x8x16xf32>
    %147 = vector.broadcast %146 : vector<1x8x16xf32> to vector<3x8x16xf32>
    %148 = arith.mulf %147, %140 : vector<3x8x16xf32>
    %149 = arith.addf %144, %148 : vector<3x8x16xf32>
    %cst_131 = arith.constant 8.000000e-01 : f32
    %150 = vector.broadcast %cst_131 : f32 to vector<3x8x16xf32>
    %151 = arith.mulf %150, %149 : vector<3x8x16xf32>
    %152 = arith.addf %142, %151 : vector<3x8x16xf32>
    %cst_132 = arith.constant 0.000000e+00 : f32
    %153 = vector.broadcast %cst_132 : f32 to vector<8x16xf32>
    %154 = arith.cmpf oge, %106, %153 : vector<8x16xf32>
    %cst_133 = arith.constant 0.00999999977 : f32
    %155 = vector.broadcast %cst_133 : f32 to vector<8x16xf32>
    %156 = arith.mulf %155, %106 : vector<8x16xf32>
    %157 = arith.select %154, %106, %156 : vector<8x16xi1>, vector<8x16xf32>
    %cst_134 = arith.constant dense<0.000000e+00> : vector<8x32xf32>
    %158 = tpu.matmul %157, %15, %cst_134 {dimension_numbers = #tpu.dot_dimension_numbers<[1], [0], [0], [1], [0, 0, 1, 1], [], []>} : vector<8x16xf32>, vector<16x32xf32>, vector<8x32xf32> -> vector<8x32xf32>
    %159 = vector.broadcast %16 : vector<1x32xf32> to vector<8x32xf32>
    %160 = arith.addf %158, %159 : vector<8x32xf32>
    %161 = arith.mulf %82, %160 : vector<8x32xf32>
    %cst_135 = arith.constant dense<0.000000e+00> : vector<8x16xf32>
    %162 = tpu.matmul %157, %17, %cst_135 {dimension_numbers = #tpu.dot_dimension_numbers<[1], [0], [0], [1], [0, 0, 1, 1], [], []>} : vector<8x16xf32>, vector<16x16xf32>, vector<8x16xf32> -> vector<8x16xf32>
    %163 = vector.broadcast %18 : vector<1x16xf32> to vector<8x16xf32>
    %164 = arith.addf %162, %163 : vector<8x16xf32>
    %cst_136 = arith.constant dense<0.000000e+00> : vector<8x16xf32>
    %165 = tpu.matmul %82, %19, %cst_136 {dimension_numbers = #tpu.dot_dimension_numbers<[1], [0], [0], [1], [0, 0, 1, 1], [], []>} : vector<8x32xf32>, vector<32x16xf32>, vector<8x16xf32> -> vector<8x16xf32>
    %166 = vector.broadcast %20 : vector<1x16xf32> to vector<8x16xf32>
    %167 = arith.addf %165, %166 : vector<8x16xf32>
    %168 = vector.shape_cast %164 : vector<8x16xf32> to vector<1x8x16xf32>
    %169 = vector.broadcast %168 : vector<1x8x16xf32> to vector<3x8x16xf32>
    %170 = arith.mulf %169, %97 : vector<3x8x16xf32>
    %171 = vector.shape_cast %167 : vector<8x16xf32> to vector<1x8x16xf32>
    %172 = vector.shape_cast %152 : vector<3x8x16xf32> to vector<24x16xf32>
    %cst_137 = arith.constant dense<0.000000e+00> : vector<24x16xf32>
    %173 = tpu.matmul %172, %21, %cst_137 {dimension_numbers = #tpu.dot_dimension_numbers<[1], [0], [0], [1], [0, 0, 1, 1], [], []>} : vector<24x16xf32>, vector<16x16xf32>, vector<24x16xf32> -> vector<24x16xf32>
    %174 = vector.shape_cast %173 : vector<24x16xf32> to vector<3x8x16xf32>
    %175 = vector.shape_cast %22 : vector<1x16xf32> to vector<1x1x16xf32>
    %176 = vector.broadcast %175 : vector<1x1x16xf32> to vector<3x8x16xf32>
    %177 = arith.addf %174, %176 : vector<3x8x16xf32>
    %178 = vector.broadcast %171 : vector<1x8x16xf32> to vector<3x8x16xf32>
    %179 = arith.mulf %178, %177 : vector<3x8x16xf32>
    %180 = arith.addf %170, %179 : vector<3x8x16xf32>
    %181 = vector.shape_cast %180 : vector<3x8x16xf32> to vector<24x16xf32>
    %cst_138 = arith.constant dense<0.000000e+00> : vector<24x16xf32>
    %182 = tpu.matmul %181, %23, %cst_138 {dimension_numbers = #tpu.dot_dimension_numbers<[1], [0], [0], [1], [0, 0, 1, 1], [], []>} : vector<24x16xf32>, vector<16x16xf32>, vector<24x16xf32> -> vector<24x16xf32>
    %183 = vector.shape_cast %182 : vector<24x16xf32> to vector<3x8x16xf32>
    %184 = arith.mulf %183, %183 : vector<3x8x16xf32>
    %cst_139 = arith.constant dense<0.000000e+00> : vector<8x16xf32>
    %185 = vector.multi_reduction <add>, %184, %cst_139 [0] : vector<3x8x16xf32> to vector<8x16xf32>
    %186 = math.sqrt %185 : vector<8x16xf32>
    %cst_140 = arith.constant dense<0.000000e+00> : vector<8x32xf32>
    %187 = tpu.matmul %186, %25, %cst_140 {dimension_numbers = #tpu.dot_dimension_numbers<[1], [0], [0], [1], [0, 0, 1, 1], [], []>} : vector<8x16xf32>, vector<16x32xf32>, vector<8x32xf32> -> vector<8x32xf32>
    %cst_141 = arith.constant dense<0.000000e+00> : vector<8x32xf32>
    %188 = tpu.matmul %161, %26, %cst_141 {dimension_numbers = #tpu.dot_dimension_numbers<[1], [0], [0], [1], [0, 0, 1, 1], [], []>} : vector<8x32xf32>, vector<32x32xf32>, vector<8x32xf32> -> vector<8x32xf32>
    %189 = arith.addf %187, %188 : vector<8x32xf32>
    %190 = vector.shape_cast %183 : vector<3x8x16xf32> to vector<24x16xf32>
    %cst_142 = arith.constant dense<0.000000e+00> : vector<24x16xf32>
    %191 = tpu.matmul %190, %24, %cst_142 {dimension_numbers = #tpu.dot_dimension_numbers<[1], [0], [0], [1], [0, 0, 1, 1], [], []>} : vector<24x16xf32>, vector<16x16xf32>, vector<24x16xf32> -> vector<24x16xf32>
    %192 = vector.shape_cast %191 : vector<24x16xf32> to vector<3x8x16xf32>
    %cst_143 = arith.constant dense<0.000000e+00> : vector<8x16xf32>
    %193 = tpu.matmul %189, %27, %cst_143 {dimension_numbers = #tpu.dot_dimension_numbers<[1], [0], [0], [1], [0, 0, 1, 1], [], []>} : vector<8x32xf32>, vector<32x16xf32>, vector<8x16xf32> -> vector<8x16xf32>
    %194 = vector.broadcast %28 : vector<1x16xf32> to vector<8x16xf32>
    %195 = arith.addf %193, %194 : vector<8x16xf32>
    %cst_144 = arith.constant 0.000000e+00 : f32
    %196 = vector.broadcast %cst_144 : f32 to vector<8x16xf32>
    %197 = arith.subf %196, %195 : vector<8x16xf32>
    %198 = math.exp %197 : vector<8x16xf32>
    %cst_145 = arith.constant 1.000000e+00 : f32
    %199 = vector.broadcast %cst_145 : f32 to vector<8x16xf32>
    %200 = arith.addf %199, %198 : vector<8x16xf32>
    %201 = tpu.reciprocal %200 {approx = true} : vector<8x16xf32> -> vector<8x16xf32>
    %202 = vector.shape_cast %201 : vector<8x16xf32> to vector<1x8x16xf32>
    %203 = vector.broadcast %202 : vector<1x8x16xf32> to vector<3x8x16xf32>
    %204 = arith.mulf %203, %192 : vector<3x8x16xf32>
    %cst_146 = arith.constant 0.314159274 : f32
    %205 = vector.broadcast %cst_146 : f32 to vector<8x1xf32>
    %206 = arith.mulf %56, %205 : vector<8x1xf32>
    %207 = math.cos %206 : vector<8x1xf32>
    %cst_147 = arith.constant 1.000000e+00 : f32
    %208 = vector.broadcast %cst_147 : f32 to vector<8x1xf32>
    %209 = arith.addf %207, %208 : vector<8x1xf32>
    %cst_148 = arith.constant 5.000000e-01 : f32
    %210 = vector.broadcast %cst_148 : f32 to vector<8x1xf32>
    %211 = arith.mulf %210, %209 : vector<8x1xf32>
    %cst_149 = arith.constant 1.000000e+01 : f32
    %212 = vector.broadcast %cst_149 : f32 to vector<8x1xf32>
    %213 = arith.cmpf ole, %56, %212 : vector<8x1xf32>
    %214 = arith.extui %213 : vector<8x1xi1> to vector<8x1xi32>
    %215 = arith.sitofp %214 : vector<8x1xi32> to vector<8x1xf32>
    %216 = arith.mulf %211, %215 : vector<8x1xf32>
    %217 = vector.broadcast %216 : vector<8x1xf32> to vector<8x32xf32>
    %218 = arith.mulf %189, %217 : vector<8x32xf32>
    %219 = vector.shape_cast %216 : vector<8x1xf32> to vector<1x8x1xf32>
    %220 = vector.broadcast %219 : vector<1x8x1xf32> to vector<3x8x16xf32>
    %221 = arith.mulf %204, %220 : vector<3x8x16xf32>
    %222 = tpu.iota {dimensions = array<i32: 1>} : vector<8x8xi32>
    %223 = vector.broadcast %53 : vector<8x1xi32> to vector<8x8xi32>
    %224 = arith.cmpi eq, %223, %222 : vector<8x8xi32>
    %225 = arith.extui %224 : vector<8x8xi1> to vector<8x8xi32>
    %226 = arith.sitofp %225 : vector<8x8xi32> to vector<8x8xf32>
    %c0_150 = arith.constant 0 : index
    %c0_151 = arith.constant 0 : index
    %227 = vector.load %arg56[%c0_150, %c0_151] : memref<8x32xf32, #tpu.memory_space<vmem>>, vector<8x32xf32>
    %cst_152 = arith.constant dense<0.000000e+00> : vector<8x32xf32>
    %228 = tpu.matmul %226, %218, %cst_152 {dimension_numbers = #tpu.dot_dimension_numbers<[0], [0], [1], [1], [0, 1, 1, 1], [], []>} : vector<8x8xf32>, vector<8x32xf32>, vector<8x32xf32> -> vector<8x32xf32>
    %229 = arith.addf %227, %228 : vector<8x32xf32>
    %c0_153 = arith.constant 0 : index
    %c0_154 = arith.constant 0 : index
    %230 = vector.load %arg56[%c0_153, %c0_154] : memref<8x32xf32, #tpu.memory_space<vmem>>, vector<8x32xf32>
    tpu.vector_store %arg56[%c0_153, %c0_154], %229 {strides = array<i32>} : memref<8x32xf32, #tpu.memory_space<vmem>>, vector<8x32xf32>,
    %c0_155 = arith.constant 0 : index
    %c0_156 = arith.constant 0 : index
    %c0_157 = arith.constant 0 : index
    %231 = vector.load %arg57[%c0_155, %c0_156, %c0_157] : memref<3x8x16xf32, #tpu.memory_space<vmem>>, vector<1x8x16xf32>
    %232 = vector.shape_cast %231 : vector<1x8x16xf32> to vector<8x16xf32>
    %233 = vector.extract_strided_slice %221 {offsets = [0, 0, 0], sizes = [1, 8, 16], strides = [1, 1, 1]} : vector<3x8x16xf32> to vector<1x8x16xf32>
    %234 = vector.shape_cast %233 : vector<1x8x16xf32> to vector<8x16xf32>
    %cst_158 = arith.constant dense<0.000000e+00> : vector<8x16xf32>
    %235 = tpu.matmul %226, %234, %cst_158 {dimension_numbers = #tpu.dot_dimension_numbers<[0], [0], [1], [1], [0, 1, 1, 1], [], []>} : vector<8x8xf32>, vector<8x16xf32>, vector<8x16xf32> -> vector<8x16xf32>
    %236 = arith.addf %232, %235 : vector<8x16xf32>
    %c0_159 = arith.constant 0 : index
    %c0_160 = arith.constant 0 : index
    %c0_161 = arith.constant 0 : index
    %237 = vector.load %arg57[%c0_159, %c0_160, %c0_161] : memref<3x8x16xf32, #tpu.memory_space<vmem>>, vector<1x8x16xf32>
    %238 = vector.shape_cast %237 : vector<1x8x16xf32> to vector<8x16xf32>
    %239 = vector.shape_cast %236 : vector<8x16xf32> to vector<1x8x16xf32>
    tpu.vector_store %arg57[%c0_159, %c0_160, %c0_161], %239 {strides = array<i32>} : memref<3x8x16xf32, #tpu.memory_space<vmem>>, vector<1x8x16xf32>,
    %c1 = arith.constant 1 : index
    %c0_162 = arith.constant 0 : index
    %c0_163 = arith.constant 0 : index
    %240 = vector.load %arg57[%c1, %c0_162, %c0_163] : memref<3x8x16xf32, #tpu.memory_space<vmem>>, vector<1x8x16xf32>
    %241 = vector.shape_cast %240 : vector<1x8x16xf32> to vector<8x16xf32>
    %242 = vector.extract_strided_slice %221 {offsets = [1, 0, 0], sizes = [1, 8, 16], strides = [1, 1, 1]} : vector<3x8x16xf32> to vector<1x8x16xf32>
    %243 = vector.shape_cast %242 : vector<1x8x16xf32> to vector<8x16xf32>
    %cst_164 = arith.constant dense<0.000000e+00> : vector<8x16xf32>
    %244 = tpu.matmul %226, %243, %cst_164 {dimension_numbers = #tpu.dot_dimension_numbers<[0], [0], [1], [1], [0, 1, 1, 1], [], []>} : vector<8x8xf32>, vector<8x16xf32>, vector<8x16xf32> -> vector<8x16xf32>
    %245 = arith.addf %241, %244 : vector<8x16xf32>
    %c1_165 = arith.constant 1 : index
    %c0_166 = arith.constant 0 : index
    %c0_167 = arith.constant 0 : index
    %246 = vector.load %arg57[%c1_165, %c0_166, %c0_167] : memref<3x8x16xf32, #tpu.memory_space<vmem>>, vector<1x8x16xf32>
    %247 = vector.shape_cast %246 : vector<1x8x16xf32> to vector<8x16xf32>
    %248 = vector.shape_cast %245 : vector<8x16xf32> to vector<1x8x16xf32>
    tpu.vector_store %arg57[%c1_165, %c0_166, %c0_167], %248 {strides = array<i32>} : memref<3x8x16xf32, #tpu.memory_space<vmem>>, vector<1x8x16xf32>,
    %c2 = arith.constant 2 : index
    %c0_168 = arith.constant 0 : index
    %c0_169 = arith.constant 0 : index
    %249 = vector.load %arg57[%c2, %c0_168, %c0_169] : memref<3x8x16xf32, #tpu.memory_space<vmem>>, vector<1x8x16xf32>
    %250 = vector.shape_cast %249 : vector<1x8x16xf32> to vector<8x16xf32>
    %251 = vector.extract_strided_slice %221 {offsets = [2, 0, 0], sizes = [1, 8, 16], strides = [1, 1, 1]} : vector<3x8x16xf32> to vector<1x8x16xf32>
    %252 = vector.shape_cast %251 : vector<1x8x16xf32> to vector<8x16xf32>
    %cst_170 = arith.constant dense<0.000000e+00> : vector<8x16xf32>
    %253 = tpu.matmul %226, %252, %cst_170 {dimension_numbers = #tpu.dot_dimension_numbers<[0], [0], [1], [1], [0, 1, 1, 1], [], []>} : vector<8x8xf32>, vector<8x16xf32>, vector<8x16xf32> -> vector<8x16xf32>
    %254 = arith.addf %250, %253 : vector<8x16xf32>
    %c2_171 = arith.constant 2 : index
    %c0_172 = arith.constant 0 : index
    %c0_173 = arith.constant 0 : index
    %255 = vector.load %arg57[%c2_171, %c0_172, %c0_173] : memref<3x8x16xf32, #tpu.memory_space<vmem>>, vector<1x8x16xf32>
    %256 = vector.shape_cast %255 : vector<1x8x16xf32> to vector<8x16xf32>
    %257 = vector.shape_cast %254 : vector<8x16xf32> to vector<1x8x16xf32>
    tpu.vector_store %arg57[%c2_171, %c0_172, %c0_173], %257 {strides = array<i32>} : memref<3x8x16xf32, #tpu.memory_space<vmem>>, vector<1x8x16xf32>,
    %c1_i32 = arith.constant 1 : i32
    %258 = arith.cmpi eq, %arg0, %c1_i32 : i32
    %259 = arith.extui %258 : i1 to i32
    %c0_i32_174 = arith.constant 0 : i32
    %260 = arith.cmpi ne, %259, %c0_i32_174 : i32
    scf.if %260 {
      %c0_175 = arith.constant 0 : index
      %c0_176 = arith.constant 0 : index
      %261 = vector.load %arg6[%c0_175, %c0_176] : memref<8x32xf32, #tpu.memory_space<vmem>>, vector<8x32xf32>
      %c0_177 = arith.constant 0 : index
      %c0_178 = arith.constant 0 : index
      %c0_179 = arith.constant 0 : index
      %262 = vector.load %arg7[%c0_177, %c0_178, %c0_179] : memref<3x8x16xf32, #tpu.memory_space<vmem>>, vector<3x8x16xf32>
      %263 = vector.shape_cast %262 : vector<3x8x16xf32> to vector<24x16xf32>
      %cst_180 = arith.constant dense<0.000000e+00> : vector<24x16xf32>
      %264 = tpu.matmul %263, %29, %cst_180 {dimension_numbers = #tpu.dot_dimension_numbers<[1], [0], [0], [1], [0, 0, 1, 1], [], []>} : vector<24x16xf32>, vector<16x16xf32>, vector<24x16xf32> -> vector<24x16xf32>
      %265 = vector.shape_cast %264 : vector<24x16xf32> to vector<3x8x16xf32>
      %266 = arith.mulf %265, %265 : vector<3x8x16xf32>
      %cst_181 = arith.constant dense<0.000000e+00> : vector<8x16xf32>
      %267 = vector.multi_reduction <add>, %266, %cst_181 [0] : vector<3x8x16xf32> to vector<8x16xf32>
      %268 = math.sqrt %267 : vector<8x16xf32>
      %cst_182 = arith.constant dense<0.000000e+00> : vector<8x32xf32>
      %269 = tpu.matmul %268, %31, %cst_182 {dimension_numbers = #tpu.dot_dimension_numbers<[1], [0], [0], [1], [0, 0, 1, 1], [], []>} : vector<8x16xf32>, vector<16x32xf32>, vector<8x32xf32> -> vector<8x32xf32>
      %cst_183 = arith.constant dense<0.000000e+00> : vector<8x32xf32>
      %270 = tpu.matmul %261, %32, %cst_183 {dimension_numbers = #tpu.dot_dimension_numbers<[1], [0], [0], [1], [0, 0, 1, 1], [], []>} : vector<8x32xf32>, vector<32x32xf32>, vector<8x32xf32> -> vector<8x32xf32>
      %271 = arith.addf %269, %270 : vector<8x32xf32>
      %272 = vector.shape_cast %265 : vector<3x8x16xf32> to vector<24x16xf32>
      %cst_184 = arith.constant dense<0.000000e+00> : vector<24x16xf32>
      %273 = tpu.matmul %272, %30, %cst_184 {dimension_numbers = #tpu.dot_dimension_numbers<[1], [0], [0], [1], [0, 0, 1, 1], [], []>} : vector<24x16xf32>, vector<16x16xf32>, vector<24x16xf32> -> vector<24x16xf32>
      %274 = vector.shape_cast %273 : vector<24x16xf32> to vector<3x8x16xf32>
      %cst_185 = arith.constant dense<0.000000e+00> : vector<8x16xf32>
      %275 = tpu.matmul %271, %33, %cst_185 {dimension_numbers = #tpu.dot_dimension_numbers<[1], [0], [0], [1], [0, 0, 1, 1], [], []>} : vector<8x32xf32>, vector<32x16xf32>, vector<8x16xf32> -> vector<8x16xf32>
      %276 = vector.broadcast %34 : vector<1x16xf32> to vector<8x16xf32>
      %277 = arith.addf %275, %276 : vector<8x16xf32>
      %cst_186 = arith.constant 0.000000e+00 : f32
      %278 = vector.broadcast %cst_186 : f32 to vector<8x16xf32>
      %279 = arith.subf %278, %277 : vector<8x16xf32>
      %280 = math.exp %279 : vector<8x16xf32>
      %cst_187 = arith.constant 1.000000e+00 : f32
      %281 = vector.broadcast %cst_187 : f32 to vector<8x16xf32>
      %282 = arith.addf %281, %280 : vector<8x16xf32>
      %283 = tpu.reciprocal %282 {approx = true} : vector<8x16xf32> -> vector<8x16xf32>
      %284 = vector.shape_cast %283 : vector<8x16xf32> to vector<1x8x16xf32>
      %285 = vector.broadcast %284 : vector<1x8x16xf32> to vector<3x8x16xf32>
      %286 = arith.mulf %285, %274 : vector<3x8x16xf32>
      %c0_188 = arith.constant 0 : index
      %c0_189 = arith.constant 0 : index
      %287 = vector.load %arg56[%c0_188, %c0_189] : memref<8x32xf32, #tpu.memory_space<vmem>>, vector<8x32xf32>
      %288 = arith.addf %271, %287 : vector<8x32xf32>
      %c0_190 = arith.constant 0 : index
      %c0_191 = arith.constant 0 : index
      %c0_192 = arith.constant 0 : index
      %289 = vector.load %arg57[%c0_190, %c0_191, %c0_192] : memref<3x8x16xf32, #tpu.memory_space<vmem>>, vector<3x8x16xf32>
      %290 = arith.addf %286, %289 : vector<3x8x16xf32>
      %cst_193 = arith.constant dense<0.000000e+00> : vector<8xf32>
      %291 = vector.multi_reduction <add>, %288, %cst_193 [1] : vector<8x32xf32> to vector<8xf32>
      %292 = vector.shape_cast %291 : vector<8xf32> to vector<8x1xf32>
      %cst_194 = arith.constant 3.200000e+01 : f32
      %293 = vector.broadcast %cst_194 : f32 to vector<8x1xf32>
      %294 = arith.divf %292, %293 : vector<8x1xf32>
      %295 = vector.broadcast %294 : vector<8x1xf32> to vector<8x32xf32>
      %296 = arith.subf %288, %295 : vector<8x32xf32>
      %297 = arith.mulf %296, %296 : vector<8x32xf32>
      %cst_195 = arith.constant dense<0.000000e+00> : vector<8xf32>
      %298 = vector.multi_reduction <add>, %297, %cst_195 [1] : vector<8x32xf32> to vector<8xf32>
      %299 = vector.shape_cast %298 : vector<8xf32> to vector<8x1xf32>
      %cst_196 = arith.constant 3.200000e+01 : f32
      %300 = vector.broadcast %cst_196 : f32 to vector<8x1xf32>
      %301 = arith.divf %299, %300 : vector<8x1xf32>
      %302 = vector.broadcast %294 : vector<8x1xf32> to vector<8x32xf32>
      %303 = arith.subf %288, %302 : vector<8x32xf32>
      %cst_197 = arith.constant 9.99999974E-6 : f32
      %304 = vector.broadcast %cst_197 : f32 to vector<8x1xf32>
      %305 = arith.addf %301, %304 : vector<8x1xf32>
      %306 = math.rsqrt %305 : vector<8x1xf32>
      %307 = vector.broadcast %306 : vector<8x1xf32> to vector<8x32xf32>
      %308 = arith.mulf %303, %307 : vector<8x32xf32>
      %309 = vector.broadcast %35 : vector<1x32xf32> to vector<8x32xf32>
      %310 = arith.mulf %308, %309 : vector<8x32xf32>
      %311 = vector.broadcast %36 : vector<1x32xf32> to vector<8x32xf32>
      %312 = arith.addf %310, %311 : vector<8x32xf32>
      %cst_198 = arith.constant dense<0.000000e+00> : vector<8x16xf32>
      %313 = vector.multi_reduction <add>, %290, %cst_198 [0] : vector<3x8x16xf32> to vector<8x16xf32>
      %314 = vector.shape_cast %313 : vector<8x16xf32> to vector<1x8x16xf32>
      %cst_199 = arith.constant dense<0.000000e+00> : vector<1x8xf32>
      %315 = vector.multi_reduction <add>, %314, %cst_199 [2] : vector<1x8x16xf32> to vector<1x8xf32>
      %316 = vector.shape_cast %315 : vector<1x8xf32> to vector<1x8x1xf32>
      %cst_200 = arith.constant 4.800000e+01 : f32
      %317 = vector.broadcast %cst_200 : f32 to vector<1x8x1xf32>
      %318 = arith.divf %316, %317 : vector<1x8x1xf32>
      %319 = vector.broadcast %318 : vector<1x8x1xf32> to vector<3x8x16xf32>
      %320 = arith.subf %290, %319 : vector<3x8x16xf32>
      %321 = arith.mulf %320, %320 : vector<3x8x16xf32>
      %cst_201 = arith.constant dense<0.000000e+00> : vector<8x16xf32>
      %322 = vector.multi_reduction <add>, %321, %cst_201 [0] : vector<3x8x16xf32> to vector<8x16xf32>
      %323 = vector.shape_cast %322 : vector<8x16xf32> to vector<1x8x16xf32>
      %cst_202 = arith.constant dense<0.000000e+00> : vector<1x8xf32>
      %324 = vector.multi_reduction <add>, %323, %cst_202 [2] : vector<1x8x16xf32> to vector<1x8xf32>
      %325 = vector.shape_cast %324 : vector<1x8xf32> to vector<1x8x1xf32>
      %cst_203 = arith.constant 4.800000e+01 : f32
      %326 = vector.broadcast %cst_203 : f32 to vector<1x8x1xf32>
      %327 = arith.divf %325, %326 : vector<1x8x1xf32>
      %cst_204 = arith.constant 9.99999974E-6 : f32
      %328 = vector.broadcast %cst_204 : f32 to vector<1x8x1xf32>
      %329 = arith.addf %327, %328 : vector<1x8x1xf32>
      %330 = math.rsqrt %329 : vector<1x8x1xf32>
      %331 = vector.broadcast %330 : vector<1x8x1xf32> to vector<3x8x16xf32>
      %332 = arith.mulf %320, %331 : vector<3x8x16xf32>
      %333 = vector.broadcast %37 : vector<3x1x16xf32> to vector<3x8x16xf32>
      %334 = arith.mulf %332, %333 : vector<3x8x16xf32>
      %335 = vector.broadcast %38 : vector<3x1x16xf32> to vector<3x8x16xf32>
      %336 = arith.addf %334, %335 : vector<3x8x16xf32>
      %cst_205 = arith.constant 0.000000e+00 : f32
      %337 = vector.broadcast %cst_205 : f32 to vector<8x32xf32>
      %338 = arith.cmpf oge, %312, %337 : vector<8x32xf32>
      %cst_206 = arith.constant 0.00999999977 : f32
      %339 = vector.broadcast %cst_206 : f32 to vector<8x32xf32>
      %340 = arith.mulf %339, %312 : vector<8x32xf32>
      %341 = arith.select %338, %312, %340 : vector<8x32xi1>, vector<8x32xf32>
      %342 = vector.shape_cast %336 : vector<3x8x16xf32> to vector<24x16xf32>
      %cst_207 = arith.constant dense<0.000000e+00> : vector<24x16xf32>
      %343 = tpu.matmul %342, %39, %cst_207 {dimension_numbers = #tpu.dot_dimension_numbers<[1], [0], [0], [1], [0, 0, 1, 1], [], []>} : vector<24x16xf32>, vector<16x16xf32>, vector<24x16xf32> -> vector<24x16xf32>
      %344 = vector.shape_cast %343 : vector<24x16xf32> to vector<3x8x16xf32>
      %345 = arith.mulf %336, %344 : vector<3x8x16xf32>
      %cst_208 = arith.constant dense<0.000000e+00> : vector<8x16xf32>
      %346 = vector.multi_reduction <add>, %345, %cst_208 [0] : vector<3x8x16xf32> to vector<8x16xf32>
      %347 = vector.shape_cast %346 : vector<8x16xf32> to vector<1x8x16xf32>
      %cst_209 = arith.constant 0.000000e+00 : f32
      %348 = vector.broadcast %cst_209 : f32 to vector<1x8x16xf32>
      %349 = arith.cmpf oge, %347, %348 : vector<1x8x16xf32>
      %350 = arith.extui %349 : vector<1x8x16xi1> to vector<1x8x16xi32>
      %351 = arith.sitofp %350 : vector<1x8x16xi32> to vector<1x8x16xf32>
      %352 = arith.mulf %344, %344 : vector<3x8x16xf32>
      %cst_210 = arith.constant dense<0.000000e+00> : vector<8x16xf32>
      %353 = vector.multi_reduction <add>, %352, %cst_210 [0] : vector<3x8x16xf32> to vector<8x16xf32>
      %354 = vector.shape_cast %353 : vector<8x16xf32> to vector<1x8x16xf32>
      %cst_211 = arith.constant 9.99999997E-7 : f32
      %355 = vector.broadcast %cst_211 : f32 to vector<1x8x16xf32>
      %356 = arith.addf %354, %355 : vector<1x8x16xf32>
      %357 = arith.divf %347, %356 : vector<1x8x16xf32>
      %358 = vector.broadcast %357 : vector<1x8x16xf32> to vector<3x8x16xf32>
      %359 = arith.mulf %358, %344 : vector<3x8x16xf32>
      %360 = arith.subf %336, %359 : vector<3x8x16xf32>
      %cst_212 = arith.constant 2.000000e-01 : f32
      %361 = vector.broadcast %cst_212 : f32 to vector<3x8x16xf32>
      %362 = arith.mulf %361, %336 : vector<3x8x16xf32>
      %363 = vector.broadcast %351 : vector<1x8x16xf32> to vector<3x8x16xf32>
      %364 = arith.mulf %363, %336 : vector<3x8x16xf32>
      %cst_213 = arith.constant 1.000000e+00 : f32
      %365 = vector.broadcast %cst_213 : f32 to vector<1x8x16xf32>
      %366 = arith.subf %365, %351 : vector<1x8x16xf32>
      %367 = vector.broadcast %366 : vector<1x8x16xf32> to vector<3x8x16xf32>
      %368 = arith.mulf %367, %360 : vector<3x8x16xf32>
      %369 = arith.addf %364, %368 : vector<3x8x16xf32>
      %cst_214 = arith.constant 8.000000e-01 : f32
      %370 = vector.broadcast %cst_214 : f32 to vector<3x8x16xf32>
      %371 = arith.mulf %370, %369 : vector<3x8x16xf32>
      %372 = arith.addf %362, %371 : vector<3x8x16xf32>
      %373 = vector.shape_cast %372 : vector<3x8x16xf32> to vector<24x16xf32>
      %cst_215 = arith.constant dense<0.000000e+00> : vector<24x16xf32>
      %374 = tpu.matmul %373, %40, %cst_215 {dimension_numbers = #tpu.dot_dimension_numbers<[1], [0], [0], [1], [0, 0, 1, 1], [], []>} : vector<24x16xf32>, vector<16x16xf32>, vector<24x16xf32> -> vector<24x16xf32>
      %375 = vector.shape_cast %374 : vector<24x16xf32> to vector<3x8x16xf32>
      %376 = arith.mulf %375, %375 : vector<3x8x16xf32>
      %cst_216 = arith.constant dense<0.000000e+00> : vector<8x16xf32>
      %377 = vector.multi_reduction <add>, %376, %cst_216 [0] : vector<3x8x16xf32> to vector<8x16xf32>
      %378 = math.sqrt %377 : vector<8x16xf32>
      %cst_217 = arith.constant dense<0.000000e+00> : vector<8x32xf32>
      %379 = tpu.matmul %378, %42, %cst_217 {dimension_numbers = #tpu.dot_dimension_numbers<[1], [0], [0], [1], [0, 0, 1, 1], [], []>} : vector<8x16xf32>, vector<16x32xf32>, vector<8x32xf32> -> vector<8x32xf32>
      %cst_218 = arith.constant dense<0.000000e+00> : vector<8x32xf32>
      %380 = tpu.matmul %341, %43, %cst_218 {dimension_numbers = #tpu.dot_dimension_numbers<[1], [0], [0], [1], [0, 0, 1, 1], [], []>} : vector<8x32xf32>, vector<32x32xf32>, vector<8x32xf32> -> vector<8x32xf32>
      %381 = arith.addf %379, %380 : vector<8x32xf32>
      %382 = vector.shape_cast %375 : vector<3x8x16xf32> to vector<24x16xf32>
      %cst_219 = arith.constant dense<0.000000e+00> : vector<24x16xf32>
      %383 = tpu.matmul %382, %41, %cst_219 {dimension_numbers = #tpu.dot_dimension_numbers<[1], [0], [0], [1], [0, 0, 1, 1], [], []>} : vector<24x16xf32>, vector<16x16xf32>, vector<24x16xf32> -> vector<24x16xf32>
      %384 = vector.shape_cast %383 : vector<24x16xf32> to vector<3x8x16xf32>
      %cst_220 = arith.constant dense<0.000000e+00> : vector<8x16xf32>
      %385 = tpu.matmul %381, %44, %cst_220 {dimension_numbers = #tpu.dot_dimension_numbers<[1], [0], [0], [1], [0, 0, 1, 1], [], []>} : vector<8x32xf32>, vector<32x16xf32>, vector<8x16xf32> -> vector<8x16xf32>
      %386 = vector.broadcast %45 : vector<1x16xf32> to vector<8x16xf32>
      %387 = arith.addf %385, %386 : vector<8x16xf32>
      %cst_221 = arith.constant 0.000000e+00 : f32
      %388 = vector.broadcast %cst_221 : f32 to vector<8x16xf32>
      %389 = arith.subf %388, %387 : vector<8x16xf32>
      %390 = math.exp %389 : vector<8x16xf32>
      %cst_222 = arith.constant 1.000000e+00 : f32
      %391 = vector.broadcast %cst_222 : f32 to vector<8x16xf32>
      %392 = arith.addf %391, %390 : vector<8x16xf32>
      %393 = tpu.reciprocal %392 {approx = true} : vector<8x16xf32> -> vector<8x16xf32>
      %394 = vector.shape_cast %393 : vector<8x16xf32> to vector<1x8x16xf32>
      %395 = vector.broadcast %394 : vector<1x8x16xf32> to vector<3x8x16xf32>
      %396 = arith.mulf %395, %384 : vector<3x8x16xf32>
      %c0_223 = arith.constant 0 : index
      %c0_224 = arith.constant 0 : index
      %397 = vector.load %arg54[%c0_223, %c0_224] : memref<8x32xf32, #tpu.memory_space<vmem>>, vector<8x32xf32>
      tpu.vector_store %arg54[%c0_223, %c0_224], %381 {strides = array<i32>} : memref<8x32xf32, #tpu.memory_space<vmem>>, vector<8x32xf32>,
      %c0_225 = arith.constant 0 : index
      %c0_226 = arith.constant 0 : index
      %c0_227 = arith.constant 0 : index
      %398 = vector.load %arg55[%c0_225, %c0_226, %c0_227] : memref<3x8x16xf32, #tpu.memory_space<vmem>>, vector<3x8x16xf32>
      tpu.vector_store %arg55[%c0_225, %c0_226, %c0_227], %396 {strides = array<i32>} : memref<3x8x16xf32, #tpu.memory_space<vmem>>, vector<3x8x16xf32>,
    } else {
    }
    return
  }
  func.func @transform_0(%arg0: i32) -> (i32, i32) {
    %c0_i32 = arith.constant 0 : i32
    %c0_i32_0 = arith.constant 0 : i32
    return %arg0, %c0_i32 : i32, i32
  }
  func.func @transform_1(%arg0: i32) -> (i32, i32, i32) {
    %c0_i32 = arith.constant 0 : i32
    %c0_i32_0 = arith.constant 0 : i32
    %c0_i32_1 = arith.constant 0 : i32
    return %c0_i32, %arg0, %c0_i32_0 : i32, i32, i32
  }
  func.func @transform_2(%arg0: i32) -> (i32, i32, i32) {
    %c0_i32 = arith.constant 0 : i32
    %c0_i32_0 = arith.constant 0 : i32
    %c0_i32_1 = arith.constant 0 : i32
    return %c0_i32, %arg0, %c0_i32_0 : i32, i32, i32
  }
  func.func @transform_3(%arg0: i32) -> (i32, i32) {
    %c0_i32 = arith.constant 0 : i32
    %c0_i32_0 = arith.constant 0 : i32
    return %arg0, %c0_i32 : i32, i32
  }
  func.func @transform_4(%arg0: i32) -> (i32, i32) {
    %c0_i32 = arith.constant 0 : i32
    %c0_i32_0 = arith.constant 0 : i32
    return %arg0, %c0_i32 : i32, i32
  }
  func.func @transform_5(%arg0: i32) -> (i32, i32) {
    %c0_i32 = arith.constant 0 : i32
    %c0_i32_0 = arith.constant 0 : i32
    %c0_i32_1 = arith.constant 0 : i32
    return %c0_i32, %c0_i32_0 : i32, i32
  }
  func.func @transform_6(%arg0: i32) -> (i32, i32, i32) {
    %c0_i32 = arith.constant 0 : i32
    %c0_i32_0 = arith.constant 0 : i32
    %c0_i32_1 = arith.constant 0 : i32
    %c0_i32_2 = arith.constant 0 : i32
    return %c0_i32, %c0_i32_0, %c0_i32_1 : i32, i32, i32
  }
  func.func @transform_7(%arg0: i32) -> (i32, i32) {
    %c0_i32 = arith.constant 0 : i32
    %c0_i32_0 = arith.constant 0 : i32
    %c0_i32_1 = arith.constant 0 : i32
    return %c0_i32, %c0_i32_0 : i32, i32
  }
  func.func @transform_8(%arg0: i32) -> (i32, i32) {
    %c0_i32 = arith.constant 0 : i32
    %c0_i32_0 = arith.constant 0 : i32
    %c0_i32_1 = arith.constant 0 : i32
    return %c0_i32, %c0_i32_0 : i32, i32
  }
  func.func @transform_9(%arg0: i32) -> (i32, i32) {
    %c0_i32 = arith.constant 0 : i32
    %c0_i32_0 = arith.constant 0 : i32
    %c0_i32_1 = arith.constant 0 : i32
    return %c0_i32, %c0_i32_0 : i32, i32
  }
  func.func @transform_10(%arg0: i32) -> (i32, i32) {
    %c0_i32 = arith.constant 0 : i32
    %c0_i32_0 = arith.constant 0 : i32
    %c0_i32_1 = arith.constant 0 : i32
    return %c0_i32, %c0_i32_0 : i32, i32
  }
  func.func @transform_11(%arg0: i32) -> (i32, i32) {
    %c0_i32 = arith.constant 0 : i32
    %c0_i32_0 = arith.constant 0 : i32
    %c0_i32_1 = arith.constant 0 : i32
    return %c0_i32, %c0_i32_0 : i32, i32
  }
  func.func @transform_12(%arg0: i32) -> (i32, i32) {
    %c0_i32 = arith.constant 0 : i32
    %c0_i32_0 = arith.constant 0 : i32
    %c0_i32_1 = arith.constant 0 : i32
    return %c0_i32, %c0_i32_0 : i32, i32
  }
  func.func @transform_13(%arg0: i32) -> (i32, i32) {
    %c0_i32 = arith.constant 0 : i32
    %c0_i32_0 = arith.constant 0 : i32
    %c0_i32_1 = arith.constant 0 : i32
    return %c0_i32, %c0_i32_0 : i32, i32
  }
  func.func @transform_14(%arg0: i32) -> (i32, i32) {
    %c0_i32 = arith.constant 0 : i32
    %c0_i32_0 = arith.constant 0 : i32
    %c0_i32_1 = arith.constant 0 : i32
    return %c0_i32, %c0_i32_0 : i32, i32
  }
  func.func @transform_15(%arg0: i32) -> (i32, i32) {
    %c0_i32 = arith.constant 0 : i32
    %c0_i32_0 = arith.constant 0 : i32
    %c0_i32_1 = arith.constant 0 : i32
    return %c0_i32, %c0_i32_0 : i32, i32
  }
  func.func @transform_16(%arg0: i32) -> (i32, i32) {
    %c0_i32 = arith.constant 0 : i32
    %c0_i32_0 = arith.constant 0 : i32
    %c0_i32_1 = arith.constant 0 : i32
    return %c0_i32, %c0_i32_0 : i32, i32
  }
  func.func @transform_17(%arg0: i32) -> (i32, i32) {
    %c0_i32 = arith.constant 0 : i32
    %c0_i32_0 = arith.constant 0 : i32
    %c0_i32_1 = arith.constant 0 : i32
    return %c0_i32, %c0_i32_0 : i32, i32
  }
  func.func @transform_18(%arg0: i32) -> (i32, i32) {
    %c0_i32 = arith.constant 0 : i32
    %c0_i32_0 = arith.constant 0 : i32
    %c0_i32_1 = arith.constant 0 : i32
    return %c0_i32, %c0_i32_0 : i32, i32
  }
  func.func @transform_19(%arg0: i32) -> (i32, i32) {
    %c0_i32 = arith.constant 0 : i32
    %c0_i32_0 = arith.constant 0 : i32
    %c0_i32_1 = arith.constant 0 : i32
    return %c0_i32, %c0_i32_0 : i32, i32
  }
  func.func @transform_20(%arg0: i32) -> (i32, i32) {
    %c0_i32 = arith.constant 0 : i32
    %c0_i32_0 = arith.constant 0 : i32
    %c0_i32_1 = arith.constant 0 : i32
    return %c0_i32, %c0_i32_0 : i32, i32
  }
  func.func @transform_21(%arg0: i32) -> (i32, i32) {
    %c0_i32 = arith.constant 0 : i32
    %c0_i32_0 = arith.constant 0 : i32
    %c0_i32_1 = arith.constant 0 : i32
    return %c0_i32, %c0_i32_0 : i32, i32
  }
  func.func @transform_22(%arg0: i32) -> (i32, i32) {
    %c0_i32 = arith.constant 0 : i32
    %c0_i32_0 = arith.constant 0 : i32
    %c0_i32_1 = arith.constant 0 : i32
    return %c0_i32, %c0_i32_0 : i32, i32
  }
  func.func @transform_23(%arg0: i32) -> (i32, i32) {
    %c0_i32 = arith.constant 0 : i32
    %c0_i32_0 = arith.constant 0 : i32
    %c0_i32_1 = arith.constant 0 : i32
    return %c0_i32, %c0_i32_0 : i32, i32
  }
  func.func @transform_24(%arg0: i32) -> (i32, i32) {
    %c0_i32 = arith.constant 0 : i32
    %c0_i32_0 = arith.constant 0 : i32
    %c0_i32_1 = arith.constant 0 : i32
    return %c0_i32, %c0_i32_0 : i32, i32
  }
  func.func @transform_25(%arg0: i32) -> (i32, i32) {
    %c0_i32 = arith.constant 0 : i32
    %c0_i32_0 = arith.constant 0 : i32
    %c0_i32_1 = arith.constant 0 : i32
    return %c0_i32, %c0_i32_0 : i32, i32
  }
  func.func @transform_26(%arg0: i32) -> (i32, i32) {
    %c0_i32 = arith.constant 0 : i32
    %c0_i32_0 = arith.constant 0 : i32
    %c0_i32_1 = arith.constant 0 : i32
    return %c0_i32, %c0_i32_0 : i32, i32
  }
  func.func @transform_27(%arg0: i32) -> (i32, i32) {
    %c0_i32 = arith.constant 0 : i32
    %c0_i32_0 = arith.constant 0 : i32
    %c0_i32_1 = arith.constant 0 : i32
    return %c0_i32, %c0_i32_0 : i32, i32
  }
  func.func @transform_28(%arg0: i32) -> (i32, i32) {
    %c0_i32 = arith.constant 0 : i32
    %c0_i32_0 = arith.constant 0 : i32
    %c0_i32_1 = arith.constant 0 : i32
    return %c0_i32, %c0_i32_0 : i32, i32
  }
  func.func @transform_29(%arg0: i32) -> (i32, i32) {
    %c0_i32 = arith.constant 0 : i32
    %c0_i32_0 = arith.constant 0 : i32
    %c0_i32_1 = arith.constant 0 : i32
    return %c0_i32, %c0_i32_0 : i32, i32
  }
  func.func @transform_30(%arg0: i32) -> (i32, i32) {
    %c0_i32 = arith.constant 0 : i32
    %c0_i32_0 = arith.constant 0 : i32
    %c0_i32_1 = arith.constant 0 : i32
    return %c0_i32, %c0_i32_0 : i32, i32
  }
  func.func @transform_31(%arg0: i32) -> (i32, i32) {
    %c0_i32 = arith.constant 0 : i32
    %c0_i32_0 = arith.constant 0 : i32
    %c0_i32_1 = arith.constant 0 : i32
    return %c0_i32, %c0_i32_0 : i32, i32
  }
  func.func @transform_32(%arg0: i32) -> (i32, i32) {
    %c0_i32 = arith.constant 0 : i32
    %c0_i32_0 = arith.constant 0 : i32
    %c0_i32_1 = arith.constant 0 : i32
    return %c0_i32, %c0_i32_0 : i32, i32
  }
  func.func @transform_33(%arg0: i32) -> (i32, i32) {
    %c0_i32 = arith.constant 0 : i32
    %c0_i32_0 = arith.constant 0 : i32
    %c0_i32_1 = arith.constant 0 : i32
    return %c0_i32, %c0_i32_0 : i32, i32
  }
  func.func @transform_34(%arg0: i32) -> (i32, i32) {
    %c0_i32 = arith.constant 0 : i32
    %c0_i32_0 = arith.constant 0 : i32
    %c0_i32_1 = arith.constant 0 : i32
    return %c0_i32, %c0_i32_0 : i32, i32
  }
  func.func @transform_35(%arg0: i32) -> (i32, i32) {
    %c0_i32 = arith.constant 0 : i32
    %c0_i32_0 = arith.constant 0 : i32
    %c0_i32_1 = arith.constant 0 : i32
    return %c0_i32, %c0_i32_0 : i32, i32
  }
  func.func @transform_36(%arg0: i32) -> (i32, i32) {
    %c0_i32 = arith.constant 0 : i32
    %c0_i32_0 = arith.constant 0 : i32
    %c0_i32_1 = arith.constant 0 : i32
    return %c0_i32, %c0_i32_0 : i32, i32
  }
  func.func @transform_37(%arg0: i32) -> (i32, i32) {
    %c0_i32 = arith.constant 0 : i32
    %c0_i32_0 = arith.constant 0 : i32
    %c0_i32_1 = arith.constant 0 : i32
    return %c0_i32, %c0_i32_0 : i32, i32
  }
  func.func @transform_38(%arg0: i32) -> (i32, i32) {
    %c0_i32 = arith.constant 0 : i32
    %c0_i32_0 = arith.constant 0 : i32
    %c0_i32_1 = arith.constant 0 : i32
    return %c0_i32, %c0_i32_0 : i32, i32
  }
  func.func @transform_39(%arg0: i32) -> (i32, i32) {
    %c0_i32 = arith.constant 0 : i32
    %c0_i32_0 = arith.constant 0 : i32
    %c0_i32_1 = arith.constant 0 : i32
    return %c0_i32, %c0_i32_0 : i32, i32
  }
  func.func @transform_40(%arg0: i32) -> (i32, i32) {
    %c0_i32 = arith.constant 0 : i32
    %c0_i32_0 = arith.constant 0 : i32
    %c0_i32_1 = arith.constant 0 : i32
    return %c0_i32, %c0_i32_0 : i32, i32
  }
  func.func @transform_41(%arg0: i32) -> (i32, i32) {
    %c0_i32 = arith.constant 0 : i32
    %c0_i32_0 = arith.constant 0 : i32
    %c0_i32_1 = arith.constant 0 : i32
    return %c0_i32, %c0_i32_0 : i32, i32
  }
  func.func @transform_42(%arg0: i32) -> (i32, i32) {
    %c0_i32 = arith.constant 0 : i32
    %c0_i32_0 = arith.constant 0 : i32
    %c0_i32_1 = arith.constant 0 : i32
    return %c0_i32, %c0_i32_0 : i32, i32
  }
  func.func @transform_43(%arg0: i32) -> (i32, i32) {
    %c0_i32 = arith.constant 0 : i32
    %c0_i32_0 = arith.constant 0 : i32
    %c0_i32_1 = arith.constant 0 : i32
    return %c0_i32, %c0_i32_0 : i32, i32
  }
  func.func @transform_44(%arg0: i32) -> (i32, i32, i32) {
    %c0_i32 = arith.constant 0 : i32
    %c0_i32_0 = arith.constant 0 : i32
    %c0_i32_1 = arith.constant 0 : i32
    %c0_i32_2 = arith.constant 0 : i32
    return %c0_i32, %c0_i32_0, %c0_i32_1 : i32, i32, i32
  }
  func.func @transform_45(%arg0: i32) -> (i32, i32, i32) {
    %c0_i32 = arith.constant 0 : i32
    %c0_i32_0 = arith.constant 0 : i32
    %c0_i32_1 = arith.constant 0 : i32
    %c0_i32_2 = arith.constant 0 : i32
    return %c0_i32, %c0_i32_0, %c0_i32_1 : i32, i32, i32
  }
  func.func @transform_46(%arg0: i32) -> (i32, i32) {
    %c0_i32 = arith.constant 0 : i32
    %c0_i32_0 = arith.constant 0 : i32
    %c0_i32_1 = arith.constant 0 : i32
    return %c0_i32, %c0_i32_0 : i32, i32
  }
  func.func @transform_47(%arg0: i32) -> (i32, i32) {
    %c0_i32 = arith.constant 0 : i32
    %c0_i32_0 = arith.constant 0 : i32
    %c0_i32_1 = arith.constant 0 : i32
    return %c0_i32, %c0_i32_0 : i32, i32
  }
  func.func @transform_48(%arg0: i32) -> (i32, i32) {
    %c0_i32 = arith.constant 0 : i32
    %c0_i32_0 = arith.constant 0 : i32
    %c0_i32_1 = arith.constant 0 : i32
    return %c0_i32, %c0_i32_0 : i32, i32
  }
  func.func @transform_49(%arg0: i32) -> (i32, i32) {
    %c0_i32 = arith.constant 0 : i32
    %c0_i32_0 = arith.constant 0 : i32
    %c0_i32_1 = arith.constant 0 : i32
    return %c0_i32, %c0_i32_0 : i32, i32
  }
  func.func @transform_50(%arg0: i32) -> (i32, i32) {
    %c0_i32 = arith.constant 0 : i32
    %c0_i32_0 = arith.constant 0 : i32
    %c0_i32_1 = arith.constant 0 : i32
    return %c0_i32, %c0_i32_0 : i32, i32
  }
  func.func @transform_51(%arg0: i32) -> (i32, i32) {
    %c0_i32 = arith.constant 0 : i32
    %c0_i32_0 = arith.constant 0 : i32
    %c0_i32_1 = arith.constant 0 : i32
    return %c0_i32, %c0_i32_0 : i32, i32
  }
  func.func @transform_52(%arg0: i32) -> (i32, i32) {
    %c0_i32 = arith.constant 0 : i32
    %c0_i32_0 = arith.constant 0 : i32
    %c0_i32_1 = arith.constant 0 : i32
    return %c0_i32, %c0_i32_0 : i32, i32
  }
  func.func @transform_53(%arg0: i32) -> (i32, i32) {
    %c0_i32 = arith.constant 0 : i32
    %c0_i32_0 = arith.constant 0 : i32
    %c0_i32_1 = arith.constant 0 : i32
    return %c0_i32, %c0_i32_0 : i32, i32
  }
  func.func @transform_54(%arg0: i32) -> (i32, i32, i32) {
    %c0_i32 = arith.constant 0 : i32
    %c0_i32_0 = arith.constant 0 : i32
    %c0_i32_1 = arith.constant 0 : i32
    %c0_i32_2 = arith.constant 0 : i32
    return %c0_i32, %c0_i32_0, %c0_i32_1 : i32, i32, i32
  }
}

</mosaic_0001>

<llo_original>
// kernel: tpu_custom_call.1
$region0: #{tpu_custom_call.1}
  #allocation0 [shape = 'u32[]', space=smem, size = 0x4, offset = 0x4, fixed_abs, tag = 'smem constant byte address 0x4 - core index']
  #allocation1 [shape = 'u32[72,128]{1,0:T(1,128)}', space=vmem, size = 0x9000, scoped, tag = 'internal scratch']
  #allocation2 [shape = 'f32[8,32]{1,0:T(8,128)}', space=vmem, size = 0x1000, scoped, tag = 'scratch operand']
  #allocation3 [shape = 'f32[3,8,16]{2,1,0:T(8,128)}', space=vmem, size = 0x3000, scoped, tag = 'scratch operand']
  %s0 = inlined_call_operand.smem [shape: u32[55], index: -1, kind: input, shape index: {}]
  %s1 = sld [smem:[%s0]]
  %s2 = scalar_lea.smem %s0, 1
  %s3 = sld [smem:[%s2]]
  %s4 = scalar_lea.smem %s0, 2
  %s5 = sld [smem:[%s4]]
  %s6 = scalar_lea.smem %s0, 3
  %s7 = sld [smem:[%s6]]
  %s8 = scalar_lea.smem %s0, 4
  %s9 = sld [smem:[%s8]]
  %s10 = scalar_lea.smem %s0, 5
  %s11 = sld [smem:[%s10]]
  %s12 = scalar_lea.smem %s0, 6
  %s13 = sld [smem:[%s12]]
  %s14 = scalar_lea.smem %s0, 7
  %s15 = sld [smem:[%s14]]
  %s16 = scalar_lea.smem %s0, 8
  %s17 = sld [smem:[%s16]]
  %s18 = scalar_lea.smem %s0, 9
  %s19 = sld [smem:[%s18]]
  %s20 = scalar_lea.smem %s0, 10
  %s21 = sld [smem:[%s20]]
  %s22 = scalar_lea.smem %s0, 11
  %s23 = sld [smem:[%s22]]
  %s24 = scalar_lea.smem %s0, 12
  %s25 = sld [smem:[%s24]]
  %s26 = scalar_lea.smem %s0, 13
  %s27 = sld [smem:[%s26]]
  %s28 = scalar_lea.smem %s0, 14
  %s29 = sld [smem:[%s28]]
  %s30 = scalar_lea.smem %s0, 15
  %s31 = sld [smem:[%s30]]
  %s32 = scalar_lea.smem %s0, 16
  %s33 = sld [smem:[%s32]]
  %s34 = scalar_lea.smem %s0, 17
  %s35 = sld [smem:[%s34]]
  %s36 = scalar_lea.smem %s0, 18
  %s37 = sld [smem:[%s36]]
  %s38 = scalar_lea.smem %s0, 19
  %s39 = sld [smem:[%s38]]
  %s40 = scalar_lea.smem %s0, 20
  %s41 = sld [smem:[%s40]]
  %s42 = scalar_lea.smem %s0, 21
  %s43 = sld [smem:[%s42]]
  %s44 = scalar_lea.smem %s0, 22
  %s45 = sld [smem:[%s44]]
  %s46 = scalar_lea.smem %s0, 23
  %s47 = sld [smem:[%s46]]
  %s48 = scalar_lea.smem %s0, 24
  %s49 = sld [smem:[%s48]]
  %s50 = scalar_lea.smem %s0, 25
  %s51 = sld [smem:[%s50]]
  %s52 = scalar_lea.smem %s0, 26
  %s53 = sld [smem:[%s52]]
  %s54 = scalar_lea.smem %s0, 27
  %s55 = sld [smem:[%s54]]
  %s56 = scalar_lea.smem %s0, 28
  %s57 = sld [smem:[%s56]]
  %s58 = scalar_lea.smem %s0, 29
  %s59 = sld [smem:[%s58]]
  %s60 = scalar_lea.smem %s0, 30
  %s61 = sld [smem:[%s60]]
  %s62 = scalar_lea.smem %s0, 31
  %s63 = sld [smem:[%s62]]
  %s64 = scalar_lea.smem %s0, 32
  %s65 = sld [smem:[%s64]]
  %s66 = scalar_lea.smem %s0, 33
  %s67 = sld [smem:[%s66]]
  %s68 = scalar_lea.smem %s0, 34
  %s69 = sld [smem:[%s68]]
  %s70 = scalar_lea.smem %s0, 35
  %s71 = sld [smem:[%s70]]
  %s72 = scalar_lea.smem %s0, 36
  %s73 = sld [smem:[%s72]]
  %s74 = scalar_lea.smem %s0, 37
  %s75 = sld [smem:[%s74]]
  %s76 = scalar_lea.smem %s0, 38
  %s77 = sld [smem:[%s76]]
  %s78 = scalar_lea.smem %s0, 39
  %s79 = sld [smem:[%s78]]
  %s80 = scalar_lea.smem %s0, 40
  %s81 = sld [smem:[%s80]]
  %s82 = scalar_lea.smem %s0, 41
  %s83 = sld [smem:[%s82]]
  %s84 = scalar_lea.smem %s0, 42
  %s85 = sld [smem:[%s84]]
  %s86 = scalar_lea.smem %s0, 43
  %s87 = sld [smem:[%s86]]
  %s88 = scalar_lea.smem %s0, 44
  %s89 = sld [smem:[%s88]]
  %s90 = scalar_lea.smem %s0, 45
  %s91 = sld [smem:[%s90]]
  %s92 = scalar_lea.smem %s0, 46
  %s93 = sld [smem:[%s92]]
  %s94 = scalar_lea.smem %s0, 47
  %s95 = sld [smem:[%s94]]
  %s96 = scalar_lea.smem %s0, 48
  %s97 = sld [smem:[%s96]]
  %s98 = scalar_lea.smem %s0, 49
  %s99 = sld [smem:[%s98]]
  %s100 = scalar_lea.smem %s0, 50
  %s101 = sld [smem:[%s100]]
  %s102 = scalar_lea.smem %s0, 51
  %s103 = sld [smem:[%s102]]
  %s104 = scalar_lea.smem %s0, 52
  %s105 = sld [smem:[%s104]]
  %s106 = scalar_lea.smem %s0, 53
  %s107 = sld [smem:[%s106]]
  %s108 = scalar_lea.smem %s0, 54
  %s109 = sld [smem:[%s108]]
  %110 = xla_tuple %s107, %s109
  %s111 = sld [smem:[#allocation0]]
  $region457: #{tpu_custom_call.1} parent=0
    _
  %s113 = ssub.s32 1, %s111
  %s114 = scalar_select 0, %s113, %s111
  $region1: #{tpu_custom_call.1} parent=0
    #allocation4 [shape = 'u8[24576]{0}', space=vmem, size = 0x6000, scoped, tag = 'input window, operand 1']
    #allocation5 [shape = 'u8[24576]{0}', space=vmem, size = 0x6000, scoped, tag = 'input window, operand 2']
    #allocation6 [shape = 'u8[8192]{0}', space=vmem, size = 0x2000, scoped, tag = 'input window, operand 10, single buffered']
    #allocation7 [shape = 's32[2]{0}', space=sflag, size = 0x8, scoped, tag = 'scoped memory for tpu_custom_call.1']
    #allocation8 [shape = 's32[2]{0}', space=sflag, size = 0x8, scoped, tag = 'scoped memory for tpu_custom_call.1']
    #allocation9 [shape = 'u8[8192]{0}', space=vmem, size = 0x2000, scoped, tag = 'input window, operand 11, single buffered']
    #allocation10 [shape = 's32[1]{0}', space=sflag, size = 0x4, scoped, tag = 'scoped memory for tpu_custom_call.1']
    #allocation11 [shape = 'u8[512]{0}', space=vmem, size = 0x400, scoped, tag = 'input window, operand 14, single buffered']
    #allocation12 [shape = 'u8[8192]{0}', space=vmem, size = 0x2000, scoped, tag = 'input window, operand 15, single buffered']
    #allocation13 [shape = 's32[1]{0}', space=sflag, size = 0x4, scoped, tag = 'scoped memory for tpu_custom_call.1']
    #allocation14 [shape = 'u8[8192]{0}', space=vmem, size = 0x2000, scoped, tag = 'input window, operand 17, single buffered']
    #allocation15 [shape = 'u8[8192]{0}', space=vmem, size = 0x2000, scoped, tag = 'input window, operand 18, single buffered']
    #allocation16 [shape = 's32[1]{0}', space=sflag, size = 0x4, scoped, tag = 'scoped memory for tpu_custom_call.1']
    #allocation17 [shape = 'u8[8192]{0}', space=vmem, size = 0x2000, scoped, tag = 'input window, operand 19, single buffered']
    #allocation18 [shape = 'u8[512]{0}', space=vmem, size = 0x400, scoped, tag = 'input window, operand 20, single buffered']
    #allocation19 [shape = 's32[1]{0}', space=sflag, size = 0x4, scoped, tag = 'scoped memory for tpu_custom_call.1']
    #allocation20 [shape = 'u8[8192]{0}', space=vmem, size = 0x2000, scoped, tag = 'input window, operand 21, single buffered']
    #allocation21 [shape = 'u8[8192]{0}', space=vmem, size = 0x2000, scoped, tag = 'input window, operand 22, single buffered']
    #allocation22 [shape = 's32[1]{0}', space=sflag, size = 0x4, scoped, tag = 'scoped memory for tpu_custom_call.1']
    #allocation23 [shape = 'u8[512]{0}', space=vmem, size = 0x400, scoped, tag = 'input window, operand 23, single buffered']
    #allocation24 [shape = 'u8[8192]{0}', space=vmem, size = 0x2000, scoped, tag = 'input window, operand 24, single buffered']
    #allocation25 [shape = 's32[1]{0}', space=sflag, size = 0x4, scoped, tag = 'scoped memory for tpu_custom_call.1']
    #allocation26 [shape = 'u8[512]{0}', space=vmem, size = 0x400, scoped, tag = 'input window, operand 25, single buffered']
    #allocation27 [shape = 'u8[512]{0}', space=vmem, size = 0x400, scoped, tag = 'input window, operand 27, single buffered']
    #allocation28 [shape = 's32[1]{0}', space=sflag, size = 0x4, scoped, tag = 'scoped memory for tpu_custom_call.1']
    #allocation29 [shape = 'u8[8192]{0}', space=vmem, size = 0x2000, scoped, tag = 'input window, operand 28, single buffered']
    #allocation30 [shape = 'u8[512]{0}', space=vmem, size = 0x400, scoped, tag = 'input window, operand 29, single buffered']
    #allocation31 [shape = 's32[1]{0}', space=sflag, size = 0x4, scoped, tag = 'scoped memory for tpu_custom_call.1']
    #allocation32 [shape = 'u8[8192]{0}', space=vmem, size = 0x2000, scoped, tag = 'input window, operand 30, single buffered']
    #allocation33 [shape = 'u8[8192]{0}', space=vmem, size = 0x2000, scoped, tag = 'input window, operand 31, single buffered']
    #allocation34 [shape = 's32[1]{0}', space=sflag, size = 0x4, scoped, tag = 'scoped memory for tpu_custom_call.1']
    #allocation35 [shape = 'u8[512]{0}', space=vmem, size = 0x400, scoped, tag = 'input window, operand 35, single buffered']
    #allocation36 [shape = 'u8[8192]{0}', space=vmem, size = 0x2000, scoped, tag = 'input window, operand 36, single buffered']
    #allocation37 [shape = 's32[1]{0}', space=sflag, size = 0x4, scoped, tag = 'scoped memory for tpu_custom_call.1']
    #allocation38 [shape = 'u8[8192]{0}', space=vmem, size = 0x2000, scoped, tag = 'input window, operand 37, single buffered']
    #allocation39 [shape = 'u8[8192]{0}', space=vmem, size = 0x2000, scoped, tag = 'input window, operand 38, single buffered']
    #allocation40 [shape = 's32[1]{0}', space=sflag, size = 0x4, scoped, tag = 'scoped memory for tpu_custom_call.1']
    #allocation41 [shape = 'u8[512]{0}', space=vmem, size = 0x400, scoped, tag = 'input window, operand 41, single buffered']
    #allocation42 [shape = 'u8[512]{0}', space=vmem, size = 0x400, scoped, tag = 'input window, operand 42, single buffered']
    #allocation43 [shape = 's32[1]{0}', space=sflag, size = 0x4, scoped, tag = 'scoped memory for tpu_custom_call.1']
    #allocation44 [shape = 'u8[512]{0}', space=vmem, size = 0x400, scoped, tag = 'input window, operand 43, single buffered']
    #allocation45 [shape = 'u8[1536]{0}', space=vmem, size = 0x800, scoped, tag = 'input window, operand 44, single buffered']
    #allocation46 [shape = 's32[1]{0}', space=sflag, size = 0x4, scoped, tag = 'scoped memory for tpu_custom_call.1']
    #allocation47 [shape = 'u8[1536]{0}', space=vmem, size = 0x800, scoped, tag = 'input window, operand 45, single buffered']
    #allocation48 [shape = 'u8[8192]{0}', space=vmem, size = 0x2000, scoped, tag = 'input window, operand 46, single buffered']
    #allocation49 [shape = 's32[1]{0}', space=sflag, size = 0x4, scoped, tag = 'scoped memory for tpu_custom_call.1']
    #allocation50 [shape = 'u8[8192]{0}', space=vmem, size = 0x2000, scoped, tag = 'input window, operand 47, single buffered']
    #allocation51 [shape = 'u8[8192]{0}', space=vmem, size = 0x2000, scoped, tag = 'input window, operand 49, single buffered']
    #allocation52 [shape = 's32[1]{0}', space=sflag, size = 0x4, scoped, tag = 'scoped memory for tpu_custom_call.1']
    #allocation53 [shape = 'u8[4096]{0}', space=vmem, size = 0x1000, scoped, tag = 'output window, operand 0, single buffered']
    #allocation54 [shape = 'u8[12288]{0}', space=vmem, size = 0x3000, scoped, tag = 'output window, operand 1, single buffered']
    #allocation55 [shape = 's32[1]{0}', space=sflag, size = 0x4, scoped, tag = 'scoped memory for tpu_custom_call.1']
    %115 = vsyncpa [#allocation7], 0
    %116 = vsyncpa [#allocation10], 0
    %117 = vsyncpa [#allocation13], 0
    %118 = vsyncpa [#allocation16], 0
    %119 = vsyncpa [#allocation19], 0
    %120 = vsyncpa [#allocation22], 0
    %121 = vsyncpa [#allocation25], 0
    %122 = vsyncpa [#allocation28], 0
    %123 = vsyncpa [#allocation31], 0
    %124 = vsyncpa [#allocation34], 0
    %125 = vsyncpa [#allocation37], 0
    %126 = vsyncpa [#allocation40], 0
    %127 = vsyncpa [#allocation43], 0
    %128 = vsyncpa [#allocation46], 0
    %129 = vsyncpa [#allocation49], 0
    %130 = vsyncpa [#allocation52], 0
    %131 = vsyncpa [#allocation8], 0
    %132 = vsyncpa [#allocation55], 0
    loop: start=0, step=1, limit=4
    $region2: #{tpu_custom_call.1} parent=1 // loop_pre_header
      _
    $region3: #{tpu_custom_call.1} parent=1 // loop_header
      %s134 = sphi 0, %s138
      %p135 = scmp.ge.s32.totalorder %s134, 4
      %s144 = sphi 0, %s146
      %s147 = sphi 0, %s144
      %s148 = sphi 0, %s147
      %s164 = sphi 0, %s148
      %s170 = sphi 0, %s172
      %s173 = sphi 0, %s170
      %s174 = sphi 0, %s173
      %s190 = sphi 0, %s174
      %s196 = sphi 0, %s198
      %s199 = sphi 0, %s196
      %s200 = sphi 0, %s199
      %s216 = sphi 0, %s200
      %s222 = sphi 0, %s224
      %s225 = sphi 0, %s222
      %s226 = sphi 0, %s225
      %s242 = sphi 0, %s226
      %s248 = sphi 0, %s250
      %s251 = sphi 0, %s248
      %s252 = sphi 0, %s251
      %s268 = sphi 0, %s252
      %s272 = sphi 0, %s272
      %s274 = sphi 0, %s272
      %s275 = sphi 0, %s274
      %s289 = sphi 0, %s275
      %s293 = sphi 0, %s293
      %s295 = sphi 0, %s293
      %s296 = sphi 0, %s295
      %s310 = sphi 0, %s296
      %s314 = sphi 0, %s314
      %s316 = sphi 0, %s314
      %s317 = sphi 0, %s316
      %s331 = sphi 0, %s317
      %s335 = sphi 0, %s335
      %s337 = sphi 0, %s335
      %s338 = sphi 0, %s337
      %s352 = sphi 0, %s338
      %s356 = sphi 0, %s356
      %s358 = sphi 0, %s356
      %s359 = sphi 0, %s358
      %s373 = sphi 0, %s359
      %s377 = sphi 0, %s377
      %s379 = sphi 0, %s377
      %s380 = sphi 0, %s379
      %s394 = sphi 0, %s380
      %s398 = sphi 0, %s398
      %s400 = sphi 0, %s398
      %s401 = sphi 0, %s400
      %s415 = sphi 0, %s401
      %s419 = sphi 0, %s419
      %s421 = sphi 0, %s419
      %s422 = sphi 0, %s421
      %s436 = sphi 0, %s422
      %s440 = sphi 0, %s440
      %s442 = sphi 0, %s440
      %s443 = sphi 0, %s442
      %s457 = sphi 0, %s443
      %s461 = sphi 0, %s461
      %s463 = sphi 0, %s461
      %s464 = sphi 0, %s463
      %s478 = sphi 0, %s464
      %s482 = sphi 0, %s482
      %s484 = sphi 0, %s482
      %s485 = sphi 0, %s484
      %s499 = sphi 0, %s485
      %s503 = sphi 0, %s503
      %s505 = sphi 0, %s503
      %s506 = sphi 0, %s505
      %s520 = sphi 0, %s506
      %s524 = sphi 0, %s524
      %s526 = sphi 0, %s524
      %s527 = sphi 0, %s526
      %s541 = sphi 0, %s527
      %s545 = sphi 0, %s545
      %s547 = sphi 0, %s545
      %s548 = sphi 0, %s547
      %s562 = sphi 0, %s548
      %s566 = sphi 0, %s566
      %s568 = sphi 0, %s566
      %s569 = sphi 0, %s568
      %s583 = sphi 0, %s569
      %s587 = sphi 0, %s587
      %s589 = sphi 0, %s587
      %s590 = sphi 0, %s589
      %s604 = sphi 0, %s590
      %s608 = sphi 0, %s608
      %s610 = sphi 0, %s608
      %s611 = sphi 0, %s610
      %s625 = sphi 0, %s611
      %s629 = sphi 0, %s629
      %s631 = sphi 0, %s629
      %s632 = sphi 0, %s631
      %s646 = sphi 0, %s632
      %s650 = sphi 0, %s650
      %s652 = sphi 0, %s650
      %s653 = sphi 0, %s652
      %s667 = sphi 0, %s653
      %s671 = sphi 0, %s671
      %s673 = sphi 0, %s671
      %s674 = sphi 0, %s673
      %s688 = sphi 0, %s674
      %s692 = sphi 0, %s692
      %s694 = sphi 0, %s692
      %s695 = sphi 0, %s694
      %s709 = sphi 0, %s695
      %s713 = sphi 0, %s713
      %s715 = sphi 0, %s713
      %s716 = sphi 0, %s715
      %s730 = sphi 0, %s716
      %s734 = sphi 0, %s734
      %s736 = sphi 0, %s734
      %s737 = sphi 0, %s736
      %s751 = sphi 0, %s737
      %s755 = sphi 0, %s755
      %s757 = sphi 0, %s755
      %s758 = sphi 0, %s757
      %s772 = sphi 0, %s758
      %s776 = sphi 0, %s776
      %s778 = sphi 0, %s776
      %s779 = sphi 0, %s778
      %s793 = sphi 0, %s779
      %s797 = sphi 0, %s797
      %s799 = sphi 0, %s797
      %s800 = sphi 0, %s799
      %s814 = sphi 0, %s800
      %s818 = sphi 0, %s818
      %s820 = sphi 0, %s818
      %s821 = sphi 0, %s820
      %s835 = sphi 0, %s821
      %s839 = sphi 0, %s839
      %s841 = sphi 0, %s839
      %s842 = sphi 0, %s841
      %s856 = sphi 0, %s842
      %s860 = sphi 0, %s860
      %s862 = sphi 0, %s860
      %s863 = sphi 0, %s862
      %s877 = sphi 0, %s863
      %s881 = sphi 0, %s881
      %s883 = sphi 0, %s881
      %s884 = sphi 0, %s883
      %s898 = sphi 0, %s884
      %s902 = sphi 0, %s902
      %s904 = sphi 0, %s902
      %s905 = sphi 0, %s904
      %s919 = sphi 0, %s905
      %s923 = sphi 0, %s923
      %s925 = sphi 0, %s923
      %s926 = sphi 0, %s925
      %s940 = sphi 0, %s926
      %s944 = sphi 0, %s944
      %s946 = sphi 0, %s944
      %s947 = sphi 0, %s946
      %s961 = sphi 0, %s947
      %s965 = sphi 0, %s965
      %s967 = sphi 0, %s965
      %s968 = sphi 0, %s967
      %s982 = sphi 0, %s968
      %s986 = sphi 0, %s986
      %s988 = sphi 0, %s986
      %s989 = sphi 0, %s988
      %s1003 = sphi 0, %s989
      %s1007 = sphi 0, %s1007
      %s1009 = sphi 0, %s1007
      %s1010 = sphi 0, %s1009
      %s1024 = sphi 0, %s1010
      %s1028 = sphi 0, %s1028
      %s1030 = sphi 0, %s1028
      %s1031 = sphi 0, %s1030
      %s1045 = sphi 0, %s1031
      %s1049 = sphi 0, %s1049
      %s1051 = sphi 0, %s1049
      %s1052 = sphi 0, %s1051
      %s1066 = sphi 0, %s1052
      %s1070 = sphi 0, %s1070
      %s1072 = sphi 0, %s1070
      %s1073 = sphi 0, %s1072
      %s1087 = sphi 0, %s1073
      %s1091 = sphi 0, %s1091
      %s1093 = sphi 0, %s1091
      %s1094 = sphi 0, %s1093
      %s1108 = sphi 0, %s1094
      %s1112 = sphi 0, %s1112
      %s1114 = sphi 0, %s1112
      %s1115 = sphi 0, %s1114
      %s1129 = sphi 0, %s1115
      %s1133 = sphi 0, %s1133
      %s1135 = sphi 0, %s1133
      %s1136 = sphi 0, %s1135
      %s1150 = sphi 0, %s1136
      %s1154 = sphi 0, %s1154
      %s1156 = sphi 0, %s1154
      %s1157 = sphi 0, %s1156
      %s1171 = sphi 0, %s1157
      %s1175 = sphi 0, %s1175
      %s1177 = sphi 0, %s1175
      %s1178 = sphi 0, %s1177
      %s1192 = sphi 0, %s1178
      %s1196 = sphi 0, %s1196
      %s1198 = sphi 0, %s1196
      %s1199 = sphi 0, %s1198
      %s1213 = sphi 0, %s1199
      %s1217 = sphi 0, %s1217
      %s1219 = sphi 0, %s1217
      %s1220 = sphi 0, %s1219
      %s1234 = sphi 0, %s1220
      %s1238 = sphi 0, %s1238
      %s1240 = sphi 0, %s1238
      %s1241 = sphi 0, %s1240
      %s1255 = sphi 0, %s1241
      %s1259 = sphi 0, %s1259
      %s1261 = sphi 0, %s1259
      %s1262 = sphi 0, %s1261
      %s1276 = sphi 0, %s1262
      %s1280 = sphi 0, %s1280
      %s1282 = sphi 0, %s1280
      %s1283 = sphi 0, %s1282
      %s1297 = sphi 0, %s1283
      %s1301 = sphi 0, %s1301
      %s1303 = sphi 0, %s1301
      %s1304 = sphi 0, %s1303
      %s1318 = sphi 0, %s1304
    $region4: #{tpu_custom_call.1} parent=1 // loop_header_branch
      %137 = sbr.rel (%p135) target = $region8
    $region5: #{tpu_custom_call.1} parent=1 // loop_body
      %s139 = ssub.s32 %s134, 1
      %s140 = ssub.s32 %s134, 2
      %s141 = sadd.s32 %s134, 1
      %s142 = ssub.s32 %s134, %s141
      %p143 = scmp.eq.s32.totalorder %s142, 0
      %s145 = sadd.s32 %s144, 1
      %s146 = scalar_select %p143, %s144, %s145
      %p149 = pneg %p143
      %p150 = scmp.eq.s32.totalorder %s134, 1
      %p151 = por %p149, %p150
      %p152 = scmp.ne.s32.totalorder %s144, %s147
      %p153 = scmp.eq.s32.totalorder %s134, 0
      %p154 = por %p152, %p153
      %p155 = scmp.ne.s32.totalorder %s144, %s147
      %p156 = scmp.eq.s32.totalorder %s139, 1
      %p157 = por %p155, %p156
      %p158 = scmp.ne.s32.totalorder %s147, %s148
      %p159 = scmp.eq.s32.totalorder %s139, 0
      %p160 = por %p158, %p159
      %p161 = scmp.ne.s32.totalorder %s147, %s148
      %p162 = scmp.eq.s32.totalorder %s140, 1
      %p163 = por %p161, %p162
      %p165 = scmp.ne.s32.totalorder %s148, %s164
      %p166 = scmp.eq.s32.totalorder %s140, 0
      %p167 = por %p165, %p166
      %s168 = ssub.s32 %s134, %s141
      %p169 = scmp.eq.s32.totalorder %s168, 0
      %s171 = sadd.s32 %s170, 1
      %s172 = scalar_select %p169, %s170, %s171
      %p175 = pneg %p169
      %p176 = scmp.eq.s32.totalorder %s134, 1
      %p177 = por %p175, %p176
      %p178 = scmp.ne.s32.totalorder %s170, %s173
      %p179 = scmp.eq.s32.totalorder %s134, 0
      %p180 = por %p178, %p179
      %p181 = scmp.ne.s32.totalorder %s170, %s173
      %p182 = scmp.eq.s32.totalorder %s139, 1
      %p183 = por %p181, %p182
      %p184 = scmp.ne.s32.totalorder %s173, %s174
      %p185 = scmp.eq.s32.totalorder %s139, 0
      %p186 = por %p184, %p185
      %p187 = scmp.ne.s32.totalorder %s173, %s174
      %p188 = scmp.eq.s32.totalorder %s140, 1
      %p189 = por %p187, %p188
      %p191 = scmp.ne.s32.totalorder %s174, %s190
      %p192 = scmp.eq.s32.totalorder %s140, 0
      %p193 = por %p191, %p192
      %s194 = ssub.s32 %s134, %s141
      %p195 = scmp.eq.s32.totalorder %s194, 0
      %s197 = sadd.s32 %s196, 1
      %s198 = scalar_select %p195, %s196, %s197
      %p201 = pneg %p195
      %p202 = scmp.eq.s32.totalorder %s134, 1
      %p203 = por %p201, %p202
      %p204 = scmp.ne.s32.totalorder %s196, %s199
      %p205 = scmp.eq.s32.totalorder %s134, 0
      %p206 = por %p204, %p205
      %p207 = scmp.ne.s32.totalorder %s196, %s199
      %p208 = scmp.eq.s32.totalorder %s139, 1
      %p209 = por %p207, %p208
      %p210 = scmp.ne.s32.totalorder %s199, %s200
      %p211 = scmp.eq.s32.totalorder %s139, 0
      %p212 = por %p210, %p211
      %p213 = scmp.ne.s32.totalorder %s199, %s200
      %p214 = scmp.eq.s32.totalorder %s140, 1
      %p215 = por %p213, %p214
      %p217 = scmp.ne.s32.totalorder %s200, %s216
      %p218 = scmp.eq.s32.totalorder %s140, 0
      %p219 = por %p217, %p218
      %s220 = ssub.s32 %s134, %s141
      %p221 = scmp.eq.s32.totalorder %s220, 0
      %s223 = sadd.s32 %s222, 1
      %s224 = scalar_select %p221, %s222, %s223
      %p227 = pneg %p221
      %p228 = scmp.eq.s32.totalorder %s134, 1
      %p229 = por %p227, %p228
      %p230 = scmp.ne.s32.totalorder %s222, %s225
      %p231 = scmp.eq.s32.totalorder %s134, 0
      %p232 = por %p230, %p231
      %p233 = scmp.ne.s32.totalorder %s222, %s225
      %p234 = scmp.eq.s32.totalorder %s139, 1
      %p235 = por %p233, %p234
      %p236 = scmp.ne.s32.totalorder %s225, %s226
      %p237 = scmp.eq.s32.totalorder %s139, 0
      %p238 = por %p236, %p237
      %p239 = scmp.ne.s32.totalorder %s225, %s226
      %p240 = scmp.eq.s32.totalorder %s140, 1
      %p241 = por %p239, %p240
      %p243 = scmp.ne.s32.totalorder %s226, %s242
      %p244 = scmp.eq.s32.totalorder %s140, 0
      %p245 = por %p243, %p244
      %s246 = ssub.s32 %s134, %s141
      %p247 = scmp.eq.s32.totalorder %s246, 0
      %s249 = sadd.s32 %s248, 1
      %s250 = scalar_select %p247, %s248, %s249
      %p253 = pneg %p247
      %p254 = scmp.eq.s32.totalorder %s134, 1
      %p255 = por %p253, %p254
      %p256 = scmp.ne.s32.totalorder %s248, %s251
      %p257 = scmp.eq.s32.totalorder %s134, 0
      %p258 = por %p256, %p257
      %p259 = scmp.ne.s32.totalorder %s248, %s251
      %p260 = scmp.eq.s32.totalorder %s139, 1
      %p261 = por %p259, %p260
      %p262 = scmp.ne.s32.totalorder %s251, %s252
      %p263 = scmp.eq.s32.totalorder %s139, 0
      %p264 = por %p262, %p263
      %p265 = scmp.ne.s32.totalorder %s251, %s252
      %p266 = scmp.eq.s32.totalorder %s140, 1
      %p267 = por %p265, %p266
      %p269 = scmp.ne.s32.totalorder %s252, %s268
      %p270 = scmp.eq.s32.totalorder %s140, 0
      %p271 = por %p269, %p270
      %s273 = sadd.s32 %s272, 1
      %p276 = scmp.eq.s32.totalorder %s134, 1
      %p277 = scmp.ne.s32.totalorder %s272, %s274
      %p278 = scmp.eq.s32.totalorder %s134, 0
      %p279 = por %p277, %p278
      %p280 = scmp.ne.s32.totalorder %s272, %s274
      %p281 = scmp.eq.s32.totalorder %s139, 1
      %p282 = por %p280, %p281
      %p283 = scmp.ne.s32.totalorder %s274, %s275
      %p284 = scmp.eq.s32.totalorder %s139, 0
      %p285 = por %p283, %p284
      %p286 = scmp.ne.s32.totalorder %s274, %s275
      %p287 = scmp.eq.s32.totalorder %s140, 1
      %p288 = por %p286, %p287
      %p290 = scmp.ne.s32.totalorder %s275, %s289
      %p291 = scmp.eq.s32.totalorder %s140, 0
      %p292 = por %p290, %p291
      %s294 = sadd.s32 %s293, 1
      %p297 = scmp.eq.s32.totalorder %s134, 1
      %p298 = scmp.ne.s32.totalorder %s293, %s295
      %p299 = scmp.eq.s32.totalorder %s134, 0
      %p300 = por %p298, %p299
      %p301 = scmp.ne.s32.totalorder %s293, %s295
      %p302 = scmp.eq.s32.totalorder %s139, 1
      %p303 = por %p301, %p302
      %p304 = scmp.ne.s32.totalorder %s295, %s296
      %p305 = scmp.eq.s32.totalorder %s139, 0
      %p306 = por %p304, %p305
      %p307 = scmp.ne.s32.totalorder %s295, %s296
      %p308 = scmp.eq.s32.totalorder %s140, 1
      %p309 = por %p307, %p308
      %p311 = scmp.ne.s32.totalorder %s296, %s310
      %p312 = scmp.eq.s32.totalorder %s140, 0
      %p313 = por %p311, %p312
      %s315 = sadd.s32 %s314, 1
      %p318 = scmp.eq.s32.totalorder %s134, 1
      %p319 = scmp.ne.s32.totalorder %s314, %s316
      %p320 = scmp.eq.s32.totalorder %s134, 0
      %p321 = por %p319, %p320
      %p322 = scmp.ne.s32.totalorder %s314, %s316
      %p323 = scmp.eq.s32.totalorder %s139, 1
      %p324 = por %p322, %p323
      %p325 = scmp.ne.s32.totalorder %s316, %s317
      %p326 = scmp.eq.s32.totalorder %s139, 0
      %p327 = por %p325, %p326
      %p328 = scmp.ne.s32.totalorder %s316, %s317
      %p329 = scmp.eq.s32.totalorder %s140, 1
      %p330 = por %p328, %p329
      %p332 = scmp.ne.s32.totalorder %s317, %s331
      %p333 = scmp.eq.s32.totalorder %s140, 0
      %p334 = por %p332, %p333
      %s336 = sadd.s32 %s335, 1
      %p339 = scmp.eq.s32.totalorder %s134, 1
      %p340 = scmp.ne.s32.totalorder %s335, %s337
      %p341 = scmp.eq.s32.totalorder %s134, 0
      %p342 = por %p340, %p341
      %p343 = scmp.ne.s32.totalorder %s335, %s337
      %p344 = scmp.eq.s32.totalorder %s139, 1
      %p345 = por %p343, %p344
      %p346 = scmp.ne.s32.totalorder %s337, %s338
      %p347 = scmp.eq.s32.totalorder %s139, 0
      %p348 = por %p346, %p347
      %p349 = scmp.ne.s32.totalorder %s337, %s338
      %p350 = scmp.eq.s32.totalorder %s140, 1
      %p351 = por %p349, %p350
      %p353 = scmp.ne.s32.totalorder %s338, %s352
      %p354 = scmp.eq.s32.totalorder %s140, 0
      %p355 = por %p353, %p354
      %s357 = sadd.s32 %s356, 1
      %p360 = scmp.eq.s32.totalorder %s134, 1
      %p361 = scmp.ne.s32.totalorder %s356, %s358
      %p362 = scmp.eq.s32.totalorder %s134, 0
      %p363 = por %p361, %p362
      %p364 = scmp.ne.s32.totalorder %s356, %s358
      %p365 = scmp.eq.s32.totalorder %s139, 1
      %p366 = por %p364, %p365
      %p367 = scmp.ne.s32.totalorder %s358, %s359
      %p368 = scmp.eq.s32.totalorder %s139, 0
      %p369 = por %p367, %p368
      %p370 = scmp.ne.s32.totalorder %s358, %s359
      %p371 = scmp.eq.s32.totalorder %s140, 1
      %p372 = por %p370, %p371
      %p374 = scmp.ne.s32.totalorder %s359, %s373
      %p375 = scmp.eq.s32.totalorder %s140, 0
      %p376 = por %p374, %p375
      %s378 = sadd.s32 %s377, 1
      %p381 = scmp.eq.s32.totalorder %s134, 1
      %p382 = scmp.ne.s32.totalorder %s377, %s379
      %p383 = scmp.eq.s32.totalorder %s134, 0
      %p384 = por %p382, %p383
      %p385 = scmp.ne.s32.totalorder %s377, %s379
      %p386 = scmp.eq.s32.totalorder %s139, 1
      %p387 = por %p385, %p386
      %p388 = scmp.ne.s32.totalorder %s379, %s380
      %p389 = scmp.eq.s32.totalorder %s139, 0
      %p390 = por %p388, %p389
      %p391 = scmp.ne.s32.totalorder %s379, %s380
      %p392 = scmp.eq.s32.totalorder %s140, 1
      %p393 = por %p391, %p392
      %p395 = scmp.ne.s32.totalorder %s380, %s394
      %p396 = scmp.eq.s32.totalorder %s140, 0
      %p397 = por %p395, %p396
      %s399 = sadd.s32 %s398, 1
      %p402 = scmp.eq.s32.totalorder %s134, 1
      %p403 = scmp.ne.s32.totalorder %s398, %s400
      %p404 = scmp.eq.s32.totalorder %s134, 0
      %p405 = por %p403, %p404
      %p406 = scmp.ne.s32.totalorder %s398, %s400
      %p407 = scmp.eq.s32.totalorder %s139, 1
      %p408 = por %p406, %p407
      %p409 = scmp.ne.s32.totalorder %s400, %s401
      %p410 = scmp.eq.s32.totalorder %s139, 0
      %p411 = por %p409, %p410
      %p412 = scmp.ne.s32.totalorder %s400, %s401
      %p413 = scmp.eq.s32.totalorder %s140, 1
      %p414 = por %p412, %p413
      %p416 = scmp.ne.s32.totalorder %s401, %s415
      %p417 = scmp.eq.s32.totalorder %s140, 0
      %p418 = por %p416, %p417
      %s420 = sadd.s32 %s419, 1
      %p423 = scmp.eq.s32.totalorder %s134, 1
      %p424 = scmp.ne.s32.totalorder %s419, %s421
      %p425 = scmp.eq.s32.totalorder %s134, 0
      %p426 = por %p424, %p425
      %p427 = scmp.ne.s32.totalorder %s419, %s421
      %p428 = scmp.eq.s32.totalorder %s139, 1
      %p429 = por %p427, %p428
      %p430 = scmp.ne.s32.totalorder %s421, %s422
      %p431 = scmp.eq.s32.totalorder %s139, 0
      %p432 = por %p430, %p431
      %p433 = scmp.ne.s32.totalorder %s421, %s422
      %p434 = scmp.eq.s32.totalorder %s140, 1
      %p435 = por %p433, %p434
      %p437 = scmp.ne.s32.totalorder %s422, %s436
      %p438 = scmp.eq.s32.totalorder %s140, 0
      %p439 = por %p437, %p438
      %s441 = sadd.s32 %s440, 1
      %p444 = scmp.eq.s32.totalorder %s134, 1
      %p445 = scmp.ne.s32.totalorder %s440, %s442
      %p446 = scmp.eq.s32.totalorder %s134, 0
      %p447 = por %p445, %p446
      %p448 = scmp.ne.s32.totalorder %s440, %s442
      %p449 = scmp.eq.s32.totalorder %s139, 1
      %p450 = por %p448, %p449
      %p451 = scmp.ne.s32.totalorder %s442, %s443
      %p452 = scmp.eq.s32.totalorder %s139, 0
      %p453 = por %p451, %p452
      %p454 = scmp.ne.s32.totalorder %s442, %s443
      %p455 = scmp.eq.s32.totalorder %s140, 1
      %p456 = por %p454, %p455
      %p458 = scmp.ne.s32.totalorder %s443, %s457
      %p459 = scmp.eq.s32.totalorder %s140, 0
      %p460 = por %p458, %p459
      %s462 = sadd.s32 %s461, 1
      %p465 = scmp.eq.s32.totalorder %s134, 1
      %p466 = scmp.ne.s32.totalorder %s461, %s463
      %p467 = scmp.eq.s32.totalorder %s134, 0
      %p468 = por %p466, %p467
      %p469 = scmp.ne.s32.totalorder %s461, %s463
      %p470 = scmp.eq.s32.totalorder %s139, 1
      %p471 = por %p469, %p470
      %p472 = scmp.ne.s32.totalorder %s463, %s464
      %p473 = scmp.eq.s32.totalorder %s139, 0
      %p474 = por %p472, %p473
      %p475 = scmp.ne.s32.totalorder %s463, %s464
      %p476 = scmp.eq.s32.totalorder %s140, 1
      %p477 = por %p475, %p476
      %p479 = scmp.ne.s32.totalorder %s464, %s478
      %p480 = scmp.eq.s32.totalorder %s140, 0
      %p481 = por %p479, %p480
      %s483 = sadd.s32 %s482, 1
      %p486 = scmp.eq.s32.totalorder %s134, 1
      %p487 = scmp.ne.s32.totalorder %s482, %s484
      %p488 = scmp.eq.s32.totalorder %s134, 0
      %p489 = por %p487, %p488
      %p490 = scmp.ne.s32.totalorder %s482, %s484
      %p491 = scmp.eq.s32.totalorder %s139, 1
      %p492 = por %p490, %p491
      %p493 = scmp.ne.s32.totalorder %s484, %s485
      %p494 = scmp.eq.s32.totalorder %s139, 0
      %p495 = por %p493, %p494
      %p496 = scmp.ne.s32.totalorder %s484, %s485
      %p497 = scmp.eq.s32.totalorder %s140, 1
      %p498 = por %p496, %p497
      %p500 = scmp.ne.s32.totalorder %s485, %s499
      %p501 = scmp.eq.s32.totalorder %s140, 0
      %p502 = por %p500, %p501
      %s504 = sadd.s32 %s503, 1
      %p507 = scmp.eq.s32.totalorder %s134, 1
      %p508 = scmp.ne.s32.totalorder %s503, %s505
      %p509 = scmp.eq.s32.totalorder %s134, 0
      %p510 = por %p508, %p509
      %p511 = scmp.ne.s32.totalorder %s503, %s505
      %p512 = scmp.eq.s32.totalorder %s139, 1
      %p513 = por %p511, %p512
      %p514 = scmp.ne.s32.totalorder %s505, %s506
      %p515 = scmp.eq.s32.totalorder %s139, 0
      %p516 = por %p514, %p515
      %p517 = scmp.ne.s32.totalorder %s505, %s506
      %p518 = scmp.eq.s32.totalorder %s140, 1
      %p519 = por %p517, %p518
      %p521 = scmp.ne.s32.totalorder %s506, %s520
      %p522 = scmp.eq.s32.totalorder %s140, 0
      %p523 = por %p521, %p522
      %s525 = sadd.s32 %s524, 1
      %p528 = scmp.eq.s32.totalorder %s134, 1
      %p529 = scmp.ne.s32.totalorder %s524, %s526
      %p530 = scmp.eq.s32.totalorder %s134, 0
      %p531 = por %p529, %p530
      %p532 = scmp.ne.s32.totalorder %s524, %s526
      %p533 = scmp.eq.s32.totalorder %s139, 1
      %p534 = por %p532, %p533
      %p535 = scmp.ne.s32.totalorder %s526, %s527
      %p536 = scmp.eq.s32.totalorder %s139, 0
      %p537 = por %p535, %p536
      %p538 = scmp.ne.s32.totalorder %s526, %s527
      %p539 = scmp.eq.s32.totalorder %s140, 1
      %p540 = por %p538, %p539
      %p542 = scmp.ne.s32.totalorder %s527, %s541
      %p543 = scmp.eq.s32.totalorder %s140, 0
      %p544 = por %p542, %p543
      %s546 = sadd.s32 %s545, 1
      %p549 = scmp.eq.s32.totalorder %s134, 1
      %p550 = scmp.ne.s32.totalorder %s545, %s547
      %p551 = scmp.eq.s32.totalorder %s134, 0
      %p552 = por %p550, %p551
      %p553 = scmp.ne.s32.totalorder %s545, %s547
      %p554 = scmp.eq.s32.totalorder %s139, 1
      %p555 = por %p553, %p554
      %p556 = scmp.ne.s32.totalorder %s547, %s548
      %p557 = scmp.eq.s32.totalorder %s139, 0
      %p558 = por %p556, %p557
      %p559 = scmp.ne.s32.totalorder %s547, %s548
      %p560 = scmp.eq.s32.totalorder %s140, 1
      %p561 = por %p559, %p560
      %p563 = scmp.ne.s32.totalorder %s548, %s562
      %p564 = scmp.eq.s32.totalorder %s140, 0
      %p565 = por %p563, %p564
      %s567 = sadd.s32 %s566, 1
      %p570 = scmp.eq.s32.totalorder %s134, 1
      %p571 = scmp.ne.s32.totalorder %s566, %s568
      %p572 = scmp.eq.s32.totalorder %s134, 0
      %p573 = por %p571, %p572
      %p574 = scmp.ne.s32.totalorder %s566, %s568
      %p575 = scmp.eq.s32.totalorder %s139, 1
      %p576 = por %p574, %p575
      %p577 = scmp.ne.s32.totalorder %s568, %s569
      %p578 = scmp.eq.s32.totalorder %s139, 0
      %p579 = por %p577, %p578
      %p580 = scmp.ne.s32.totalorder %s568, %s569
      %p581 = scmp.eq.s32.totalorder %s140, 1
      %p582 = por %p580, %p581
      %p584 = scmp.ne.s32.totalorder %s569, %s583
      %p585 = scmp.eq.s32.totalorder %s140, 0
      %p586 = por %p584, %p585
      %s588 = sadd.s32 %s587, 1
      %p591 = scmp.eq.s32.totalorder %s134, 1
      %p592 = scmp.ne.s32.totalorder %s587, %s589
      %p593 = scmp.eq.s32.totalorder %s134, 0
      %p594 = por %p592, %p593
      %p595 = scmp.ne.s32.totalorder %s587, %s589
      %p596 = scmp.eq.s32.totalorder %s139, 1
      %p597 = por %p595, %p596
      %p598 = scmp.ne.s32.totalorder %s589, %s590
      %p599 = scmp.eq.s32.totalorder %s139, 0
      %p600 = por %p598, %p599
      %p601 = scmp.ne.s32.totalorder %s589, %s590
      %p602 = scmp.eq.s32.totalorder %s140, 1
      %p603 = por %p601, %p602
      %p605 = scmp.ne.s32.totalorder %s590, %s604
      %p606 = scmp.eq.s32.totalorder %s140, 0
      %p607 = por %p605, %p606
      %s609 = sadd.s32 %s608, 1
      %p612 = scmp.eq.s32.totalorder %s134, 1
      %p613 = scmp.ne.s32.totalorder %s608, %s610
      %p614 = scmp.eq.s32.totalorder %s134, 0
      %p615 = por %p613, %p614
      %p616 = scmp.ne.s32.totalorder %s608, %s610
      %p617 = scmp.eq.s32.totalorder %s139, 1
      %p618 = por %p616, %p617
      %p619 = scmp.ne.s32.totalorder %s610, %s611
      %p620 = scmp.eq.s32.totalorder %s139, 0
      %p621 = por %p619, %p620
      %p622 = scmp.ne.s32.totalorder %s610, %s611
      %p623 = scmp.eq.s32.totalorder %s140, 1
      %p624 = por %p622, %p623
      %p626 = scmp.ne.s32.totalorder %s611, %s625
      %p627 = scmp.eq.s32.totalorder %s140, 0
      %p628 = por %p626, %p627
      %s630 = sadd.s32 %s629, 1
      %p633 = scmp.eq.s32.totalorder %s134, 1
      %p634 = scmp.ne.s32.totalorder %s629, %s631
      %p635 = scmp.eq.s32.totalorder %s134, 0
      %p636 = por %p634, %p635
      %p637 = scmp.ne.s32.totalorder %s629, %s631
      %p638 = scmp.eq.s32.totalorder %s139, 1
      %p639 = por %p637, %p638
      %p640 = scmp.ne.s32.totalorder %s631, %s632
      %p641 = scmp.eq.s32.totalorder %s139, 0
      %p642 = por %p640, %p641
      %p643 = scmp.ne.s32.totalorder %s631, %s632
      %p644 = scmp.eq.s32.totalorder %s140, 1
      %p645 = por %p643, %p644
      %p647 = scmp.ne.s32.totalorder %s632, %s646
      %p648 = scmp.eq.s32.totalorder %s140, 0
      %p649 = por %p647, %p648
      %s651 = sadd.s32 %s650, 1
      %p654 = scmp.eq.s32.totalorder %s134, 1
      %p655 = scmp.ne.s32.totalorder %s650, %s652
      %p656 = scmp.eq.s32.totalorder %s134, 0
      %p657 = por %p655, %p656
      %p658 = scmp.ne.s32.totalorder %s650, %s652
      %p659 = scmp.eq.s32.totalorder %s139, 1
      %p660 = por %p658, %p659
      %p661 = scmp.ne.s32.totalorder %s652, %s653
      %p662 = scmp.eq.s32.totalorder %s139, 0
      %p663 = por %p661, %p662
      %p664 = scmp.ne.s32.totalorder %s652, %s653
      %p665 = scmp.eq.s32.totalorder %s140, 1
      %p666 = por %p664, %p665
      %p668 = scmp.ne.s32.totalorder %s653, %s667
      %p669 = scmp.eq.s32.totalorder %s140, 0
      %p670 = por %p668, %p669
      %s672 = sadd.s32 %s671, 1
      %p675 = scmp.eq.s32.totalorder %s134, 1
      %p676 = scmp.ne.s32.totalorder %s671, %s673
      %p677 = scmp.eq.s32.totalorder %s134, 0
      %p678 = por %p676, %p677
      %p679 = scmp.ne.s32.totalorder %s671, %s673
      %p680 = scmp.eq.s32.totalorder %s139, 1
      %p681 = por %p679, %p680
      %p682 = scmp.ne.s32.totalorder %s673, %s674
      %p683 = scmp.eq.s32.totalorder %s139, 0
      %p684 = por %p682, %p683
      %p685 = scmp.ne.s32.totalorder %s673, %s674
      %p686 = scmp.eq.s32.totalorder %s140, 1
      %p687 = por %p685, %p686
      %p689 = scmp.ne.s32.totalorder %s674, %s688
      %p690 = scmp.eq.s32.totalorder %s140, 0
      %p691 = por %p689, %p690
      %s693 = sadd.s32 %s692, 1
      %p696 = scmp.eq.s32.totalorder %s134, 1
      %p697 = scmp.ne.s32.totalorder %s692, %s694
      %p698 = scmp.eq.s32.totalorder %s134, 0
      %p699 = por %p697, %p698
      %p700 = scmp.ne.s32.totalorder %s692, %s694
      %p701 = scmp.eq.s32.totalorder %s139, 1
      %p702 = por %p700, %p701
      %p703 = scmp.ne.s32.totalorder %s694, %s695
      %p704 = scmp.eq.s32.totalorder %s139, 0
      %p705 = por %p703, %p704
      %p706 = scmp.ne.s32.totalorder %s694, %s695
      %p707 = scmp.eq.s32.totalorder %s140, 1
      %p708 = por %p706, %p707
      %p710 = scmp.ne.s32.totalorder %s695, %s709
      %p711 = scmp.eq.s32.totalorder %s140, 0
      %p712 = por %p710, %p711
      %s714 = sadd.s32 %s713, 1
      %p717 = scmp.eq.s32.totalorder %s134, 1
      %p718 = scmp.ne.s32.totalorder %s713, %s715
      %p719 = scmp.eq.s32.totalorder %s134, 0
      %p720 = por %p718, %p719
      %p721 = scmp.ne.s32.totalorder %s713, %s715
      %p722 = scmp.eq.s32.totalorder %s139, 1
      %p723 = por %p721, %p722
      %p724 = scmp.ne.s32.totalorder %s715, %s716
      %p725 = scmp.eq.s32.totalorder %s139, 0
      %p726 = por %p724, %p725
      %p727 = scmp.ne.s32.totalorder %s715, %s716
      %p728 = scmp.eq.s32.totalorder %s140, 1
      %p729 = por %p727, %p728
      %p731 = scmp.ne.s32.totalorder %s716, %s730
      %p732 = scmp.eq.s32.totalorder %s140, 0
      %p733 = por %p731, %p732
      %s735 = sadd.s32 %s734, 1
      %p738 = scmp.eq.s32.totalorder %s134, 1
      %p739 = scmp.ne.s32.totalorder %s734, %s736
      %p740 = scmp.eq.s32.totalorder %s134, 0
      %p741 = por %p739, %p740
      %p742 = scmp.ne.s32.totalorder %s734, %s736
      %p743 = scmp.eq.s32.totalorder %s139, 1
      %p744 = por %p742, %p743
      %p745 = scmp.ne.s32.totalorder %s736, %s737
      %p746 = scmp.eq.s32.totalorder %s139, 0
      %p747 = por %p745, %p746
      %p748 = scmp.ne.s32.totalorder %s736, %s737
      %p749 = scmp.eq.s32.totalorder %s140, 1
      %p750 = por %p748, %p749
      %p752 = scmp.ne.s32.totalorder %s737, %s751
      %p753 = scmp.eq.s32.totalorder %s140, 0
      %p754 = por %p752, %p753
      %s756 = sadd.s32 %s755, 1
      %p759 = scmp.eq.s32.totalorder %s134, 1
      %p760 = scmp.ne.s32.totalorder %s755, %s757
      %p761 = scmp.eq.s32.totalorder %s134, 0
      %p762 = por %p760, %p761
      %p763 = scmp.ne.s32.totalorder %s755, %s757
      %p764 = scmp.eq.s32.totalorder %s139, 1
      %p765 = por %p763, %p764
      %p766 = scmp.ne.s32.totalorder %s757, %s758
      %p767 = scmp.eq.s32.totalorder %s139, 0
      %p768 = por %p766, %p767
      %p769 = scmp.ne.s32.totalorder %s757, %s758
      %p770 = scmp.eq.s32.totalorder %s140, 1
      %p771 = por %p769, %p770
      %p773 = scmp.ne.s32.totalorder %s758, %s772
      %p774 = scmp.eq.s32.totalorder %s140, 0
      %p775 = por %p773, %p774
      %s777 = sadd.s32 %s776, 1
      %p780 = scmp.eq.s32.totalorder %s134, 1
      %p781 = scmp.ne.s32.totalorder %s776, %s778
      %p782 = scmp.eq.s32.totalorder %s134, 0
      %p783 = por %p781, %p782
      %p784 = scmp.ne.s32.totalorder %s776, %s778
      %p785 = scmp.eq.s32.totalorder %s139, 1
      %p786 = por %p784, %p785
      %p787 = scmp.ne.s32.totalorder %s778, %s779
      %p788 = scmp.eq.s32.totalorder %s139, 0
      %p789 = por %p787, %p788
      %p790 = scmp.ne.s32.totalorder %s778, %s779
      %p791 = scmp.eq.s32.totalorder %s140, 1
      %p792 = por %p790, %p791
      %p794 = scmp.ne.s32.totalorder %s779, %s793
      %p795 = scmp.eq.s32.totalorder %s140, 0
      %p796 = por %p794, %p795
      %s798 = sadd.s32 %s797, 1
      %p801 = scmp.eq.s32.totalorder %s134, 1
      %p802 = scmp.ne.s32.totalorder %s797, %s799
      %p803 = scmp.eq.s32.totalorder %s134, 0
      %p804 = por %p802, %p803
      %p805 = scmp.ne.s32.totalorder %s797, %s799
      %p806 = scmp.eq.s32.totalorder %s139, 1
      %p807 = por %p805, %p806
      %p808 = scmp.ne.s32.totalorder %s799, %s800
      %p809 = scmp.eq.s32.totalorder %s139, 0
      %p810 = por %p808, %p809
      %p811 = scmp.ne.s32.totalorder %s799, %s800
      %p812 = scmp.eq.s32.totalorder %s140, 1
      %p813 = por %p811, %p812
      %p815 = scmp.ne.s32.totalorder %s800, %s814
      %p816 = scmp.eq.s32.totalorder %s140, 0
      %p817 = por %p815, %p816
      %s819 = sadd.s32 %s818, 1
      %p822 = scmp.eq.s32.totalorder %s134, 1
      %p823 = scmp.ne.s32.totalorder %s818, %s820
      %p824 = scmp.eq.s32.totalorder %s134, 0
      %p825 = por %p823, %p824
      %p826 = scmp.ne.s32.totalorder %s818, %s820
      %p827 = scmp.eq.s32.totalorder %s139, 1
      %p828 = por %p826, %p827
      %p829 = scmp.ne.s32.totalorder %s820, %s821
      %p830 = scmp.eq.s32.totalorder %s139, 0
      %p831 = por %p829, %p830
      %p832 = scmp.ne.s32.totalorder %s820, %s821
      %p833 = scmp.eq.s32.totalorder %s140, 1
      %p834 = por %p832, %p833
      %p836 = scmp.ne.s32.totalorder %s821, %s835
      %p837 = scmp.eq.s32.totalorder %s140, 0
      %p838 = por %p836, %p837
      %s840 = sadd.s32 %s839, 1
      %p843 = scmp.eq.s32.totalorder %s134, 1
      %p844 = scmp.ne.s32.totalorder %s839, %s841
      %p845 = scmp.eq.s32.totalorder %s134, 0
      %p846 = por %p844, %p845
      %p847 = scmp.ne.s32.totalorder %s839, %s841
      %p848 = scmp.eq.s32.totalorder %s139, 1
      %p849 = por %p847, %p848
      %p850 = scmp.ne.s32.totalorder %s841, %s842
      %p851 = scmp.eq.s32.totalorder %s139, 0
      %p852 = por %p850, %p851
      %p853 = scmp.ne.s32.totalorder %s841, %s842
      %p854 = scmp.eq.s32.totalorder %s140, 1
      %p855 = por %p853, %p854
      %p857 = scmp.ne.s32.totalorder %s842, %s856
      %p858 = scmp.eq.s32.totalorder %s140, 0
      %p859 = por %p857, %p858
      %s861 = sadd.s32 %s860, 1
      %p864 = scmp.eq.s32.totalorder %s134, 1
      %p865 = scmp.ne.s32.totalorder %s860, %s862
      %p866 = scmp.eq.s32.totalorder %s134, 0
      %p867 = por %p865, %p866
      %p868 = scmp.ne.s32.totalorder %s860, %s862
      %p869 = scmp.eq.s32.totalorder %s139, 1
      %p870 = por %p868, %p869
      %p871 = scmp.ne.s32.totalorder %s862, %s863
      %p872 = scmp.eq.s32.totalorder %s139, 0
      %p873 = por %p871, %p872
      %p874 = scmp.ne.s32.totalorder %s862, %s863
      %p875 = scmp.eq.s32.totalorder %s140, 1
      %p876 = por %p874, %p875
      %p878 = scmp.ne.s32.totalorder %s863, %s877
      %p879 = scmp.eq.s32.totalorder %s140, 0
      %p880 = por %p878, %p879
      %s882 = sadd.s32 %s881, 1
      %p885 = scmp.eq.s32.totalorder %s134, 1
      %p886 = scmp.ne.s32.totalorder %s881, %s883
      %p887 = scmp.eq.s32.totalorder %s134, 0
      %p888 = por %p886, %p887
      %p889 = scmp.ne.s32.totalorder %s881, %s883
      %p890 = scmp.eq.s32.totalorder %s139, 1
      %p891 = por %p889, %p890
      %p892 = scmp.ne.s32.totalorder %s883, %s884
      %p893 = scmp.eq.s32.totalorder %s139, 0
      %p894 = por %p892, %p893
      %p895 = scmp.ne.s32.totalorder %s883, %s884
      %p896 = scmp.eq.s32.totalorder %s140, 1
      %p897 = por %p895, %p896
      %p899 = scmp.ne.s32.totalorder %s884, %s898
      %p900 = scmp.eq.s32.totalorder %s140, 0
      %p901 = por %p899, %p900
      %s903 = sadd.s32 %s902, 1
      %p906 = scmp.eq.s32.totalorder %s134, 1
      %p907 = scmp.ne.s32.totalorder %s902, %s904
      %p908 = scmp.eq.s32.totalorder %s134, 0
      %p909 = por %p907, %p908
      %p910 = scmp.ne.s32.totalorder %s902, %s904
      %p911 = scmp.eq.s32.totalorder %s139, 1
      %p912 = por %p910, %p911
      %p913 = scmp.ne.s32.totalorder %s904, %s905
      %p914 = scmp.eq.s32.totalorder %s139, 0
      %p915 = por %p913, %p914
      %p916 = scmp.ne.s32.totalorder %s904, %s905
      %p917 = scmp.eq.s32.totalorder %s140, 1
      %p918 = por %p916, %p917
      %p920 = scmp.ne.s32.totalorder %s905, %s919
      %p921 = scmp.eq.s32.totalorder %s140, 0
      %p922 = por %p920, %p921
      %s924 = sadd.s32 %s923, 1
      %p927 = scmp.eq.s32.totalorder %s134, 1
      %p928 = scmp.ne.s32.totalorder %s923, %s925
      %p929 = scmp.eq.s32.totalorder %s134, 0
      %p930 = por %p928, %p929
      %p931 = scmp.ne.s32.totalorder %s923, %s925
      %p932 = scmp.eq.s32.totalorder %s139, 1
      %p933 = por %p931, %p932
      %p934 = scmp.ne.s32.totalorder %s925, %s926
      %p935 = scmp.eq.s32.totalorder %s139, 0
      %p936 = por %p934, %p935
      %p937 = scmp.ne.s32.totalorder %s925, %s926
      %p938 = scmp.eq.s32.totalorder %s140, 1
      %p939 = por %p937, %p938
      %p941 = scmp.ne.s32.totalorder %s926, %s940
      %p942 = scmp.eq.s32.totalorder %s140, 0
      %p943 = por %p941, %p942
      %s945 = sadd.s32 %s944, 1
      %p948 = scmp.eq.s32.totalorder %s134, 1
      %p949 = scmp.ne.s32.totalorder %s944, %s946
      %p950 = scmp.eq.s32.totalorder %s134, 0
      %p951 = por %p949, %p950
      %p952 = scmp.ne.s32.totalorder %s944, %s946
      %p953 = scmp.eq.s32.totalorder %s139, 1
      %p954 = por %p952, %p953
      %p955 = scmp.ne.s32.totalorder %s946, %s947
      %p956 = scmp.eq.s32.totalorder %s139, 0
      %p957 = por %p955, %p956
      %p958 = scmp.ne.s32.totalorder %s946, %s947
      %p959 = scmp.eq.s32.totalorder %s140, 1
      %p960 = por %p958, %p959
      %p962 = scmp.ne.s32.totalorder %s947, %s961
      %p963 = scmp.eq.s32.totalorder %s140, 0
      %p964 = por %p962, %p963
      %s966 = sadd.s32 %s965, 1
      %p969 = scmp.eq.s32.totalorder %s134, 1
      %p970 = scmp.ne.s32.totalorder %s965, %s967
      %p971 = scmp.eq.s32.totalorder %s134, 0
      %p972 = por %p970, %p971
      %p973 = scmp.ne.s32.totalorder %s965, %s967
      %p974 = scmp.eq.s32.totalorder %s139, 1
      %p975 = por %p973, %p974
      %p976 = scmp.ne.s32.totalorder %s967, %s968
      %p977 = scmp.eq.s32.totalorder %s139, 0
      %p978 = por %p976, %p977
      %p979 = scmp.ne.s32.totalorder %s967, %s968
      %p980 = scmp.eq.s32.totalorder %s140, 1
      %p981 = por %p979, %p980
      %p983 = scmp.ne.s32.totalorder %s968, %s982
      %p984 = scmp.eq.s32.totalorder %s140, 0
      %p985 = por %p983, %p984
      %s987 = sadd.s32 %s986, 1
      %p990 = scmp.eq.s32.totalorder %s134, 1
      %p991 = scmp.ne.s32.totalorder %s986, %s988
      %p992 = scmp.eq.s32.totalorder %s134, 0
      %p993 = por %p991, %p992
      %p994 = scmp.ne.s32.totalorder %s986, %s988
      %p995 = scmp.eq.s32.totalorder %s139, 1
      %p996 = por %p994, %p995
      %p997 = scmp.ne.s32.totalorder %s988, %s989
      %p998 = scmp.eq.s32.totalorder %s139, 0
      %p999 = por %p997, %p998
      %p1000 = scmp.ne.s32.totalorder %s988, %s989
      %p1001 = scmp.eq.s32.totalorder %s140, 1
      %p1002 = por %p1000, %p1001
      %p1004 = scmp.ne.s32.totalorder %s989, %s1003
      %p1005 = scmp.eq.s32.totalorder %s140, 0
      %p1006 = por %p1004, %p1005
      %s1008 = sadd.s32 %s1007, 1
      %p1011 = scmp.eq.s32.totalorder %s134, 1
      %p1012 = scmp.ne.s32.totalorder %s1007, %s1009
      %p1013 = scmp.eq.s32.totalorder %s134, 0
      %p1014 = por %p1012, %p1013
      %p1015 = scmp.ne.s32.totalorder %s1007, %s1009
      %p1016 = scmp.eq.s32.totalorder %s139, 1
      %p1017 = por %p1015, %p1016
      %p1018 = scmp.ne.s32.totalorder %s1009, %s1010
      %p1019 = scmp.eq.s32.totalorder %s139, 0
      %p1020 = por %p1018, %p1019
      %p1021 = scmp.ne.s32.totalorder %s1009, %s1010
      %p1022 = scmp.eq.s32.totalorder %s140, 1
      %p1023 = por %p1021, %p1022
      %p1025 = scmp.ne.s32.totalorder %s1010, %s1024
      %p1026 = scmp.eq.s32.totalorder %s140, 0
      %p1027 = por %p1025, %p1026
      %s1029 = sadd.s32 %s1028, 1
      %p1032 = scmp.eq.s32.totalorder %s134, 1
      %p1033 = scmp.ne.s32.totalorder %s1028, %s1030
      %p1034 = scmp.eq.s32.totalorder %s134, 0
      %p1035 = por %p1033, %p1034
      %p1036 = scmp.ne.s32.totalorder %s1028, %s1030
      %p1037 = scmp.eq.s32.totalorder %s139, 1
      %p1038 = por %p1036, %p1037
      %p1039 = scmp.ne.s32.totalorder %s1030, %s1031
      %p1040 = scmp.eq.s32.totalorder %s139, 0
      %p1041 = por %p1039, %p1040
      %p1042 = scmp.ne.s32.totalorder %s1030, %s1031
      %p1043 = scmp.eq.s32.totalorder %s140, 1
      %p1044 = por %p1042, %p1043
      %p1046 = scmp.ne.s32.totalorder %s1031, %s1045
      %p1047 = scmp.eq.s32.totalorder %s140, 0
      %p1048 = por %p1046, %p1047
      %s1050 = sadd.s32 %s1049, 1
      %p1053 = scmp.eq.s32.totalorder %s134, 1
      %p1054 = scmp.ne.s32.totalorder %s1049, %s1051
      %p1055 = scmp.eq.s32.totalorder %s134, 0
      %p1056 = por %p1054, %p1055
      %p1057 = scmp.ne.s32.totalorder %s1049, %s1051
      %p1058 = scmp.eq.s32.totalorder %s139, 1
      %p1059 = por %p1057, %p1058
      %p1060 = scmp.ne.s32.totalorder %s1051, %s1052
      %p1061 = scmp.eq.s32.totalorder %s139, 0
      %p1062 = por %p1060, %p1061
      %p1063 = scmp.ne.s32.totalorder %s1051, %s1052
      %p1064 = scmp.eq.s32.totalorder %s140, 1
      %p1065 = por %p1063, %p1064
      %p1067 = scmp.ne.s32.totalorder %s1052, %s1066
      %p1068 = scmp.eq.s32.totalorder %s140, 0
      %p1069 = por %p1067, %p1068
      %s1071 = sadd.s32 %s1070, 1
      %p1074 = scmp.eq.s32.totalorder %s134, 1
      %p1075 = scmp.ne.s32.totalorder %s1070, %s1072
      %p1076 = scmp.eq.s32.totalorder %s134, 0
      %p1077 = por %p1075, %p1076
      %p1078 = scmp.ne.s32.totalorder %s1070, %s1072
      %p1079 = scmp.eq.s32.totalorder %s139, 1
      %p1080 = por %p1078, %p1079
      %p1081 = scmp.ne.s32.totalorder %s1072, %s1073
      %p1082 = scmp.eq.s32.totalorder %s139, 0
      %p1083 = por %p1081, %p1082
      %p1084 = scmp.ne.s32.totalorder %s1072, %s1073
      %p1085 = scmp.eq.s32.totalorder %s140, 1
      %p1086 = por %p1084, %p1085
      %p1088 = scmp.ne.s32.totalorder %s1073, %s1087
      %p1089 = scmp.eq.s32.totalorder %s140, 0
      %p1090 = por %p1088, %p1089
      %s1092 = sadd.s32 %s1091, 1
      %p1095 = scmp.eq.s32.totalorder %s134, 1
      %p1096 = scmp.ne.s32.totalorder %s1091, %s1093
      %p1097 = scmp.eq.s32.totalorder %s134, 0
      %p1098 = por %p1096, %p1097
      %p1099 = scmp.ne.s32.totalorder %s1091, %s1093
      %p1100 = scmp.eq.s32.totalorder %s139, 1
      %p1101 = por %p1099, %p1100
      %p1102 = scmp.ne.s32.totalorder %s1093, %s1094
      %p1103 = scmp.eq.s32.totalorder %s139, 0
      %p1104 = por %p1102, %p1103
      %p1105 = scmp.ne.s32.totalorder %s1093, %s1094
      %p1106 = scmp.eq.s32.totalorder %s140, 1
      %p1107 = por %p1105, %p1106
      %p1109 = scmp.ne.s32.totalorder %s1094, %s1108
      %p1110 = scmp.eq.s32.totalorder %s140, 0
      %p1111 = por %p1109, %p1110
      %s1113 = sadd.s32 %s1112, 1
      %p1116 = scmp.eq.s32.totalorder %s134, 1
      %p1117 = scmp.ne.s32.totalorder %s1112, %s1114
      %p1118 = scmp.eq.s32.totalorder %s134, 0
      %p1119 = por %p1117, %p1118
      %p1120 = scmp.ne.s32.totalorder %s1112, %s1114
      %p1121 = scmp.eq.s32.totalorder %s139, 1
      %p1122 = por %p1120, %p1121
      %p1123 = scmp.ne.s32.totalorder %s1114, %s1115
      %p1124 = scmp.eq.s32.totalorder %s139, 0
      %p1125 = por %p1123, %p1124
      %p1126 = scmp.ne.s32.totalorder %s1114, %s1115
      %p1127 = scmp.eq.s32.totalorder %s140, 1
      %p1128 = por %p1126, %p1127
      %p1130 = scmp.ne.s32.totalorder %s1115, %s1129
      %p1131 = scmp.eq.s32.totalorder %s140, 0
      %p1132 = por %p1130, %p1131
      %s1134 = sadd.s32 %s1133, 1
      %p1137 = scmp.eq.s32.totalorder %s134, 1
      %p1138 = scmp.ne.s32.totalorder %s1133, %s1135
      %p1139 = scmp.eq.s32.totalorder %s134, 0
      %p1140 = por %p1138, %p1139
      %p1141 = scmp.ne.s32.totalorder %s1133, %s1135
      %p1142 = scmp.eq.s32.totalorder %s139, 1
      %p1143 = por %p1141, %p1142
      %p1144 = scmp.ne.s32.totalorder %s1135, %s1136
      %p1145 = scmp.eq.s32.totalorder %s139, 0
      %p1146 = por %p1144, %p1145
      %p1147 = scmp.ne.s32.totalorder %s1135, %s1136
      %p1148 = scmp.eq.s32.totalorder %s140, 1
      %p1149 = por %p1147, %p1148
      %p1151 = scmp.ne.s32.totalorder %s1136, %s1150
      %p1152 = scmp.eq.s32.totalorder %s140, 0
      %p1153 = por %p1151, %p1152
      %s1155 = sadd.s32 %s1154, 1
      %p1158 = scmp.eq.s32.totalorder %s134, 1
      %p1159 = scmp.ne.s32.totalorder %s1154, %s1156
      %p1160 = scmp.eq.s32.totalorder %s134, 0
      %p1161 = por %p1159, %p1160
      %p1162 = scmp.ne.s32.totalorder %s1154, %s1156
      %p1163 = scmp.eq.s32.totalorder %s139, 1
      %p1164 = por %p1162, %p1163
      %p1165 = scmp.ne.s32.totalorder %s1156, %s1157
      %p1166 = scmp.eq.s32.totalorder %s139, 0
      %p1167 = por %p1165, %p1166
      %p1168 = scmp.ne.s32.totalorder %s1156, %s1157
      %p1169 = scmp.eq.s32.totalorder %s140, 1
      %p1170 = por %p1168, %p1169
      %p1172 = scmp.ne.s32.totalorder %s1157, %s1171
      %p1173 = scmp.eq.s32.totalorder %s140, 0
      %p1174 = por %p1172, %p1173
      %s1176 = sadd.s32 %s1175, 1
      %p1179 = scmp.eq.s32.totalorder %s134, 1
      %p1180 = scmp.ne.s32.totalorder %s1175, %s1177
      %p1181 = scmp.eq.s32.totalorder %s134, 0
      %p1182 = por %p1180, %p1181
      %p1183 = scmp.ne.s32.totalorder %s1175, %s1177
      %p1184 = scmp.eq.s32.totalorder %s139, 1
      %p1185 = por %p1183, %p1184
      %p1186 = scmp.ne.s32.totalorder %s1177, %s1178
      %p1187 = scmp.eq.s32.totalorder %s139, 0
      %p1188 = por %p1186, %p1187
      %p1189 = scmp.ne.s32.totalorder %s1177, %s1178
      %p1190 = scmp.eq.s32.totalorder %s140, 1
      %p1191 = por %p1189, %p1190
      %p1193 = scmp.ne.s32.totalorder %s1178, %s1192
      %p1194 = scmp.eq.s32.totalorder %s140, 0
      %p1195 = por %p1193, %p1194
      %s1197 = sadd.s32 %s1196, 1
      %p1200 = scmp.eq.s32.totalorder %s134, 1
      %p1201 = scmp.ne.s32.totalorder %s1196, %s1198
      %p1202 = scmp.eq.s32.totalorder %s134, 0
      %p1203 = por %p1201, %p1202
      %p1204 = scmp.ne.s32.totalorder %s1196, %s1198
      %p1205 = scmp.eq.s32.totalorder %s139, 1
      %p1206 = por %p1204, %p1205
      %p1207 = scmp.ne.s32.totalorder %s1198, %s1199
      %p1208 = scmp.eq.s32.totalorder %s139, 0
      %p1209 = por %p1207, %p1208
      %p1210 = scmp.ne.s32.totalorder %s1198, %s1199
      %p1211 = scmp.eq.s32.totalorder %s140, 1
      %p1212 = por %p1210, %p1211
      %p1214 = scmp.ne.s32.totalorder %s1199, %s1213
      %p1215 = scmp.eq.s32.totalorder %s140, 0
      %p1216 = por %p1214, %p1215
      %s1218 = sadd.s32 %s1217, 1
      %p1221 = scmp.eq.s32.totalorder %s134, 1
      %p1222 = scmp.ne.s32.totalorder %s1217, %s1219
      %p1223 = scmp.eq.s32.totalorder %s134, 0
      %p1224 = por %p1222, %p1223
      %p1225 = scmp.ne.s32.totalorder %s1217, %s1219
      %p1226 = scmp.eq.s32.totalorder %s139, 1
      %p1227 = por %p1225, %p1226
      %p1228 = scmp.ne.s32.totalorder %s1219, %s1220
      %p1229 = scmp.eq.s32.totalorder %s139, 0
      %p1230 = por %p1228, %p1229
      %p1231 = scmp.ne.s32.totalorder %s1219, %s1220
      %p1232 = scmp.eq.s32.totalorder %s140, 1
      %p1233 = por %p1231, %p1232
      %p1235 = scmp.ne.s32.totalorder %s1220, %s1234
      %p1236 = scmp.eq.s32.totalorder %s140, 0
      %p1237 = por %p1235, %p1236
      %s1239 = sadd.s32 %s1238, 1
      %p1242 = scmp.eq.s32.totalorder %s134, 1
      %p1243 = scmp.ne.s32.totalorder %s1238, %s1240
      %p1244 = scmp.eq.s32.totalorder %s134, 0
      %p1245 = por %p1243, %p1244
      %p1246 = scmp.ne.s32.totalorder %s1238, %s1240
      %p1247 = scmp.eq.s32.totalorder %s139, 1
      %p1248 = por %p1246, %p1247
      %p1249 = scmp.ne.s32.totalorder %s1240, %s1241
      %p1250 = scmp.eq.s32.totalorder %s139, 0
      %p1251 = por %p1249, %p1250
      %p1252 = scmp.ne.s32.totalorder %s1240, %s1241
      %p1253 = scmp.eq.s32.totalorder %s140, 1
      %p1254 = por %p1252, %p1253
      %p1256 = scmp.ne.s32.totalorder %s1241, %s1255
      %p1257 = scmp.eq.s32.totalorder %s140, 0
      %p1258 = por %p1256, %p1257
      %s1260 = sadd.s32 %s1259, 1
      %p1263 = scmp.eq.s32.totalorder %s134, 1
      %p1264 = scmp.ne.s32.totalorder %s1259, %s1261
      %p1265 = scmp.eq.s32.totalorder %s134, 0
      %p1266 = por %p1264, %p1265
      %p1267 = scmp.ne.s32.totalorder %s1259, %s1261
      %p1268 = scmp.eq.s32.totalorder %s139, 1
      %p1269 = por %p1267, %p1268
      %p1270 = scmp.ne.s32.totalorder %s1261, %s1262
      %p1271 = scmp.eq.s32.totalorder %s139, 0
      %p1272 = por %p1270, %p1271
      %p1273 = scmp.ne.s32.totalorder %s1261, %s1262
      %p1274 = scmp.eq.s32.totalorder %s140, 1
      %p1275 = por %p1273, %p1274
      %p1277 = scmp.ne.s32.totalorder %s1262, %s1276
      %p1278 = scmp.eq.s32.totalorder %s140, 0
      %p1279 = por %p1277, %p1278
      %s1281 = sadd.s32 %s1280, 1
      %p1284 = scmp.eq.s32.totalorder %s134, 1
      %p1285 = scmp.ne.s32.totalorder %s1280, %s1282
      %p1286 = scmp.eq.s32.totalorder %s134, 0
      %p1287 = por %p1285, %p1286
      %p1288 = scmp.ne.s32.totalorder %s1280, %s1282
      %p1289 = scmp.eq.s32.totalorder %s139, 1
      %p1290 = por %p1288, %p1289
      %p1291 = scmp.ne.s32.totalorder %s1282, %s1283
      %p1292 = scmp.eq.s32.totalorder %s139, 0
      %p1293 = por %p1291, %p1292
      %p1294 = scmp.ne.s32.totalorder %s1282, %s1283
      %p1295 = scmp.eq.s32.totalorder %s140, 1
      %p1296 = por %p1294, %p1295
      %p1298 = scmp.ne.s32.totalorder %s1283, %s1297
      %p1299 = scmp.eq.s32.totalorder %s140, 0
      %p1300 = por %p1298, %p1299
      %s1302 = sadd.s32 %s1301, 1
      %p1305 = scmp.eq.s32.totalorder %s134, 1
      %p1306 = scmp.ne.s32.totalorder %s1301, %s1303
      %p1307 = scmp.eq.s32.totalorder %s134, 0
      %p1308 = por %p1306, %p1307
      %p1309 = scmp.ne.s32.totalorder %s1301, %s1303
      %p1310 = scmp.eq.s32.totalorder %s139, 1
      %p1311 = por %p1309, %p1310
      %p1312 = scmp.ne.s32.totalorder %s1303, %s1304
      %p1313 = scmp.eq.s32.totalorder %s139, 0
      %p1314 = por %p1312, %p1313
      %p1315 = scmp.ne.s32.totalorder %s1303, %s1304
      %p1316 = scmp.eq.s32.totalorder %s140, 1
      %p1317 = por %p1315, %p1316
      %p1319 = scmp.ne.s32.totalorder %s1304, %s1318
      %p1320 = scmp.eq.s32.totalorder %s140, 0
      %p1321 = por %p1319, %p1320
      %p1322 = scmp.le.s32.totalorder 1, %s134
      %p1323 = scmp.lt.s32.totalorder %s134, 3
      %p1324 = pnand %p1322, %p1323
      %p1325 = pneg %p1324
      // Predicated region
      $region9: #{tpu_custom_call.1} parent=5 // pred_check
        _
      $region10: #{tpu_custom_call.1} parent=5 // pred_check_branch
        %1327 = sbr.rel (%p1324) target = $region12
      $region11: #{tpu_custom_call.1} parent=5 // pred_region
        %s1328 = ssub.s32 %s134, 1
        // Predicated region
        $region13: #{tpu_custom_call.1} parent=11 // pred_check
          %p1329 = pneg %p285
        $region14: #{tpu_custom_call.1} parent=11 // pred_check_branch
          %1331 = sbr.rel (%p1329) target = $region16
        $region15: #{tpu_custom_call.1} parent=11 // pred_region
          _
        $region16: #{tpu_custom_call.1} parent=11 // pred_fallthru
          _
        // Predicated region
        $region17: #{tpu_custom_call.1} parent=11 // pred_check
          %p1332 = pneg %p306
        $region18: #{tpu_custom_call.1} parent=11 // pred_check_branch
          %1334 = sbr.rel (%p1332) target = $region20
        $region19: #{tpu_custom_call.1} parent=11 // pred_region
          _
        $region20: #{tpu_custom_call.1} parent=11 // pred_fallthru
          _
        // Predicated region
        $region21: #{tpu_custom_call.1} parent=11 // pred_check
          %p1335 = pneg %p327
        $region22: #{tpu_custom_call.1} parent=11 // pred_check_branch
          %1337 = sbr.rel (%p1335) target = $region24
        $region23: #{tpu_custom_call.1} parent=11 // pred_region
          _
        $region24: #{tpu_custom_call.1} parent=11 // pred_fallthru
          _
        // Predicated region
        $region25: #{tpu_custom_call.1} parent=11 // pred_check
          %p1338 = pneg %p348
        $region26: #{tpu_custom_call.1} parent=11 // pred_check_branch
          %1340 = sbr.rel (%p1338) target = $region28
        $region27: #{tpu_custom_call.1} parent=11 // pred_region
          _
        $region28: #{tpu_custom_call.1} parent=11 // pred_fallthru
          _
        // Predicated region
        $region29: #{tpu_custom_call.1} parent=11 // pred_check
          %p1341 = pneg %p369
        $region30: #{tpu_custom_call.1} parent=11 // pred_check_branch
          %1343 = sbr.rel (%p1341) target = $region32
        $region31: #{tpu_custom_call.1} parent=11 // pred_region
          _
        $region32: #{tpu_custom_call.1} parent=11 // pred_fallthru
          _
        // Predicated region
        $region33: #{tpu_custom_call.1} parent=11 // pred_check
          %p1344 = pneg %p390
        $region34: #{tpu_custom_call.1} parent=11 // pred_check_branch
          %1346 = sbr.rel (%p1344) target = $region36
        $region35: #{tpu_custom_call.1} parent=11 // pred_region
          %1348 = vsyncadd [#allocation7], 0
          %s1349 = sshll.u32 %s21, 4
          %s1350 = int_to_ptr.hbm [resolvable:$true] %s1349
          %s1351 = sshll.u32 [#allocation6], 4
          %s1352 = int_to_ptr.vmem [resolvable:$true] %s1351
          %1357 = dma.hbm_to_vmem [thread:$0]  %s1350, 256, %s1352, [#allocation7], 128, 128, 8
        $region36: #{tpu_custom_call.1} parent=11 // pred_fallthru
          _
        // Predicated region
        $region37: #{tpu_custom_call.1} parent=11 // pred_check
          %p1358 = pneg %p411
        $region38: #{tpu_custom_call.1} parent=11 // pred_check_branch
          %1360 = sbr.rel (%p1358) target = $region40
        $region39: #{tpu_custom_call.1} parent=11 // pred_region
          %1362 = vsyncadd [#allocation10], 0
          %s1363 = sshll.u32 %s23, 4
          %s1364 = int_to_ptr.hbm [resolvable:$true] %s1363
          %s1365 = sshll.u32 [#allocation9], 4
          %s1366 = int_to_ptr.vmem [resolvable:$true] %s1365
          %1371 = dma.hbm_to_vmem [thread:$0]  %s1364, 256, %s1366, [#allocation10], 128, 128, 8
        $region40: #{tpu_custom_call.1} parent=11 // pred_fallthru
          _
        // Predicated region
        $region41: #{tpu_custom_call.1} parent=11 // pred_check
          %p1372 = pneg %p432
        $region42: #{tpu_custom_call.1} parent=11 // pred_check_branch
          %1374 = sbr.rel (%p1372) target = $region44
        $region43: #{tpu_custom_call.1} parent=11 // pred_region
          _
        $region44: #{tpu_custom_call.1} parent=11 // pred_fallthru
          _
        // Predicated region
        $region45: #{tpu_custom_call.1} parent=11 // pred_check
          %p1375 = pneg %p453
        $region46: #{tpu_custom_call.1} parent=11 // pred_check_branch
          %1377 = sbr.rel (%p1375) target = $region48
        $region47: #{tpu_custom_call.1} parent=11 // pred_region
          _
        $region48: #{tpu_custom_call.1} parent=11 // pred_fallthru
          _
        // Predicated region
        $region49: #{tpu_custom_call.1} parent=11 // pred_check
          %p1378 = pneg %p474
        $region50: #{tpu_custom_call.1} parent=11 // pred_check_branch
          %1380 = sbr.rel (%p1378) target = $region52
        $region51: #{tpu_custom_call.1} parent=11 // pred_region
          %1382 = vsyncadd [#allocation10], 0
          %s1384 = sshll.u32 %s29, 4
          %s1385 = int_to_ptr.hbm [resolvable:$true] %s1384
          %s1386 = sshll.u32 [#allocation11], 4
          %s1387 = int_to_ptr.vmem [resolvable:$true] %s1386
          %1389 = dma.hbm_to_vmem [thread:$0]  %s1385, 16, %s1387, [#allocation10]
        $region52: #{tpu_custom_call.1} parent=11 // pred_fallthru
          _
        // Predicated region
        $region53: #{tpu_custom_call.1} parent=11 // pred_check
          %p1390 = pneg %p495
        $region54: #{tpu_custom_call.1} parent=11 // pred_check_branch
          %1392 = sbr.rel (%p1390) target = $region56
        $region55: #{tpu_custom_call.1} parent=11 // pred_region
          %1394 = vsyncadd [#allocation13], 0
          %s1395 = sshll.u32 %s31, 4
          %s1396 = int_to_ptr.hbm [resolvable:$true] %s1395
          %s1397 = sshll.u32 [#allocation12], 4
          %s1398 = int_to_ptr.vmem [resolvable:$true] %s1397
          %1403 = dma.hbm_to_vmem [thread:$0]  %s1396, 256, %s1398, [#allocation13], 128, 128, 8
        $region56: #{tpu_custom_call.1} parent=11 // pred_fallthru
          _
        // Predicated region
        $region57: #{tpu_custom_call.1} parent=11 // pred_check
          %p1404 = pneg %p516
        $region58: #{tpu_custom_call.1} parent=11 // pred_check_branch
          %1406 = sbr.rel (%p1404) target = $region60
        $region59: #{tpu_custom_call.1} parent=11 // pred_region
          _
        $region60: #{tpu_custom_call.1} parent=11 // pred_fallthru
          _
        // Predicated region
        $region61: #{tpu_custom_call.1} parent=11 // pred_check
          %p1407 = pneg %p537
        $region62: #{tpu_custom_call.1} parent=11 // pred_check_branch
          %1409 = sbr.rel (%p1407) target = $region64
        $region63: #{tpu_custom_call.1} parent=11 // pred_region
          %1411 = vsyncadd [#allocation13], 0
          %s1412 = sshll.u32 %s35, 4
          %s1413 = int_to_ptr.hbm [resolvable:$true] %s1412
          %s1414 = sshll.u32 [#allocation14], 4
          %s1415 = int_to_ptr.vmem [resolvable:$true] %s1414
          %1420 = dma.hbm_to_vmem [thread:$0]  %s1413, 256, %s1415, [#allocation13], 128, 128, 8
        $region64: #{tpu_custom_call.1} parent=11 // pred_fallthru
          _
        // Predicated region
        $region65: #{tpu_custom_call.1} parent=11 // pred_check
          %p1421 = pneg %p558
        $region66: #{tpu_custom_call.1} parent=11 // pred_check_branch
          %1423 = sbr.rel (%p1421) target = $region68
        $region67: #{tpu_custom_call.1} parent=11 // pred_region
          %1425 = vsyncadd [#allocation16], 0
          %s1426 = sshll.u32 %s37, 4
          %s1427 = int_to_ptr.hbm [resolvable:$true] %s1426
          %s1428 = sshll.u32 [#allocation15], 4
          %s1429 = int_to_ptr.vmem [resolvable:$true] %s1428
          %1434 = dma.hbm_to_vmem [thread:$0]  %s1427, 256, %s1429, [#allocation16], 128, 128, 8
        $region68: #{tpu_custom_call.1} parent=11 // pred_fallthru
          _
        // Predicated region
        $region69: #{tpu_custom_call.1} parent=11 // pred_check
          %p1435 = pneg %p579
        $region70: #{tpu_custom_call.1} parent=11 // pred_check_branch
          %1437 = sbr.rel (%p1435) target = $region72
        $region71: #{tpu_custom_call.1} parent=11 // pred_region
          %1439 = vsyncadd [#allocation16], 0
          %s1440 = sshll.u32 %s39, 4
          %s1441 = int_to_ptr.hbm [resolvable:$true] %s1440
          %s1442 = sshll.u32 [#allocation17], 4
          %s1443 = int_to_ptr.vmem [resolvable:$true] %s1442
          %1448 = dma.hbm_to_vmem [thread:$0]  %s1441, 256, %s1443, [#allocation16], 128, 128, 8
        $region72: #{tpu_custom_call.1} parent=11 // pred_fallthru
          _
        // Predicated region
        $region73: #{tpu_custom_call.1} parent=11 // pred_check
          %p1449 = pneg %p600
        $region74: #{tpu_custom_call.1} parent=11 // pred_check_branch
          %1451 = sbr.rel (%p1449) target = $region76
        $region75: #{tpu_custom_call.1} parent=11 // pred_region
          %1453 = vsyncadd [#allocation19], 0
          %s1455 = sshll.u32 %s41, 4
          %s1456 = int_to_ptr.hbm [resolvable:$true] %s1455
          %s1457 = sshll.u32 [#allocation18], 4
          %s1458 = int_to_ptr.vmem [resolvable:$true] %s1457
          %1460 = dma.hbm_to_vmem [thread:$0]  %s1456, 16, %s1458, [#allocation19]
        $region76: #{tpu_custom_call.1} parent=11 // pred_fallthru
          _
        // Predicated region
        $region77: #{tpu_custom_call.1} parent=11 // pred_check
          %p1461 = pneg %p621
        $region78: #{tpu_custom_call.1} parent=11 // pred_check_branch
          %1463 = sbr.rel (%p1461) target = $region80
        $region79: #{tpu_custom_call.1} parent=11 // pred_region
          %1465 = vsyncadd [#allocation19], 0
          %s1466 = sshll.u32 %s43, 4
          %s1467 = int_to_ptr.hbm [resolvable:$true] %s1466
          %s1468 = sshll.u32 [#allocation20], 4
          %s1469 = int_to_ptr.vmem [resolvable:$true] %s1468
          %1474 = dma.hbm_to_vmem [thread:$0]  %s1467, 256, %s1469, [#allocation19], 128, 128, 8
        $region80: #{tpu_custom_call.1} parent=11 // pred_fallthru
          _
        // Predicated region
        $region81: #{tpu_custom_call.1} parent=11 // pred_check
          %p1475 = pneg %p642
        $region82: #{tpu_custom_call.1} parent=11 // pred_check_branch
          %1477 = sbr.rel (%p1475) target = $region84
        $region83: #{tpu_custom_call.1} parent=11 // pred_region
          %1479 = vsyncadd [#allocation22], 0
          %s1480 = sshll.u32 %s45, 4
          %s1481 = int_to_ptr.hbm [resolvable:$true] %s1480
          %s1482 = sshll.u32 [#allocation21], 4
          %s1483 = int_to_ptr.vmem [resolvable:$true] %s1482
          %1488 = dma.hbm_to_vmem [thread:$0]  %s1481, 256, %s1483, [#allocation22], 128, 128, 8
        $region84: #{tpu_custom_call.1} parent=11 // pred_fallthru
          _
        // Predicated region
        $region85: #{tpu_custom_call.1} parent=11 // pred_check
          %p1489 = pneg %p663
        $region86: #{tpu_custom_call.1} parent=11 // pred_check_branch
          %1491 = sbr.rel (%p1489) target = $region88
        $region87: #{tpu_custom_call.1} parent=11 // pred_region
          %1493 = vsyncadd [#allocation22], 0
          %s1495 = sshll.u32 %s47, 4
          %s1496 = int_to_ptr.hbm [resolvable:$true] %s1495
          %s1497 = sshll.u32 [#allocation23], 4
          %s1498 = int_to_ptr.vmem [resolvable:$true] %s1497
          %1500 = dma.hbm_to_vmem [thread:$0]  %s1496, 16, %s1498, [#allocation22]
        $region88: #{tpu_custom_call.1} parent=11 // pred_fallthru
          _
        // Predicated region
        $region89: #{tpu_custom_call.1} parent=11 // pred_check
          %p1501 = pneg %p684
        $region90: #{tpu_custom_call.1} parent=11 // pred_check_branch
          %1503 = sbr.rel (%p1501) target = $region92
        $region91: #{tpu_custom_call.1} parent=11 // pred_region
          %1505 = vsyncadd [#allocation25], 0
          %s1506 = sshll.u32 %s49, 4
          %s1507 = int_to_ptr.hbm [resolvable:$true] %s1506
          %s1508 = sshll.u32 [#allocation24], 4
          %s1509 = int_to_ptr.vmem [resolvable:$true] %s1508
          %1514 = dma.hbm_to_vmem [thread:$0]  %s1507, 256, %s1509, [#allocation25], 128, 128, 8
        $region92: #{tpu_custom_call.1} parent=11 // pred_fallthru
          _
        // Predicated region
        $region93: #{tpu_custom_call.1} parent=11 // pred_check
          %p1515 = pneg %p705
        $region94: #{tpu_custom_call.1} parent=11 // pred_check_branch
          %1517 = sbr.rel (%p1515) target = $region96
        $region95: #{tpu_custom_call.1} parent=11 // pred_region
          %1519 = vsyncadd [#allocation25], 0
          %s1521 = sshll.u32 %s51, 4
          %s1522 = int_to_ptr.hbm [resolvable:$true] %s1521
          %s1523 = sshll.u32 [#allocation26], 4
          %s1524 = int_to_ptr.vmem [resolvable:$true] %s1523
          %1526 = dma.hbm_to_vmem [thread:$0]  %s1522, 16, %s1524, [#allocation25]
        $region96: #{tpu_custom_call.1} parent=11 // pred_fallthru
          _
        // Predicated region
        $region97: #{tpu_custom_call.1} parent=11 // pred_check
          %p1527 = pneg %p726
        $region98: #{tpu_custom_call.1} parent=11 // pred_check_branch
          %1529 = sbr.rel (%p1527) target = $region100
        $region99: #{tpu_custom_call.1} parent=11 // pred_region
          _
        $region100: #{tpu_custom_call.1} parent=11 // pred_fallthru
          _
        // Predicated region
        $region101: #{tpu_custom_call.1} parent=11 // pred_check
          %p1530 = pneg %p747
        $region102: #{tpu_custom_call.1} parent=11 // pred_check_branch
          %1532 = sbr.rel (%p1530) target = $region104
        $region103: #{tpu_custom_call.1} parent=11 // pred_region
          %1534 = vsyncadd [#allocation28], 0
          %s1536 = sshll.u32 %s55, 4
          %s1537 = int_to_ptr.hbm [resolvable:$true] %s1536
          %s1538 = sshll.u32 [#allocation27], 4
          %s1539 = int_to_ptr.vmem [resolvable:$true] %s1538
          %1541 = dma.hbm_to_vmem [thread:$0]  %s1537, 16, %s1539, [#allocation28]
        $region104: #{tpu_custom_call.1} parent=11 // pred_fallthru
          _
        // Predicated region
        $region105: #{tpu_custom_call.1} parent=11 // pred_check
          %p1542 = pneg %p768
        $region106: #{tpu_custom_call.1} parent=11 // pred_check_branch
          %1544 = sbr.rel (%p1542) target = $region108
        $region107: #{tpu_custom_call.1} parent=11 // pred_region
          %1546 = vsyncadd [#allocation28], 0
          %s1547 = sshll.u32 %s57, 4
          %s1548 = int_to_ptr.hbm [resolvable:$true] %s1547
          %s1549 = sshll.u32 [#allocation29], 4
          %s1550 = int_to_ptr.vmem [resolvable:$true] %s1549
          %1555 = dma.hbm_to_vmem [thread:$0]  %s1548, 256, %s1550, [#allocation28], 128, 128, 8
        $region108: #{tpu_custom_call.1} parent=11 // pred_fallthru
          _
        // Predicated region
        $region109: #{tpu_custom_call.1} parent=11 // pred_check
          %p1556 = pneg %p789
        $region110: #{tpu_custom_call.1} parent=11 // pred_check_branch
          %1558 = sbr.rel (%p1556) target = $region112
        $region111: #{tpu_custom_call.1} parent=11 // pred_region
          %1560 = vsyncadd [#allocation31], 0
          %s1562 = sshll.u32 %s59, 4
          %s1563 = int_to_ptr.hbm [resolvable:$true] %s1562
          %s1564 = sshll.u32 [#allocation30], 4
          %s1565 = int_to_ptr.vmem [resolvable:$true] %s1564
          %1567 = dma.hbm_to_vmem [thread:$0]  %s1563, 16, %s1565, [#allocation31]
        $region112: #{tpu_custom_call.1} parent=11 // pred_fallthru
          _
        // Predicated region
        $region113: #{tpu_custom_call.1} parent=11 // pred_check
          %p1568 = pneg %p810
        $region114: #{tpu_custom_call.1} parent=11 // pred_check_branch
          %1570 = sbr.rel (%p1568) target = $region116
        $region115: #{tpu_custom_call.1} parent=11 // pred_region
          %1572 = vsyncadd [#allocation31], 0
          %s1573 = sshll.u32 %s61, 4
          %s1574 = int_to_ptr.hbm [resolvable:$true] %s1573
          %s1575 = sshll.u32 [#allocation32], 4
          %s1576 = int_to_ptr.vmem [resolvable:$true] %s1575
          %1581 = dma.hbm_to_vmem [thread:$0]  %s1574, 256, %s1576, [#allocation31], 128, 128, 8
        $region116: #{tpu_custom_call.1} parent=11 // pred_fallthru
          _
        // Predicated region
        $region117: #{tpu_custom_call.1} parent=11 // pred_check
          %p1582 = pneg %p831
        $region118: #{tpu_custom_call.1} parent=11 // pred_check_branch
          %1584 = sbr.rel (%p1582) target = $region120
        $region119: #{tpu_custom_call.1} parent=11 // pred_region
          %1586 = vsyncadd [#allocation34], 0
          %s1587 = sshll.u32 %s63, 4
          %s1588 = int_to_ptr.hbm [resolvable:$true] %s1587
          %s1589 = sshll.u32 [#allocation33], 4
          %s1590 = int_to_ptr.vmem [resolvable:$true] %s1589
          %1595 = dma.hbm_to_vmem [thread:$0]  %s1588, 256, %s1590, [#allocation34], 128, 128, 8
        $region120: #{tpu_custom_call.1} parent=11 // pred_fallthru
          _
        // Predicated region
        $region121: #{tpu_custom_call.1} parent=11 // pred_check
          %p1596 = pneg %p852
        $region122: #{tpu_custom_call.1} parent=11 // pred_check_branch
          %1598 = sbr.rel (%p1596) target = $region124
        $region123: #{tpu_custom_call.1} parent=11 // pred_region
          _
        $region124: #{tpu_custom_call.1} parent=11 // pred_fallthru
          _
        // Predicated region
        $region125: #{tpu_custom_call.1} parent=11 // pred_check
          %p1599 = pneg %p873
        $region126: #{tpu_custom_call.1} parent=11 // pred_check_branch
          %1601 = sbr.rel (%p1599) target = $region128
        $region127: #{tpu_custom_call.1} parent=11 // pred_region
          _
        $region128: #{tpu_custom_call.1} parent=11 // pred_fallthru
          _
        // Predicated region
        $region129: #{tpu_custom_call.1} parent=11 // pred_check
          %p1602 = pneg %p894
        $region130: #{tpu_custom_call.1} parent=11 // pred_check_branch
          %1604 = sbr.rel (%p1602) target = $region132
        $region131: #{tpu_custom_call.1} parent=11 // pred_region
          _
        $region132: #{tpu_custom_call.1} parent=11 // pred_fallthru
          _
        // Predicated region
        $region133: #{tpu_custom_call.1} parent=11 // pred_check
          %p1605 = pneg %p915
        $region134: #{tpu_custom_call.1} parent=11 // pred_check_branch
          %1607 = sbr.rel (%p1605) target = $region136
        $region135: #{tpu_custom_call.1} parent=11 // pred_region
          %1609 = vsyncadd [#allocation34], 0
          %s1611 = sshll.u32 %s71, 4
          %s1612 = int_to_ptr.hbm [resolvable:$true] %s1611
          %s1613 = sshll.u32 [#allocation35], 4
          %s1614 = int_to_ptr.vmem [resolvable:$true] %s1613
          %1616 = dma.hbm_to_vmem [thread:$0]  %s1612, 16, %s1614, [#allocation34]
        $region136: #{tpu_custom_call.1} parent=11 // pred_fallthru
          _
        // Predicated region
        $region137: #{tpu_custom_call.1} parent=11 // pred_check
          %p1617 = pneg %p936
        $region138: #{tpu_custom_call.1} parent=11 // pred_check_branch
          %1619 = sbr.rel (%p1617) target = $region140
        $region139: #{tpu_custom_call.1} parent=11 // pred_region
          %1621 = vsyncadd [#allocation37], 0
          %s1622 = sshll.u32 %s73, 4
          %s1623 = int_to_ptr.hbm [resolvable:$true] %s1622
          %s1624 = sshll.u32 [#allocation36], 4
          %s1625 = int_to_ptr.vmem [resolvable:$true] %s1624
          %1630 = dma.hbm_to_vmem [thread:$0]  %s1623, 256, %s1625, [#allocation37], 128, 128, 8
        $region140: #{tpu_custom_call.1} parent=11 // pred_fallthru
          _
        // Predicated region
        $region141: #{tpu_custom_call.1} parent=11 // pred_check
          %p1631 = pneg %p957
        $region142: #{tpu_custom_call.1} parent=11 // pred_check_branch
          %1633 = sbr.rel (%p1631) target = $region144
        $region143: #{tpu_custom_call.1} parent=11 // pred_region
          %1635 = vsyncadd [#allocation37], 0
          %s1636 = sshll.u32 %s75, 4
          %s1637 = int_to_ptr.hbm [resolvable:$true] %s1636
          %s1638 = sshll.u32 [#allocation38], 4
          %s1639 = int_to_ptr.vmem [resolvable:$true] %s1638
          %1644 = dma.hbm_to_vmem [thread:$0]  %s1637, 256, %s1639, [#allocation37], 128, 128, 8
        $region144: #{tpu_custom_call.1} parent=11 // pred_fallthru
          _
        // Predicated region
        $region145: #{tpu_custom_call.1} parent=11 // pred_check
          %p1645 = pneg %p978
        $region146: #{tpu_custom_call.1} parent=11 // pred_check_branch
          %1647 = sbr.rel (%p1645) target = $region148
        $region147: #{tpu_custom_call.1} parent=11 // pred_region
          %1649 = vsyncadd [#allocation40], 0
          %s1650 = sshll.u32 %s77, 4
          %s1651 = int_to_ptr.hbm [resolvable:$true] %s1650
          %s1652 = sshll.u32 [#allocation39], 4
          %s1653 = int_to_ptr.vmem [resolvable:$true] %s1652
          %1658 = dma.hbm_to_vmem [thread:$0]  %s1651, 256, %s1653, [#allocation40], 128, 128, 8
        $region148: #{tpu_custom_call.1} parent=11 // pred_fallthru
          _
        // Predicated region
        $region149: #{tpu_custom_call.1} parent=11 // pred_check
          %p1659 = pneg %p999
        $region150: #{tpu_custom_call.1} parent=11 // pred_check_branch
          %1661 = sbr.rel (%p1659) target = $region152
        $region151: #{tpu_custom_call.1} parent=11 // pred_region
          _
        $region152: #{tpu_custom_call.1} parent=11 // pred_fallthru
          _
        // Predicated region
        $region153: #{tpu_custom_call.1} parent=11 // pred_check
          %p1662 = pneg %p1020
        $region154: #{tpu_custom_call.1} parent=11 // pred_check_branch
          %1664 = sbr.rel (%p1662) target = $region156
        $region155: #{tpu_custom_call.1} parent=11 // pred_region
          _
        $region156: #{tpu_custom_call.1} parent=11 // pred_fallthru
          _
        // Predicated region
        $region157: #{tpu_custom_call.1} parent=11 // pred_check
          %p1665 = pneg %p1041
        $region158: #{tpu_custom_call.1} parent=11 // pred_check_branch
          %1667 = sbr.rel (%p1665) target = $region160
        $region159: #{tpu_custom_call.1} parent=11 // pred_region
          %1669 = vsyncadd [#allocation40], 0
          %s1671 = sshll.u32 %s83, 4
          %s1672 = int_to_ptr.hbm [resolvable:$true] %s1671
          %s1673 = sshll.u32 [#allocation41], 4
          %s1674 = int_to_ptr.vmem [resolvable:$true] %s1673
          %1676 = dma.hbm_to_vmem [thread:$0]  %s1672, 16, %s1674, [#allocation40]
        $region160: #{tpu_custom_call.1} parent=11 // pred_fallthru
          _
        // Predicated region
        $region161: #{tpu_custom_call.1} parent=11 // pred_check
          %p1677 = pneg %p1062
        $region162: #{tpu_custom_call.1} parent=11 // pred_check_branch
          %1679 = sbr.rel (%p1677) target = $region164
        $region163: #{tpu_custom_call.1} parent=11 // pred_region
          %1681 = vsyncadd [#allocation43], 0
          %s1683 = sshll.u32 %s85, 4
          %s1684 = int_to_ptr.hbm [resolvable:$true] %s1683
          %s1685 = sshll.u32 [#allocation42], 4
          %s1686 = int_to_ptr.vmem [resolvable:$true] %s1685
          %1688 = dma.hbm_to_vmem [thread:$0]  %s1684, 16, %s1686, [#allocation43]
        $region164: #{tpu_custom_call.1} parent=11 // pred_fallthru
          _
        // Predicated region
        $region165: #{tpu_custom_call.1} parent=11 // pred_check
          %p1689 = pneg %p1083
        $region166: #{tpu_custom_call.1} parent=11 // pred_check_branch
          %1691 = sbr.rel (%p1689) target = $region168
        $region167: #{tpu_custom_call.1} parent=11 // pred_region
          %1693 = vsyncadd [#allocation43], 0
          %s1695 = sshll.u32 %s87, 4
          %s1696 = int_to_ptr.hbm [resolvable:$true] %s1695
          %s1697 = sshll.u32 [#allocation44], 4
          %s1698 = int_to_ptr.vmem [resolvable:$true] %s1697
          %1700 = dma.hbm_to_vmem [thread:$0]  %s1696, 16, %s1698, [#allocation43]
        $region168: #{tpu_custom_call.1} parent=11 // pred_fallthru
          _
        // Predicated region
        $region169: #{tpu_custom_call.1} parent=11 // pred_check
          %p1701 = pneg %p1104
        $region170: #{tpu_custom_call.1} parent=11 // pred_check_branch
          %1703 = sbr.rel (%p1701) target = $region172
        $region171: #{tpu_custom_call.1} parent=11 // pred_region
          %1705 = vsyncadd [#allocation46], 0
          %s1706 = sshll.u32 %s89, 4
          %s1707 = int_to_ptr.hbm [resolvable:$true] %s1706
          %s1708 = sshll.u32 [#allocation45], 4
          %s1709 = int_to_ptr.vmem [resolvable:$true] %s1708
          %1714 = dma.hbm_to_vmem [thread:$0]  %s1707, 48, %s1709, [#allocation46], 16, 16, 1
        $region172: #{tpu_custom_call.1} parent=11 // pred_fallthru
          _
        // Predicated region
        $region173: #{tpu_custom_call.1} parent=11 // pred_check
          %p1715 = pneg %p1125
        $region174: #{tpu_custom_call.1} parent=11 // pred_check_branch
          %1717 = sbr.rel (%p1715) target = $region176
        $region175: #{tpu_custom_call.1} parent=11 // pred_region
          %1719 = vsyncadd [#allocation46], 0
          %s1720 = sshll.u32 %s91, 4
          %s1721 = int_to_ptr.hbm [resolvable:$true] %s1720
          %s1722 = sshll.u32 [#allocation47], 4
          %s1723 = int_to_ptr.vmem [resolvable:$true] %s1722
          %1728 = dma.hbm_to_vmem [thread:$0]  %s1721, 48, %s1723, [#allocation46], 16, 16, 1
        $region176: #{tpu_custom_call.1} parent=11 // pred_fallthru
          _
        // Predicated region
        $region177: #{tpu_custom_call.1} parent=11 // pred_check
          %p1729 = pneg %p1146
        $region178: #{tpu_custom_call.1} parent=11 // pred_check_branch
          %1731 = sbr.rel (%p1729) target = $region180
        $region179: #{tpu_custom_call.1} parent=11 // pred_region
          %1733 = vsyncadd [#allocation49], 0
          %s1734 = sshll.u32 %s93, 4
          %s1735 = int_to_ptr.hbm [resolvable:$true] %s1734
          %s1736 = sshll.u32 [#allocation48], 4
          %s1737 = int_to_ptr.vmem [resolvable:$true] %s1736
          %1742 = dma.hbm_to_vmem [thread:$0]  %s1735, 256, %s1737, [#allocation49], 128, 128, 8
        $region180: #{tpu_custom_call.1} parent=11 // pred_fallthru
          _
        // Predicated region
        $region181: #{tpu_custom_call.1} parent=11 // pred_check
          %p1743 = pneg %p1167
        $region182: #{tpu_custom_call.1} parent=11 // pred_check_branch
          %1745 = sbr.rel (%p1743) target = $region184
        $region183: #{tpu_custom_call.1} parent=11 // pred_region
          %1747 = vsyncadd [#allocation49], 0
          %s1748 = sshll.u32 %s95, 4
          %s1749 = int_to_ptr.hbm [resolvable:$true] %s1748
          %s1750 = sshll.u32 [#allocation50], 4
          %s1751 = int_to_ptr.vmem [resolvable:$true] %s1750
          %1756 = dma.hbm_to_vmem [thread:$0]  %s1749, 256, %s1751, [#allocation49], 128, 128, 8
        $region184: #{tpu_custom_call.1} parent=11 // pred_fallthru
          _
        // Predicated region
        $region185: #{tpu_custom_call.1} parent=11 // pred_check
          %p1757 = pneg %p1188
        $region186: #{tpu_custom_call.1} parent=11 // pred_check_branch
          %1759 = sbr.rel (%p1757) target = $region188
        $region187: #{tpu_custom_call.1} parent=11 // pred_region
          _
        $region188: #{tpu_custom_call.1} parent=11 // pred_fallthru
          _
        // Predicated region
        $region189: #{tpu_custom_call.1} parent=11 // pred_check
          %p1760 = pneg %p1209
        $region190: #{tpu_custom_call.1} parent=11 // pred_check_branch
          %1762 = sbr.rel (%p1760) target = $region192
        $region191: #{tpu_custom_call.1} parent=11 // pred_region
          %1764 = vsyncadd [#allocation52], 0
          %s1765 = sshll.u32 %s99, 4
          %s1766 = int_to_ptr.hbm [resolvable:$true] %s1765
          %s1767 = sshll.u32 [#allocation51], 4
          %s1768 = int_to_ptr.vmem [resolvable:$true] %s1767
          %1773 = dma.hbm_to_vmem [thread:$0]  %s1766, 256, %s1768, [#allocation52], 128, 128, 8
        $region192: #{tpu_custom_call.1} parent=11 // pred_fallthru
          _
        // Predicated region
        $region193: #{tpu_custom_call.1} parent=11 // pred_check
          %p1774 = pneg %p1230
        $region194: #{tpu_custom_call.1} parent=11 // pred_check_branch
          %1776 = sbr.rel (%p1774) target = $region196
        $region195: #{tpu_custom_call.1} parent=11 // pred_region
          _
        $region196: #{tpu_custom_call.1} parent=11 // pred_fallthru
          _
        // Predicated region
        $region197: #{tpu_custom_call.1} parent=11 // pred_check
          %p1777 = pneg %p1251
        $region198: #{tpu_custom_call.1} parent=11 // pred_check_branch
          %1779 = sbr.rel (%p1777) target = $region200
        $region199: #{tpu_custom_call.1} parent=11 // pred_region
          _
        $region200: #{tpu_custom_call.1} parent=11 // pred_fallthru
          _
        // Predicated region
        $region201: #{tpu_custom_call.1} parent=11 // pred_check
          %p1780 = pneg %p1272
        $region202: #{tpu_custom_call.1} parent=11 // pred_check_branch
          %1782 = sbr.rel (%p1780) target = $region204
        $region203: #{tpu_custom_call.1} parent=11 // pred_region
          _
        $region204: #{tpu_custom_call.1} parent=11 // pred_fallthru
          _
      $region12: #{tpu_custom_call.1} parent=5 // pred_fallthru
        _
      %p1783 = scmp.lt.s32.totalorder %s134, 2
      // Predicated region
      $region205: #{tpu_custom_call.1} parent=5 // pred_check
        %p1784 = pneg %p1783
      $region206: #{tpu_custom_call.1} parent=5 // pred_check_branch
        %1786 = sbr.rel (%p1784) target = $region208
      $region207: #{tpu_custom_call.1} parent=5 // pred_region
        // Predicated region
        $region209: #{tpu_custom_call.1} parent=207 // pred_check
          %p1787 = pneg %p154
        $region210: #{tpu_custom_call.1} parent=207 // pred_check_branch
          %1789 = sbr.rel (%p1787) target = $region212
        $region211: #{tpu_custom_call.1} parent=207 // pred_region
          %p1790 = scmp.lt.s32.totalorder %s134, 1
          %s1791 = scalar_select %p1790, %s134, 1
          %s1792 = smul.addr %s1791, 8
          %s1793 = scalar_lea.vmem %s1, %s1792
        $region212: #{tpu_custom_call.1} parent=207 // pred_fallthru
          _
        // Predicated region
        $region213: #{tpu_custom_call.1} parent=207 // pred_check
          %p1794 = pneg %p180
        $region214: #{tpu_custom_call.1} parent=207 // pred_check_branch
          %1796 = sbr.rel (%p1794) target = $region216
        $region215: #{tpu_custom_call.1} parent=207 // pred_region
          %s1797 = sand.u32 %s170, 1
          %s1798 = sand.u32 %s170, 1
          %s1799 = smul.addr %s1798, 24
          %s1800 = scalar_lea.vmem [#allocation4], %s1799
          %s1801 = smul.addr %s134, 8
          %s1802 = scalar_lea.vmem %s3, %s1801
          // Predicated region
          $region217: #{tpu_custom_call.1} parent=215 // pred_check
            _
          $region218: #{tpu_custom_call.1} parent=215 // pred_check_branch
            %1804 = sbr.rel (0) target = $region220
          $region219: #{tpu_custom_call.1} parent=215 // pred_region
            // Predicated region
            $region221: #{tpu_custom_call.1} parent=219 // pred_check
              _
            $region222: #{tpu_custom_call.1} parent=219 // pred_check_branch
              %1806 = sbr.rel (0) target = $region224
            $region223: #{tpu_custom_call.1} parent=219 // pred_region
              // Predicated region
              $region236: #{tpu_custom_call.1} parent=223 // pred_check
                _
              $region237: #{tpu_custom_call.1} parent=223 // pred_check_branch
                %1826 = sbr.rel (0) target = $region239
              $region238: #{tpu_custom_call.1} parent=223 // pred_region
                loop: start=0, step=1, limit=1
                $region240: #{tpu_custom_call.1} parent=238 // loop_pre_header
                  _
                $region241: #{tpu_custom_call.1} parent=238 // loop_header
                  %s1828 = sphi 0, %s1832
                  %p1829 = scmp.ge.s32.totalorder %s1828, 1
                  %s1833 = sphi %s1802, %s1802
                  %s1834 = sphi %s1800, %s1800
                $region242: #{tpu_custom_call.1} parent=238 // loop_header_branch
                  %1831 = sbr.rel (%p1829) target = $region246
                $region243: #{tpu_custom_call.1} parent=238 // loop_body
                  %v1835 = vld [vmem:[%s1833] sm:$0xff]
                  %1836 = vst [vmem:[%s1834] sm:$0xff] %v1835
                  %v1837 = vld [vmem:[%s1833 + $0x10] sm:$0xff]
                  %1838 = vst [vmem:[%s1834 + $0x8] sm:$0xff] %v1837
                  %v1839 = vld [vmem:[%s1833 + $0x20] sm:$0xff]
                  %1840 = vst [vmem:[%s1834 + $0x10] sm:$0xff] %v1839
                $region244: #{tpu_custom_call.1} parent=238 // loop_footer
                  %s1832 = sadd.s32 1, %s1828
                $region245: #{tpu_custom_call.1} parent=238 // loop_footer_branch
                  %1827 = sbr.rel target = $region241
                $region246: #{tpu_custom_call.1} parent=238 // loop_exit
                  _
              $region239: #{tpu_custom_call.1} parent=223 // pred_fallthru
                _
              // Predicated region
              $region247: #{tpu_custom_call.1} parent=223 // pred_check
                _
              $region248: #{tpu_custom_call.1} parent=223 // pred_check_branch
                %1842 = sbr.rel target = $region250
              $region249: #{tpu_custom_call.1} parent=223 // pred_region
                _
              $region250: #{tpu_custom_call.1} parent=223 // pred_fallthru
                _
            $region224: #{tpu_custom_call.1} parent=219 // pred_fallthru
              _
            // Predicated region
            $region225: #{tpu_custom_call.1} parent=219 // pred_check
              _
            $region226: #{tpu_custom_call.1} parent=219 // pred_check_branch
              %1808 = sbr.rel target = $region228
            $region227: #{tpu_custom_call.1} parent=219 // pred_region
              %s1810 = ssub.s32 256, 1
              loop: start=0, step=1, limit=1
              $region229: #{tpu_custom_call.1} parent=227 // loop_pre_header
                _
              $region230: #{tpu_custom_call.1} parent=227 // loop_header
                %s1812 = sphi 0, %s1816
                %p1813 = scmp.ge.s32.totalorder %s1812, 1
                %s1817 = sphi %s1802, %s1802
                %s1818 = sphi %s1800, %s1800
              $region231: #{tpu_custom_call.1} parent=227 // loop_header_branch
                %1815 = sbr.rel (%p1813) target = $region235
              $region232: #{tpu_custom_call.1} parent=227 // loop_body
                %v1819 = vld [vmem:[%s1817] sm:%s1810]
                %1820 = vst [vmem:[%s1818] sm:%s1810] %v1819
                %v1821 = vld [vmem:[%s1817 + $0x10] sm:%s1810]
                %1822 = vst [vmem:[%s1818 + $0x8] sm:%s1810] %v1821
                %v1823 = vld [vmem:[%s1817 + $0x20] sm:%s1810]
                %1824 = vst [vmem:[%s1818 + $0x10] sm:%s1810] %v1823
              $region233: #{tpu_custom_call.1} parent=227 // loop_footer
                %s1816 = sadd.s32 1, %s1812
              $region234: #{tpu_custom_call.1} parent=227 // loop_footer_branch
                %1811 = sbr.rel target = $region230
              $region235: #{tpu_custom_call.1} parent=227 // loop_exit
                _
            $region228: #{tpu_custom_call.1} parent=219 // pred_fallthru
              _
          $region220: #{tpu_custom_call.1} parent=215 // pred_fallthru
            _
          %1843 = vnop
        $region216: #{tpu_custom_call.1} parent=207 // pred_fallthru
          _
        // Predicated region
        $region251: #{tpu_custom_call.1} parent=207 // pred_check
          %p1844 = pneg %p206
        $region252: #{tpu_custom_call.1} parent=207 // pred_check_branch
          %1846 = sbr.rel (%p1844) target = $region254
        $region253: #{tpu_custom_call.1} parent=207 // pred_region
          %s1847 = sand.u32 %s196, 1
          %s1848 = sand.u32 %s196, 1
          %s1849 = smul.addr %s1848, 24
          %s1850 = scalar_lea.vmem [#allocation5], %s1849
          %s1851 = smul.addr %s134, 8
          %s1852 = scalar_lea.vmem %s5, %s1851
          // Predicated region
          $region255: #{tpu_custom_call.1} parent=253 // pred_check
            _
          $region256: #{tpu_custom_call.1} parent=253 // pred_check_branch
            %1854 = sbr.rel (0) target = $region258
          $region257: #{tpu_custom_call.1} parent=253 // pred_region
            // Predicated region
            $region259: #{tpu_custom_call.1} parent=257 // pred_check
              _
            $region260: #{tpu_custom_call.1} parent=257 // pred_check_branch
              %1856 = sbr.rel (0) target = $region262
            $region261: #{tpu_custom_call.1} parent=257 // pred_region
              // Predicated region
              $region274: #{tpu_custom_call.1} parent=261 // pred_check
                _
              $region275: #{tpu_custom_call.1} parent=261 // pred_check_branch
                %1876 = sbr.rel (0) target = $region277
              $region276: #{tpu_custom_call.1} parent=261 // pred_region
                loop: start=0, step=1, limit=1
                $region278: #{tpu_custom_call.1} parent=276 // loop_pre_header
                  _
                $region279: #{tpu_custom_call.1} parent=276 // loop_header
                  %s1878 = sphi 0, %s1882
                  %p1879 = scmp.ge.s32.totalorder %s1878, 1
                  %s1883 = sphi %s1852, %s1852
                  %s1884 = sphi %s1850, %s1850
                $region280: #{tpu_custom_call.1} parent=276 // loop_header_branch
                  %1881 = sbr.rel (%p1879) target = $region284
                $region281: #{tpu_custom_call.1} parent=276 // loop_body
                  %v1885 = vld [vmem:[%s1883] sm:$0xff]
                  %1886 = vst [vmem:[%s1884] sm:$0xff] %v1885
                  %v1887 = vld [vmem:[%s1883 + $0x10] sm:$0xff]
                  %1888 = vst [vmem:[%s1884 + $0x8] sm:$0xff] %v1887
                  %v1889 = vld [vmem:[%s1883 + $0x20] sm:$0xff]
                  %1890 = vst [vmem:[%s1884 + $0x10] sm:$0xff] %v1889
                $region282: #{tpu_custom_call.1} parent=276 // loop_footer
                  %s1882 = sadd.s32 1, %s1878
                $region283: #{tpu_custom_call.1} parent=276 // loop_footer_branch
                  %1877 = sbr.rel target = $region279
                $region284: #{tpu_custom_call.1} parent=276 // loop_exit
                  _
              $region277: #{tpu_custom_call.1} parent=261 // pred_fallthru
                _
              // Predicated region
              $region285: #{tpu_custom_call.1} parent=261 // pred_check
                _
              $region286: #{tpu_custom_call.1} parent=261 // pred_check_branch
                %1892 = sbr.rel target = $region288
              $region287: #{tpu_custom_call.1} parent=261 // pred_region
                _
              $region288: #{tpu_custom_call.1} parent=261 // pred_fallthru
                _
            $region262: #{tpu_custom_call.1} parent=257 // pred_fallthru
              _
            // Predicated region
            $region263: #{tpu_custom_call.1} parent=257 // pred_check
              _
            $region264: #{tpu_custom_call.1} parent=257 // pred_check_branch
              %1858 = sbr.rel target = $region266
            $region265: #{tpu_custom_call.1} parent=257 // pred_region
              %s1860 = ssub.s32 256, 1
              loop: start=0, step=1, limit=1
              $region267: #{tpu_custom_call.1} parent=265 // loop_pre_header
                _
              $region268: #{tpu_custom_call.1} parent=265 // loop_header
                %s1862 = sphi 0, %s1866
                %p1863 = scmp.ge.s32.totalorder %s1862, 1
                %s1867 = sphi %s1852, %s1852
                %s1868 = sphi %s1850, %s1850
              $region269: #{tpu_custom_call.1} parent=265 // loop_header_branch
                %1865 = sbr.rel (%p1863) target = $region273
              $region270: #{tpu_custom_call.1} parent=265 // loop_body
                %v1869 = vld [vmem:[%s1867] sm:%s1860]
                %1870 = vst [vmem:[%s1868] sm:%s1860] %v1869
                %v1871 = vld [vmem:[%s1867 + $0x10] sm:%s1860]
                %1872 = vst [vmem:[%s1868 + $0x8] sm:%s1860] %v1871
                %v1873 = vld [vmem:[%s1867 + $0x20] sm:%s1860]
                %1874 = vst [vmem:[%s1868 + $0x10] sm:%s1860] %v1873
              $region271: #{tpu_custom_call.1} parent=265 // loop_footer
                %s1866 = sadd.s32 1, %s1862
              $region272: #{tpu_custom_call.1} parent=265 // loop_footer_branch
                %1861 = sbr.rel target = $region268
              $region273: #{tpu_custom_call.1} parent=265 // loop_exit
                _
            $region266: #{tpu_custom_call.1} parent=257 // pred_fallthru
              _
          $region258: #{tpu_custom_call.1} parent=253 // pred_fallthru
            _
          %1893 = vnop
        $region254: #{tpu_custom_call.1} parent=207 // pred_fallthru
          _
        // Predicated region
        $region289: #{tpu_custom_call.1} parent=207 // pred_check
          %p1894 = pneg %p232
        $region290: #{tpu_custom_call.1} parent=207 // pred_check_branch
          %1896 = sbr.rel (%p1894) target = $region292
        $region291: #{tpu_custom_call.1} parent=207 // pred_region
          %p1897 = scmp.lt.s32.totalorder %s134, 1
          %s1898 = scalar_select %p1897, %s134, 1
          %s1899 = smul.addr %s1898, 8
          %s1900 = scalar_lea.vmem %s7, %s1899
        $region292: #{tpu_custom_call.1} parent=207 // pred_fallthru
          _
        // Predicated region
        $region293: #{tpu_custom_call.1} parent=207 // pred_check
          %p1901 = pneg %p258
        $region294: #{tpu_custom_call.1} parent=207 // pred_check_branch
          %1903 = sbr.rel (%p1901) target = $region296
        $region295: #{tpu_custom_call.1} parent=207 // pred_region
          %p1904 = scmp.lt.s32.totalorder %s134, 1
          %s1905 = scalar_select %p1904, %s134, 1
          %s1906 = smul.addr %s1905, 8
          %s1907 = scalar_lea.vmem %s9, %s1906
        $region296: #{tpu_custom_call.1} parent=207 // pred_fallthru
          _
      $region208: #{tpu_custom_call.1} parent=5 // pred_fallthru
        _
      %p1908 = scmp.le.s32.totalorder 1, %s134
      %p1909 = scmp.lt.s32.totalorder %s134, 3
      %p1910 = pnand %p1908, %p1909
      %p1911 = pneg %p1910
      // Predicated region
      $region297: #{tpu_custom_call.1} parent=5 // pred_check
        _
      $region298: #{tpu_custom_call.1} parent=5 // pred_check_branch
        %1913 = sbr.rel (%p1910) target = $region300
      $region299: #{tpu_custom_call.1} parent=5 // pred_region
        %s1914 = ssub.s32 %s134, 1
        %s1915 = sand.u32 %s173, 1
        %s1916 = sand.u32 %s173, 1
        %s1917 = smul.addr %s1916, 24
        %s1918 = scalar_lea.vmem [#allocation4], %s1917
        // Predicated region
        $region301: #{tpu_custom_call.1} parent=299 // pred_check
          %p1919 = pneg %p186
        $region302: #{tpu_custom_call.1} parent=299 // pred_check_branch
          %1921 = sbr.rel (%p1919) target = $region304
        $region303: #{tpu_custom_call.1} parent=299 // pred_region
          _
        $region304: #{tpu_custom_call.1} parent=299 // pred_fallthru
          _
        %s1922 = sand.u32 %s199, 1
        %s1923 = sand.u32 %s199, 1
        %s1924 = smul.addr %s1923, 24
        %s1925 = scalar_lea.vmem [#allocation5], %s1924
        // Predicated region
        $region305: #{tpu_custom_call.1} parent=299 // pred_check
          %p1926 = pneg %p212
        $region306: #{tpu_custom_call.1} parent=299 // pred_check_branch
          %1928 = sbr.rel (%p1926) target = $region308
        $region307: #{tpu_custom_call.1} parent=299 // pred_region
          _
        $region308: #{tpu_custom_call.1} parent=299 // pred_fallthru
          _
        // Predicated region
        $region309: #{tpu_custom_call.1} parent=299 // pred_check
          %p1929 = pneg %p390
        $region310: #{tpu_custom_call.1} parent=299 // pred_check_branch
          %1931 = sbr.rel (%p1929) target = $region312
        $region311: #{tpu_custom_call.1} parent=299 // pred_region
          %1933 = dma.done [#allocation7], 256
        $region312: #{tpu_custom_call.1} parent=299 // pred_fallthru
          _
        // Predicated region
        $region313: #{tpu_custom_call.1} parent=299 // pred_check
          %p1934 = pneg %p411
        $region314: #{tpu_custom_call.1} parent=299 // pred_check_branch
          %1936 = sbr.rel (%p1934) target = $region316
        $region315: #{tpu_custom_call.1} parent=299 // pred_region
          %1938 = dma.done [#allocation10], 256
        $region316: #{tpu_custom_call.1} parent=299 // pred_fallthru
          _
        // Predicated region
        $region317: #{tpu_custom_call.1} parent=299 // pred_check
          %p1939 = pneg %p474
        $region318: #{tpu_custom_call.1} parent=299 // pred_check_branch
          %1941 = sbr.rel (%p1939) target = $region320
        $region319: #{tpu_custom_call.1} parent=299 // pred_region
          %1943 = dma.done [#allocation10], 16
        $region320: #{tpu_custom_call.1} parent=299 // pred_fallthru
          _
        // Predicated region
        $region321: #{tpu_custom_call.1} parent=299 // pred_check
          %p1944 = pneg %p495
        $region322: #{tpu_custom_call.1} parent=299 // pred_check_branch
          %1946 = sbr.rel (%p1944) target = $region324
        $region323: #{tpu_custom_call.1} parent=299 // pred_region
          %1948 = dma.done [#allocation13], 256
        $region324: #{tpu_custom_call.1} parent=299 // pred_fallthru
          _
        // Predicated region
        $region325: #{tpu_custom_call.1} parent=299 // pred_check
          %p1949 = pneg %p537
        $region326: #{tpu_custom_call.1} parent=299 // pred_check_branch
          %1951 = sbr.rel (%p1949) target = $region328
        $region327: #{tpu_custom_call.1} parent=299 // pred_region
          %1953 = dma.done [#allocation13], 256
        $region328: #{tpu_custom_call.1} parent=299 // pred_fallthru
          _
        // Predicated region
        $region329: #{tpu_custom_call.1} parent=299 // pred_check
          %p1954 = pneg %p558
        $region330: #{tpu_custom_call.1} parent=299 // pred_check_branch
          %1956 = sbr.rel (%p1954) target = $region332
        $region331: #{tpu_custom_call.1} parent=299 // pred_region
          %1958 = dma.done [#allocation16], 256
        $region332: #{tpu_custom_call.1} parent=299 // pred_fallthru
          _
        // Predicated region
        $region333: #{tpu_custom_call.1} parent=299 // pred_check
          %p1959 = pneg %p579
        $region334: #{tpu_custom_call.1} parent=299 // pred_check_branch
          %1961 = sbr.rel (%p1959) target = $region336
        $region335: #{tpu_custom_call.1} parent=299 // pred_region
          %1963 = dma.done [#allocation16], 256
        $region336: #{tpu_custom_call.1} parent=299 // pred_fallthru
          _
        // Predicated region
        $region337: #{tpu_custom_call.1} parent=299 // pred_check
          %p1964 = pneg %p600
        $region338: #{tpu_custom_call.1} parent=299 // pred_check_branch
          %1966 = sbr.rel (%p1964) target = $region340
        $region339: #{tpu_custom_call.1} parent=299 // pred_region
          %1968 = dma.done [#allocation19], 16
        $region340: #{tpu_custom_call.1} parent=299 // pred_fallthru
          _
        // Predicated region
        $region341: #{tpu_custom_call.1} parent=299 // pred_check
          %p1969 = pneg %p621
        $region342: #{tpu_custom_call.1} parent=299 // pred_check_branch
          %1971 = sbr.rel (%p1969) target = $region344
        $region343: #{tpu_custom_call.1} parent=299 // pred_region
          %1973 = dma.done [#allocation19], 256
        $region344: #{tpu_custom_call.1} parent=299 // pred_fallthru
          _
        // Predicated region
        $region345: #{tpu_custom_call.1} parent=299 // pred_check
          %p1974 = pneg %p642
        $region346: #{tpu_custom_call.1} parent=299 // pred_check_branch
          %1976 = sbr.rel (%p1974) target = $region348
        $region347: #{tpu_custom_call.1} parent=299 // pred_region
          %1978 = dma.done [#allocation22], 256
        $region348: #{tpu_custom_call.1} parent=299 // pred_fallthru
          _
        // Predicated region
        $region349: #{tpu_custom_call.1} parent=299 // pred_check
          %p1979 = pneg %p663
        $region350: #{tpu_custom_call.1} parent=299 // pred_check_branch
          %1981 = sbr.rel (%p1979) target = $region352
        $region351: #{tpu_custom_call.1} parent=299 // pred_region
          %1983 = dma.done [#allocation22], 16
        $region352: #{tpu_custom_call.1} parent=299 // pred_fallthru
          _
        // Predicated region
        $region353: #{tpu_custom_call.1} parent=299 // pred_check
          %p1984 = pneg %p684
        $region354: #{tpu_custom_call.1} parent=299 // pred_check_branch
          %1986 = sbr.rel (%p1984) target = $region356
        $region355: #{tpu_custom_call.1} parent=299 // pred_region
          %1988 = dma.done [#allocation25], 256
        $region356: #{tpu_custom_call.1} parent=299 // pred_fallthru
          _
        // Predicated region
        $region357: #{tpu_custom_call.1} parent=299 // pred_check
          %p1989 = pneg %p705
        $region358: #{tpu_custom_call.1} parent=299 // pred_check_branch
          %1991 = sbr.rel (%p1989) target = $region360
        $region359: #{tpu_custom_call.1} parent=299 // pred_region
          %1993 = dma.done [#allocation25], 16
        $region360: #{tpu_custom_call.1} parent=299 // pred_fallthru
          _
        // Predicated region
        $region361: #{tpu_custom_call.1} parent=299 // pred_check
          %p1994 = pneg %p747
        $region362: #{tpu_custom_call.1} parent=299 // pred_check_branch
          %1996 = sbr.rel (%p1994) target = $region364
        $region363: #{tpu_custom_call.1} parent=299 // pred_region
          %1998 = dma.done [#allocation28], 16
        $region364: #{tpu_custom_call.1} parent=299 // pred_fallthru
          _
        // Predicated region
        $region365: #{tpu_custom_call.1} parent=299 // pred_check
          %p1999 = pneg %p768
        $region366: #{tpu_custom_call.1} parent=299 // pred_check_branch
          %2001 = sbr.rel (%p1999) target = $region368
        $region367: #{tpu_custom_call.1} parent=299 // pred_region
          %2003 = dma.done [#allocation28], 256
        $region368: #{tpu_custom_call.1} parent=299 // pred_fallthru
          _
        // Predicated region
        $region369: #{tpu_custom_call.1} parent=299 // pred_check
          %p2004 = pneg %p789
        $region370: #{tpu_custom_call.1} parent=299 // pred_check_branch
          %2006 = sbr.rel (%p2004) target = $region372
        $region371: #{tpu_custom_call.1} parent=299 // pred_region
          %2008 = dma.done [#allocation31], 16
        $region372: #{tpu_custom_call.1} parent=299 // pred_fallthru
          _
        // Predicated region
        $region373: #{tpu_custom_call.1} parent=299 // pred_check
          %p2009 = pneg %p810
        $region374: #{tpu_custom_call.1} parent=299 // pred_check_branch
          %2011 = sbr.rel (%p2009) target = $region376
        $region375: #{tpu_custom_call.1} parent=299 // pred_region
          %2013 = dma.done [#allocation31], 256
        $region376: #{tpu_custom_call.1} parent=299 // pred_fallthru
          _
        // Predicated region
        $region377: #{tpu_custom_call.1} parent=299 // pred_check
          %p2014 = pneg %p831
        $region378: #{tpu_custom_call.1} parent=299 // pred_check_branch
          %2016 = sbr.rel (%p2014) target = $region380
        $region379: #{tpu_custom_call.1} parent=299 // pred_region
          %2018 = dma.done [#allocation34], 256
        $region380: #{tpu_custom_call.1} parent=299 // pred_fallthru
          _
        // Predicated region
        $region381: #{tpu_custom_call.1} parent=299 // pred_check
          %p2019 = pneg %p915
        $region382: #{tpu_custom_call.1} parent=299 // pred_check_branch
          %2021 = sbr.rel (%p2019) target = $region384
        $region383: #{tpu_custom_call.1} parent=299 // pred_region
          %2023 = dma.done [#allocation34], 16
        $region384: #{tpu_custom_call.1} parent=299 // pred_fallthru
          _
        // Predicated region
        $region385: #{tpu_custom_call.1} parent=299 // pred_check
          %p2024 = pneg %p936
        $region386: #{tpu_custom_call.1} parent=299 // pred_check_branch
          %2026 = sbr.rel (%p2024) target = $region388
        $region387: #{tpu_custom_call.1} parent=299 // pred_region
          %2028 = dma.done [#allocation37], 256
        $region388: #{tpu_custom_call.1} parent=299 // pred_fallthru
          _
        // Predicated region
        $region389: #{tpu_custom_call.1} parent=299 // pred_check
          %p2029 = pneg %p957
        $region390: #{tpu_custom_call.1} parent=299 // pred_check_branch
          %2031 = sbr.rel (%p2029) target = $region392
        $region391: #{tpu_custom_call.1} parent=299 // pred_region
          %2033 = dma.done [#allocation37], 256
        $region392: #{tpu_custom_call.1} parent=299 // pred_fallthru
          _
        // Predicated region
        $region393: #{tpu_custom_call.1} parent=299 // pred_check
          %p2034 = pneg %p978
        $region394: #{tpu_custom_call.1} parent=299 // pred_check_branch
          %2036 = sbr.rel (%p2034) target = $region396
        $region395: #{tpu_custom_call.1} parent=299 // pred_region
          %2038 = dma.done [#allocation40], 256
        $region396: #{tpu_custom_call.1} parent=299 // pred_fallthru
          _
        // Predicated region
        $region397: #{tpu_custom_call.1} parent=299 // pred_check
          %p2039 = pneg %p1041
        $region398: #{tpu_custom_call.1} parent=299 // pred_check_branch
          %2041 = sbr.rel (%p2039) target = $region400
        $region399: #{tpu_custom_call.1} parent=299 // pred_region
          %2043 = dma.done [#allocation40], 16
        $region400: #{tpu_custom_call.1} parent=299 // pred_fallthru
          _
        // Predicated region
        $region401: #{tpu_custom_call.1} parent=299 // pred_check
          %p2044 = pneg %p1062
        $region402: #{tpu_custom_call.1} parent=299 // pred_check_branch
          %2046 = sbr.rel (%p2044) target = $region404
        $region403: #{tpu_custom_call.1} parent=299 // pred_region
          %2048 = dma.done [#allocation43], 16
        $region404: #{tpu_custom_call.1} parent=299 // pred_fallthru
          _
        // Predicated region
        $region405: #{tpu_custom_call.1} parent=299 // pred_check
          %p2049 = pneg %p1083
        $region406: #{tpu_custom_call.1} parent=299 // pred_check_branch
          %2051 = sbr.rel (%p2049) target = $region408
        $region407: #{tpu_custom_call.1} parent=299 // pred_region
          %2053 = dma.done [#allocation43], 16
        $region408: #{tpu_custom_call.1} parent=299 // pred_fallthru
          _
        // Predicated region
        $region409: #{tpu_custom_call.1} parent=299 // pred_check
          %p2054 = pneg %p1104
        $region410: #{tpu_custom_call.1} parent=299 // pred_check_branch
          %2056 = sbr.rel (%p2054) target = $region412
        $region411: #{tpu_custom_call.1} parent=299 // pred_region
          %2058 = dma.done [#allocation46], 48
        $region412: #{tpu_custom_call.1} parent=299 // pred_fallthru
          _
        // Predicated region
        $region413: #{tpu_custom_call.1} parent=299 // pred_check
          %p2059 = pneg %p1125
        $region414: #{tpu_custom_call.1} parent=299 // pred_check_branch
          %2061 = sbr.rel (%p2059) target = $region416
        $region415: #{tpu_custom_call.1} parent=299 // pred_region
          %2063 = dma.done [#allocation46], 48
        $region416: #{tpu_custom_call.1} parent=299 // pred_fallthru
          _
        // Predicated region
        $region417: #{tpu_custom_call.1} parent=299 // pred_check
          %p2064 = pneg %p1146
        $region418: #{tpu_custom_call.1} parent=299 // pred_check_branch
          %2066 = sbr.rel (%p2064) target = $region420
        $region419: #{tpu_custom_call.1} parent=299 // pred_region
          %2068 = dma.done [#allocation49], 256
        $region420: #{tpu_custom_call.1} parent=299 // pred_fallthru
          _
        // Predicated region
        $region421: #{tpu_custom_call.1} parent=299 // pred_check
          %p2069 = pneg %p1167
        $region422: #{tpu_custom_call.1} parent=299 // pred_check_branch
          %2071 = sbr.rel (%p2069) target = $region424
        $region423: #{tpu_custom_call.1} parent=299 // pred_region
          %2073 = dma.done [#allocation49], 256
        $region424: #{tpu_custom_call.1} parent=299 // pred_fallthru
          _
        // Predicated region
        $region425: #{tpu_custom_call.1} parent=299 // pred_check
          %p2074 = pneg %p1209
        $region426: #{tpu_custom_call.1} parent=299 // pred_check_branch
          %2076 = sbr.rel (%p2074) target = $region428
        $region427: #{tpu_custom_call.1} parent=299 // pred_region
          %2078 = dma.done [#allocation52], 256
        $region428: #{tpu_custom_call.1} parent=299 // pred_fallthru
          _
        %p2079 = scmp.lt.s32.totalorder %s139, 1
        %s2080 = scalar_select %p2079, %s139, 1
        %s2081 = smul.addr %s2080, 8
        %s2082 = scalar_lea.vmem %s1, %s2081
        %p2083 = pneg %p160
        %p2084 = pneg %p157
        %s2085 = sand.u32 %s173, 1
        %s2086 = sand.u32 %s173, 1
        %s2087 = smul.addr %s2086, 24
        %s2088 = scalar_lea.vmem [#allocation4], %s2087
        %p2089 = pneg %p186
        %p2090 = pneg %p183
        %s2091 = sand.u32 %s199, 1
        %s2092 = sand.u32 %s199, 1
        %s2093 = smul.addr %s2092, 24
        %s2094 = scalar_lea.vmem [#allocation5], %s2093
        %p2095 = pneg %p212
        %p2096 = pneg %p209
        %p2097 = scmp.lt.s32.totalorder %s139, 1
        %s2098 = scalar_select %p2097, %s139, 1
        %s2099 = smul.addr %s2098, 8
        %s2100 = scalar_lea.vmem %s7, %s2099
        %p2101 = pneg %p238
        %p2102 = pneg %p235
        %p2103 = scmp.lt.s32.totalorder %s139, 1
        %s2104 = scalar_select %p2103, %s139, 1
        %s2105 = smul.addr %s2104, 8
        %s2106 = scalar_lea.vmem %s9, %s2105
        %p2107 = pneg %p264
        %p2108 = pneg %p261
        %p2109 = pneg %p285
        %p2110 = pneg %p282
        %p2111 = pneg %p306
        %p2112 = pneg %p303
        %p2113 = pneg %p327
        %p2114 = pneg %p324
        %p2115 = pneg %p348
        %p2116 = pneg %p345
        %p2117 = pneg %p369
        %p2118 = pneg %p366
        %p2119 = pneg %p390
        %p2120 = pneg %p387
        %p2121 = pneg %p411
        %p2122 = pneg %p408
        %p2123 = pneg %p432
        %p2124 = pneg %p429
        %p2125 = pneg %p453
        %p2126 = pneg %p450
        %p2127 = pneg %p474
        %p2128 = pneg %p471
        %p2129 = pneg %p495
        %p2130 = pneg %p492
        %p2131 = pneg %p516
        %p2132 = pneg %p513
        %p2133 = pneg %p537
        %p2134 = pneg %p534
        %p2135 = pneg %p558
        %p2136 = pneg %p555
        %p2137 = pneg %p579
        %p2138 = pneg %p576
        %p2139 = pneg %p600
        %p2140 = pneg %p597
        %p2141 = pneg %p621
        %p2142 = pneg %p618
        %p2143 = pneg %p642
        %p2144 = pneg %p639
        %p2145 = pneg %p663
        %p2146 = pneg %p660
        %p2147 = pneg %p684
        %p2148 = pneg %p681
        %p2149 = pneg %p705
        %p2150 = pneg %p702
        %p2151 = pneg %p726
        %p2152 = pneg %p723
        %p2153 = pneg %p747
        %p2154 = pneg %p744
        %p2155 = pneg %p768
        %p2156 = pneg %p765
        %p2157 = pneg %p789
        %p2158 = pneg %p786
        %p2159 = pneg %p810
        %p2160 = pneg %p807
        %p2161 = pneg %p831
        %p2162 = pneg %p828
        %p2163 = pneg %p852
        %p2164 = pneg %p849
        %p2165 = pneg %p873
        %p2166 = pneg %p870
        %p2167 = pneg %p894
        %p2168 = pneg %p891
        %p2169 = pneg %p915
        %p2170 = pneg %p912
        %p2171 = pneg %p936
        %p2172 = pneg %p933
        %p2173 = pneg %p957
        %p2174 = pneg %p954
        %p2175 = pneg %p978
        %p2176 = pneg %p975
        %p2177 = pneg %p999
        %p2178 = pneg %p996
        %p2179 = pneg %p1020
        %p2180 = pneg %p1017
        %p2181 = pneg %p1041
        %p2182 = pneg %p1038
        %p2183 = pneg %p1062
        %p2184 = pneg %p1059
        %p2185 = pneg %p1083
        %p2186 = pneg %p1080
        %p2187 = pneg %p1104
        %p2188 = pneg %p1101
        %p2189 = pneg %p1125
        %p2190 = pneg %p1122
        %p2191 = pneg %p1146
        %p2192 = pneg %p1143
        %p2193 = pneg %p1167
        %p2194 = pneg %p1164
        %p2195 = pneg %p1188
        %p2196 = pneg %p1185
        %p2197 = pneg %p1209
        %p2198 = pneg %p1206
        %p2199 = pneg %p1230
        %p2200 = pneg %p1227
        %p2201 = pneg %p1251
        %p2202 = pneg %p1248
        %p2203 = pneg %p1272
        %p2204 = pneg %p1269
        %p2205 = pneg %p1293
        %p2206 = pneg %p1290
        %p2207 = pneg %p1314
        %p2208 = pneg %p1311
        %p2209 = scmp.lt.s32.totalorder %s139, 1
        %s2210 = scalar_select %p2209, %s139, 1
        %s2211 = smul.addr %s2210, 8
        %s2212 = scalar_lea.vmem %s1, %s2211
        %p2213 = scmp.lt.s32.totalorder %s139, 1
        %s2214 = scalar_select %p2213, %s139, 1
        %s2215 = smul.addr %s2214, 8
        %s2216 = scalar_lea.vmem %s7, %s2215
        %p2217 = scmp.lt.s32.totalorder %s139, 1
        %s2218 = scalar_select %p2217, %s139, 1
        %s2219 = smul.addr %s2218, 8
        %s2220 = scalar_lea.vmem %s9, %s2219
        %v2221 = vld [vmem:[%s15] sm:$0x1]
        %v2222 = vld [vmem:[%s17] sm:$0x1]
        %v2223 = vld [vmem:[%s19] sm:$0xff]
        %v2224 = vld [vmem:[%s19 + $0x8] sm:$0xff]
        %v2225 = vld [vmem:[#allocation6] sm:$0xff]
        %v2226 = vld [vmem:[#allocation6 + $0x8] sm:$0xff]
        %v2227 = vld [vmem:[#allocation9] sm:$0xff]
        %v2228 = vld [vmem:[#allocation9 + $0x8] sm:$0xff]
        %v2229 = vld [vmem:[%s25] sm:$0xff]
        %v2230 = vld [vmem:[%s25 + $0x8] sm:$0xff]
        %v2231 = vld [vmem:[%s25 + $0x10] sm:$0xff]
        %v2232 = vld [vmem:[%s25 + $0x18] sm:$0xff]
        %v2233 = vld [vmem:[%s27] sm:$0xff]
        %v2234 = vld [vmem:[%s27 + $0x8] sm:$0xff]
        %v2235 = vld [vmem:[%s27 + $0x10] sm:$0xff]
        %v2236 = vld [vmem:[%s27 + $0x18] sm:$0xff]
        %v2237 = vld [vmem:[#allocation11] sm:$0x1]
        %v2238 = vld [vmem:[#allocation12] sm:$0xff]
        %v2239 = vld [vmem:[#allocation12 + $0x8] sm:$0xff]
        %v2240 = vld [vmem:[%s33] sm:$0xff]
        %v2241 = vld [vmem:[%s33 + $0x8] sm:$0xff]
        %v2242 = vld [vmem:[#allocation14] sm:$0xff]
        %v2243 = vld [vmem:[#allocation14 + $0x8] sm:$0xff]
        %v2244 = vld [vmem:[#allocation15] sm:$0xff]
        %v2245 = vld [vmem:[#allocation15 + $0x8] sm:$0xff]
        %v2246 = vld [vmem:[#allocation17] sm:$0xff]
        %v2247 = vld [vmem:[#allocation17 + $0x8] sm:$0xff]
        %v2248 = vld [vmem:[#allocation18] sm:$0x1]
        %v2249 = vld [vmem:[#allocation20] sm:$0xff]
        %v2250 = vld [vmem:[#allocation20 + $0x8] sm:$0xff]
        %v2251 = vld [vmem:[#allocation21] sm:$0xff]
        %v2252 = vld [vmem:[#allocation21 + $0x8] sm:$0xff]
        %v2253 = vld [vmem:[#allocation23] sm:$0x1]
        %v2254 = vld [vmem:[#allocation24] sm:$0xff]
        %v2255 = vld [vmem:[#allocation24 + $0x8] sm:$0xff]
        %v2256 = vld [vmem:[#allocation26] sm:$0x1]
        %v2257 = vld [vmem:[%s53] sm:$0xff]
        %v2258 = vld [vmem:[%s53 + $0x8] sm:$0xff]
        %v2259 = vld [vmem:[%s53 + $0x10] sm:$0xff]
        %v2260 = vld [vmem:[%s53 + $0x18] sm:$0xff]
        %v2261 = vld [vmem:[#allocation27] sm:$0x1]
        %v2262 = vld [vmem:[#allocation29] sm:$0xff]
        %v2263 = vld [vmem:[#allocation29 + $0x8] sm:$0xff]
        %v2264 = vld [vmem:[#allocation30] sm:$0x1]
        %v2265 = vld [vmem:[#allocation32] sm:$0xff]
        %v2266 = vld [vmem:[#allocation32 + $0x8] sm:$0xff]
        %v2267 = vld [vmem:[#allocation33] sm:$0xff]
        %v2268 = vld [vmem:[#allocation33 + $0x8] sm:$0xff]
        %v2269 = vld [vmem:[%s65] sm:$0xff]
        %v2270 = vld [vmem:[%s65 + $0x8] sm:$0xff]
        %v2271 = vld [vmem:[%s67] sm:$0xff]
        %v2272 = vld [vmem:[%s67 + $0x8] sm:$0xff]
        %v2273 = vld [vmem:[%s67 + $0x10] sm:$0xff]
        %v2274 = vld [vmem:[%s67 + $0x18] sm:$0xff]
        %v2275 = vld [vmem:[%s69] sm:$0xff]
        %v2276 = vld [vmem:[%s69 + $0x8] sm:$0xff]
        %v2277 = vld [vmem:[%s69 + $0x10] sm:$0xff]
        %v2278 = vld [vmem:[%s69 + $0x18] sm:$0xff]
        %v2279 = vld [vmem:[#allocation35] sm:$0x1]
        %v2280 = vld [vmem:[#allocation36] sm:$0xff]
        %v2281 = vld [vmem:[#allocation36 + $0x8] sm:$0xff]
        %v2282 = vld [vmem:[#allocation38] sm:$0xff]
        %v2283 = vld [vmem:[#allocation38 + $0x8] sm:$0xff]
        %v2284 = vld [vmem:[#allocation39] sm:$0xff]
        %v2285 = vld [vmem:[#allocation39 + $0x8] sm:$0xff]
        %v2286 = vld [vmem:[%s79] sm:$0xff]
        %v2287 = vld [vmem:[%s79 + $0x8] sm:$0xff]
        %v2288 = vld [vmem:[%s79 + $0x10] sm:$0xff]
        %v2289 = vld [vmem:[%s79 + $0x18] sm:$0xff]
        %v2290 = vld [vmem:[%s81] sm:$0xff]
        %v2291 = vld [vmem:[%s81 + $0x8] sm:$0xff]
        %v2292 = vld [vmem:[%s81 + $0x10] sm:$0xff]
        %v2293 = vld [vmem:[%s81 + $0x18] sm:$0xff]
        %v2294 = vld [vmem:[#allocation41] sm:$0x1]
        %v2295 = vld [vmem:[#allocation42] sm:$0x1]
        %v2296 = vld [vmem:[#allocation44] sm:$0x1]
        %v2297 = vld [vmem:[#allocation45] sm:$0x1]
        %v2298 = vld [vmem:[#allocation45 + $0x1] sm:$0x1]
        %v2299 = vld [vmem:[#allocation45 + $0x2] sm:$0x1]
        %v2300 = vld [vmem:[#allocation47] sm:$0x1]
        %v2301 = vld [vmem:[#allocation47 + $0x1] sm:$0x1]
        %v2302 = vld [vmem:[#allocation47 + $0x2] sm:$0x1]
        %v2303 = vld [vmem:[#allocation48] sm:$0xff]
        %v2304 = vld [vmem:[#allocation48 + $0x8] sm:$0xff]
        %v2305 = vld [vmem:[#allocation50] sm:$0xff]
        %v2306 = vld [vmem:[#allocation50 + $0x8] sm:$0xff]
        %v2307 = vld [vmem:[%s97] sm:$0xff]
        %v2308 = vld [vmem:[%s97 + $0x8] sm:$0xff]
        %v2309 = vld [vmem:[#allocation51] sm:$0xff]
        %v2310 = vld [vmem:[#allocation51 + $0x8] sm:$0xff]
        %v2311 = vld [vmem:[%s101] sm:$0xff]
        %v2312 = vld [vmem:[%s101 + $0x8] sm:$0xff]
        %v2313 = vld [vmem:[%s101 + $0x10] sm:$0xff]
        %v2314 = vld [vmem:[%s101 + $0x18] sm:$0xff]
        %v2315 = vld [vmem:[%s103] sm:$0xff]
        %v2316 = vld [vmem:[%s103 + $0x8] sm:$0xff]
        %v2317 = vld [vmem:[%s103 + $0x10] sm:$0xff]
        %v2318 = vld [vmem:[%s103 + $0x18] sm:$0xff]
        %v2319 = vld [vmem:[%s105] sm:$0x1]
        %p2320 = scmp.eq.s32.totalorder %s139, 0
        // Predicated region
        $region429: #{tpu_custom_call.1} parent=299 // pred_check
          %p2321 = pneg %p2320
        $region430: #{tpu_custom_call.1} parent=299 // pred_check_branch
          %2323 = sbr.rel (%p2321) target = $region432
        $region431: #{tpu_custom_call.1} parent=299 // pred_region
          %vm2324 = vcmask 261120
          %2325 = vst.msk [vmem:[#allocation2] sm:$0xff] %vm2324, 0.0
          %vm2326 = vcmask 130048
          %2327 = vst.msk [vmem:[#allocation3] sm:$0xff] %vm2326, 0.0
          %2328 = vst.msk [vmem:[#allocation3 + $0x8] sm:$0xff] %vm2326, 0.0
          %2329 = vst.msk [vmem:[#allocation3 + $0x10] sm:$0xff] %vm2326, 0.0
        $region432: #{tpu_custom_call.1} parent=299 // pred_fallthru
          _
        %v2330 = vld [vmem:[%s2212] sm:$0xff]
        %v2331 = vld [vmem:[%s1918] sm:$0xff]
        %v2332 = vld [vmem:[%s1918 + $0x8] sm:$0xff]
        %v2333 = vld [vmem:[%s1918 + $0x10] sm:$0xff]
        %v2334 = vld [vmem:[%s1925] sm:$0xff]
        %v2335 = vld [vmem:[%s1925 + $0x8] sm:$0xff]
        %v2336 = vld [vmem:[%s1925 + $0x10] sm:$0xff]
        %v2337 = vld [vmem:[%s2216] sm:$0xff]
        %v2338 = vld [vmem:[%s2220] sm:$0xff]
        %v2339 = vmul.f32 %v2334, %v2334
        %v2340 = vmul.f32 %v2335, %v2335
        %v2341 = vmul.f32 %v2336, %v2336
        %vm2342 = vcmask 7168
        %v2343 = vsel %vm2342, %v2339, 0.0
        %v2344 = vsel %vm2342, %v2340, 0.0
        %v2345 = vadd.f32 %v2343, %v2344
        %v2346 = vsel %vm2342, %v2341, 0.0
        %v2347 = vadd.f32 %v2345, %v2346
        %v2348 = vrsqrt.pop %v2347
        %v2349 = vmul.f32 %v2348, %v2347
        %v2350 = vmul.f32 %v2349, %v2348
        %v2351 = vmul.f32 0.5, %v2350
        %v2352 = vsub.f32 1.5, %v2351
        %v2353 = vmul.f32 %v2348, %v2352
        %v2354 = vmul.f32 %v2347, %v2353
        %vm2355 = vcmp.eq.f32.partialorder %v2347, inf
        %v2356 = vsel %vm2355, %v2347, %v2354
        %vm2357 = vcmp.eq.f32.partialorder %v2347, 0.0
        %v2358 = vand.u32 %v2347, 2147483648
        %v2359 = vsel %vm2357, %v2358, %v2356
        %2361 = vset.pattern.permute.xlu0 0
        %2362 = vperm.xlu0 %2361, %v2359
        %v2363 = vpop.permute.xlu0 %2362
        %v2366 = vperm.slane %v2221, 0
        %v2368 = vsub.f32 %v2363, %v2366
        %v2369 = vmul.f32 %v2368, -0.605
        %v2370 = vmul.f32 %v2369, %v2368
        %v2371 = vmul.f32 %v2370, 1.442695
        %v2372 = vpow.pop %v2371
        %2374 = vrot.lane.b32.xlu0 %v2337, 12
        %v2375 = vpop.permute.xlu0 %2374
        %vm2377 = vcmask 97280
        %v2378 = vsel %vm2377, %v2372, %v2375
        %v2379 = vadd.f32 %v2359, 1e-07
        %v2380 = vrcp.pop %v2379
        %v2381 = vmul.f32 %v2379, %v2380
        %v2382 = vsub.f32 1.0, %v2381
        %v2383 = vmul.f32 %v2380, %v2382
        %v2384 = vadd.f32 %v2380, %v2383
        %vm2385 = vweird.f32 %v2379
        %vm2386 = vweird.f32 %v2380
        %vm2387 = vmor %vm2385, %vm2386
        %v2388 = vsel %vm2387, %v2380, %v2384
        %v2389 = vand.u32 2147483647, %v2379
        %vm2390 = vcmp.eq.f32.partialorder %v2389, 8.507059e+37
        %v2391 = vand.u32 %v2379, 2147483648
        %v2392 = vor.u32 1.1754944e-38, %v2391
        %v2393 = vsel %vm2390, %v2392, %v2388
        %v2394 = vmul.f32 %v2334, %v2393
        %v2395 = vmul.f32 %v2335, %v2393
        %v2396 = vmul.f32 %v2336, %v2393
        %2398 = vset.pattern.permute.xlu0 0
        %2399 = vperm.xlu0 %2398, %v2394
        %v2400 = vpop.permute.xlu0 %2399
        %2403 = vset.pattern.permute.xlu0 0
        %2404 = vperm.xlu0 %2403, %v2395
        %v2405 = vpop.permute.xlu0 %2404
        %2408 = vset.pattern.permute.xlu0 0
        %2409 = vperm.xlu0 %2408, %v2396
        %v2410 = vpop.permute.xlu0 %2409
        %v2413 = vperm.slane %v2222, 0
        %v2415 = vmul.f32 %v2400, %v2413
        %v2416 = vmul.f32 %v2405, %v2413
        %v2417 = vmul.f32 %v2410, %v2413
        %vm2418 = vcmask 130048
        %v2420 = vsel %vm2418, %v2331, 0
        %v2423 = vsel %vm2418, %v2332, 0
        %v2426 = vsel %vm2418, %v2333, 0
        %2428 = vmatpush.msra.mxu0 0.0
        %2429 = vmatpush.msra.mxu0 0.0
        %2430 = vmatpush.msra.mxu0 0.0
        %2431 = vmatpush.msra.mxu0 0.0
        %2432 = vmatpush.msra.mxu0 0.0
        %2433 = vmatpush.msra.mxu0 0.0
        %2434 = vmatpush.msra.mxu0 0.0
        %2435 = vmatpush.msra.mxu0 0.0
        %2436 = vmatpush.msra.mxu0 0.0
        %2437 = vmatpush.msra.mxu0 0.0
        %2438 = vmatpush.msra.mxu0 0.0
        %2439 = vmatpush.msra.mxu0 0.0
        %2440 = vmatpush.msra.mxu0 0.0
        %2441 = vmatpush.msra.mxu0 0.0
        %2442 = vmatpush.msra.mxu0 %v2224
        %2443 = vmatpush.msra.mxu0 %v2223
        %2444 = vmatmul.f32.gmra.mxu0 %v2420
        %v2445 = vpop.f32.mrf.mxu0
        %v2446 = vadd.f32 0.0, %v2445
        %2447 = vmatmul.f32.gmra.mxu0 %v2423
        %v2448 = vpop.f32.mrf.mxu0
        %v2449 = vadd.f32 0.0, %v2448
        %2450 = vmatmul.f32.gmra.mxu0 %v2426
        %v2451 = vpop.f32.mrf.mxu0
        %v2452 = vadd.f32 0.0, %v2451
        %2453 = vdwg.mxu0
        %v2454 = vmul.f32 %v2446, %v2446
        %v2455 = vmul.f32 %v2449, %v2449
        %v2456 = vmul.f32 %v2452, %v2452
        %v2457 = vsel %vm2418, %v2454, 0.0
        %v2458 = vsel %vm2418, %v2455, 0.0
        %v2459 = vadd.f32 %v2457, %v2458
        %v2460 = vsel %vm2418, %v2456, 0.0
        %v2461 = vadd.f32 %v2459, %v2460
        %v2462 = vrsqrt.pop %v2461
        %v2463 = vmul.f32 %v2462, %v2461
        %v2464 = vmul.f32 %v2463, %v2462
        %v2465 = vmul.f32 0.5, %v2464
        %v2466 = vsub.f32 1.5, %v2465
        %v2467 = vmul.f32 %v2462, %v2466
        %v2468 = vmul.f32 %v2461, %v2467
        %vm2469 = vcmp.eq.f32.partialorder %v2461, inf
        %v2470 = vsel %vm2469, %v2461, %v2468
        %vm2471 = vcmp.eq.f32.partialorder %v2461, 0.0
        %v2472 = vand.u32 %v2461, 2147483648
        %v2473 = vsel %vm2471, %v2472, %v2470
        %vm2474 = vcmask 261120
        %v2476 = vsel %vm2474, %v2330, 0
        %2478 = vmatpush.msra.mxu0 0.0
        %2479 = vmatpush.msra.mxu0 0.0
        %2480 = vmatpush.msra.mxu0 0.0
        %2481 = vmatpush.msra.mxu0 0.0
        %2482 = vmatpush.msra.mxu0 0.0
        %2483 = vmatpush.msra.mxu0 0.0
        %2484 = vmatpush.msra.mxu0 0.0
        %2485 = vmatpush.msra.mxu0 0.0
        %2486 = vmatpush.msra.mxu0 0.0
        %2487 = vmatpush.msra.mxu0 0.0
        %2488 = vmatpush.msra.mxu0 0.0
        %2489 = vmatpush.msra.mxu0 0.0
        %2490 = vmatpush.msra.mxu0 %v2232
        %2491 = vmatpush.msra.mxu0 %v2231
        %2492 = vmatpush.msra.mxu0 %v2230
        %2493 = vmatpush.msra.mxu0 %v2229
        %2494 = vmatmul.f32.gmra.mxu0 %v2476
        %v2495 = vpop.f32.mrf.mxu0
        %v2496 = vadd.f32 0.0, %v2495
        %2497 = vdwg.mxu0
        %v2499 = vsel %vm2418, %v2473, 0
        %2501 = vmatpush.msra.mxu0 0.0
        %2502 = vmatpush.msra.mxu0 0.0
        %2503 = vmatpush.msra.mxu0 0.0
        %2504 = vmatpush.msra.mxu0 0.0
        %2505 = vmatpush.msra.mxu0 0.0
        %2506 = vmatpush.msra.mxu0 0.0
        %2507 = vmatpush.msra.mxu0 0.0
        %2508 = vmatpush.msra.mxu0 0.0
        %2509 = vmatpush.msra.mxu0 0.0
        %2510 = vmatpush.msra.mxu0 0.0
        %2511 = vmatpush.msra.mxu0 0.0
        %2512 = vmatpush.msra.mxu0 0.0
        %2513 = vmatpush.msra.mxu0 0.0
        %2514 = vmatpush.msra.mxu0 0.0
        %2515 = vmatpush.msra.mxu0 %v2228
        %2516 = vmatpush.msra.mxu0 %v2227
        %2517 = vmatmul.f32.gmra.mxu0 %v2499
        %v2518 = vpop.f32.mrf.mxu0
        %v2519 = vadd.f32 %v2496, %v2518
        %2520 = vdwg.mxu0
        %v2522 = vsel %vm2418, %v2446, 0
        %v2525 = vsel %vm2418, %v2449, 0
        %v2528 = vsel %vm2418, %v2452, 0
        %2530 = vmatpush.msra.mxu0 0.0
        %2531 = vmatpush.msra.mxu0 0.0
        %2532 = vmatpush.msra.mxu0 0.0
        %2533 = vmatpush.msra.mxu0 0.0
        %2534 = vmatpush.msra.mxu0 0.0
        %2535 = vmatpush.msra.mxu0 0.0
        %2536 = vmatpush.msra.mxu0 0.0
        %2537 = vmatpush.msra.mxu0 0.0
        %2538 = vmatpush.msra.mxu0 0.0
        %2539 = vmatpush.msra.mxu0 0.0
        %2540 = vmatpush.msra.mxu0 0.0
        %2541 = vmatpush.msra.mxu0 0.0
        %2542 = vmatpush.msra.mxu0 0.0
        %2543 = vmatpush.msra.mxu0 0.0
        %2544 = vmatpush.msra.mxu0 %v2226
        %2545 = vmatpush.msra.mxu0 %v2225
        %2546 = vmatmul.f32.gmra.mxu0 %v2522
        %v2547 = vpop.f32.mrf.mxu0
        %v2548 = vadd.f32 0.0, %v2547
        %2549 = vmatmul.f32.gmra.mxu0 %v2525
        %v2550 = vpop.f32.mrf.mxu0
        %v2551 = vadd.f32 0.0, %v2550
        %2552 = vmatmul.f32.gmra.mxu0 %v2528
        %v2553 = vpop.f32.mrf.mxu0
        %v2554 = vadd.f32 0.0, %v2553
        %2555 = vdwg.mxu0
        %v2557 = vperm.slane %v2237, 0
        %v2560 = vsel %vm2474, %v2519, 0
        %2562 = vmatpush.msra.mxu0 0.0
        %2563 = vmatpush.msra.mxu0 0.0
        %2564 = vmatpush.msra.mxu0 0.0
        %2565 = vmatpush.msra.mxu0 0.0
        %2566 = vmatpush.msra.mxu0 0.0
        %2567 = vmatpush.msra.mxu0 0.0
        %2568 = vmatpush.msra.mxu0 0.0
        %2569 = vmatpush.msra.mxu0 0.0
        %2570 = vmatpush.msra.mxu0 0.0
        %2571 = vmatpush.msra.mxu0 0.0
        %2572 = vmatpush.msra.mxu0 0.0
        %2573 = vmatpush.msra.mxu0 0.0
        %2574 = vmatpush.msra.mxu0 %v2236
        %2575 = vmatpush.msra.mxu0 %v2235
        %2576 = vmatpush.msra.mxu0 %v2234
        %2577 = vmatpush.msra.mxu0 %v2233
        %2578 = vmatmul.f32.gmra.mxu0 %v2560
        %v2579 = vpop.f32.mrf.mxu0
        %v2580 = vadd.f32 %v2557, %v2579
        %2581 = vdwg.mxu0
        %v2582 = vsub.f32 0.0, %v2580
        %v2583 = vmul.f32 %v2582, 1.442695
        %v2584 = vpow.pop %v2583
        %v2585 = vadd.f32 %v2584, 1.0
        %v2586 = vrcp.pop %v2585
        %v2587 = vmul.f32 %v2586, %v2548
        %v2588 = vmul.f32 %v2586, %v2551
        %v2589 = vmul.f32 %v2586, %v2554
        %v2591 = vsel %vm2418, %v2415, 0
        %v2594 = vsel %vm2418, %v2416, 0
        %v2597 = vsel %vm2418, %v2417, 0
        %2599 = vmatpush.msra.mxu0 0.0
        %2600 = vmatpush.msra.mxu0 0.0
        %2601 = vmatpush.msra.mxu0 0.0
        %2602 = vmatpush.msra.mxu0 0.0
        %2603 = vmatpush.msra.mxu0 0.0
        %2604 = vmatpush.msra.mxu0 0.0
        %2605 = vmatpush.msra.mxu0 0.0
        %2606 = vmatpush.msra.mxu0 0.0
        %2607 = vmatpush.msra.mxu0 0.0
        %2608 = vmatpush.msra.mxu0 0.0
        %2609 = vmatpush.msra.mxu0 0.0
        %2610 = vmatpush.msra.mxu0 0.0
        %2611 = vmatpush.msra.mxu0 0.0
        %2612 = vmatpush.msra.mxu0 0.0
        %2613 = vmatpush.msra.mxu0 %v2239
        %2614 = vmatpush.msra.mxu0 %v2238
        %2615 = vmatmul.f32.gmra.mxu0 %v2591
        %v2616 = vpop.f32.mrf.mxu0
        %v2617 = vadd.f32 0.0, %v2616
        %2618 = vmatmul.f32.gmra.mxu0 %v2594
        %v2619 = vpop.f32.mrf.mxu0
        %v2620 = vadd.f32 0.0, %v2619
        %2621 = vmatmul.f32.gmra.mxu0 %v2597
        %v2622 = vpop.f32.mrf.mxu0
        %v2623 = vadd.f32 0.0, %v2622
        %2624 = vdwg.mxu0
        %v2625 = vmul.f32 %v2617, %v2617
        %v2626 = vmul.f32 %v2620, %v2620
        %v2627 = vmul.f32 %v2623, %v2623
        %v2628 = vsel %vm2418, %v2625, 0.0
        %v2629 = vsel %vm2418, %v2626, 0.0
        %v2630 = vadd.f32 %v2628, %v2629
        %v2631 = vsel %vm2418, %v2627, 0.0
        %v2632 = vadd.f32 %v2630, %v2631
        %v2633 = vrsqrt.pop %v2632
        %v2634 = vmul.f32 %v2633, %v2632
        %v2635 = vmul.f32 %v2634, %v2633
        %v2636 = vmul.f32 0.5, %v2635
        %v2637 = vsub.f32 1.5, %v2636
        %v2638 = vmul.f32 %v2633, %v2637
        %v2639 = vmul.f32 %v2632, %v2638
        %vm2640 = vcmp.eq.f32.partialorder %v2632, inf
        %v2641 = vsel %vm2640, %v2632, %v2639
        %vm2642 = vcmp.eq.f32.partialorder %v2632, 0.0
        %v2643 = vand.u32 %v2632, 2147483648
        %v2644 = vsel %vm2642, %v2643, %v2641
        %v2646 = vsel %vm2418, %v2378, 0
        %2648 = vmatpush.msra.mxu0 0.0
        %2649 = vmatpush.msra.mxu0 0.0
        %2650 = vmatpush.msra.mxu0 0.0
        %2651 = vmatpush.msra.mxu0 0.0
        %2652 = vmatpush.msra.mxu0 0.0
        %2653 = vmatpush.msra.mxu0 0.0
        %2654 = vmatpush.msra.mxu0 0.0
        %2655 = vmatpush.msra.mxu0 0.0
        %2656 = vmatpush.msra.mxu0 0.0
        %2657 = vmatpush.msra.mxu0 0.0
        %2658 = vmatpush.msra.mxu0 0.0
        %2659 = vmatpush.msra.mxu0 0.0
        %2660 = vmatpush.msra.mxu0 0.0
        %2661 = vmatpush.msra.mxu0 0.0
        %2662 = vmatpush.msra.mxu0 %v2245
        %2663 = vmatpush.msra.mxu0 %v2244
        %2664 = vmatmul.f32.gmra.mxu0 %v2646
        %v2665 = vpop.f32.mrf.mxu0
        %v2666 = vadd.f32 0.0, %v2665
        %2667 = vdwg.mxu0
        %v2669 = vsel %vm2418, %v2644, 0
        %2671 = vmatpush.msra.mxu0 0.0
        %2672 = vmatpush.msra.mxu0 0.0
        %2673 = vmatpush.msra.mxu0 0.0
        %2674 = vmatpush.msra.mxu0 0.0
        %2675 = vmatpush.msra.mxu0 0.0
        %2676 = vmatpush.msra.mxu0 0.0
        %2677 = vmatpush.msra.mxu0 0.0
        %2678 = vmatpush.msra.mxu0 0.0
        %2679 = vmatpush.msra.mxu0 0.0
        %2680 = vmatpush.msra.mxu0 0.0
        %2681 = vmatpush.msra.mxu0 0.0
        %2682 = vmatpush.msra.mxu0 0.0
        %2683 = vmatpush.msra.mxu0 0.0
        %2684 = vmatpush.msra.mxu0 0.0
        %2685 = vmatpush.msra.mxu0 %v2243
        %2686 = vmatpush.msra.mxu0 %v2242
        %2687 = vmatmul.f32.gmra.mxu0 %v2669
        %v2688 = vpop.f32.mrf.mxu0
        %v2689 = vadd.f32 %v2666, %v2688
        %2690 = vdwg.mxu0
        %v2692 = vsel %vm2418, %v2617, 0
        %v2695 = vsel %vm2418, %v2620, 0
        %v2698 = vsel %vm2418, %v2623, 0
        %2700 = vmatpush.msra.mxu0 0.0
        %2701 = vmatpush.msra.mxu0 0.0
        %2702 = vmatpush.msra.mxu0 0.0
        %2703 = vmatpush.msra.mxu0 0.0
        %2704 = vmatpush.msra.mxu0 0.0
        %2705 = vmatpush.msra.mxu0 0.0
        %2706 = vmatpush.msra.mxu0 0.0
        %2707 = vmatpush.msra.mxu0 0.0
        %2708 = vmatpush.msra.mxu0 0.0
        %2709 = vmatpush.msra.mxu0 0.0
        %2710 = vmatpush.msra.mxu0 0.0
        %2711 = vmatpush.msra.mxu0 0.0
        %2712 = vmatpush.msra.mxu0 0.0
        %2713 = vmatpush.msra.mxu0 0.0
        %2714 = vmatpush.msra.mxu0 %v2241
        %2715 = vmatpush.msra.mxu0 %v2240
        %2716 = vmatmul.f32.gmra.mxu0 %v2692
        %v2717 = vpop.f32.mrf.mxu0
        %v2718 = vadd.f32 0.0, %v2717
        %2719 = vmatmul.f32.gmra.mxu0 %v2695
        %v2720 = vpop.f32.mrf.mxu0
        %v2721 = vadd.f32 0.0, %v2720
        %2722 = vmatmul.f32.gmra.mxu0 %v2698
        %v2723 = vpop.f32.mrf.mxu0
        %v2724 = vadd.f32 0.0, %v2723
        %2725 = vdwg.mxu0
        %v2727 = vperm.slane %v2248, 0
        %v2730 = vsel %vm2418, %v2689, 0
        %2732 = vmatpush.msra.mxu0 0.0
        %2733 = vmatpush.msra.mxu0 0.0
        %2734 = vmatpush.msra.mxu0 0.0
        %2735 = vmatpush.msra.mxu0 0.0
        %2736 = vmatpush.msra.mxu0 0.0
        %2737 = vmatpush.msra.mxu0 0.0
        %2738 = vmatpush.msra.mxu0 0.0
        %2739 = vmatpush.msra.mxu0 0.0
        %2740 = vmatpush.msra.mxu0 0.0
        %2741 = vmatpush.msra.mxu0 0.0
        %2742 = vmatpush.msra.mxu0 0.0
        %2743 = vmatpush.msra.mxu0 0.0
        %2744 = vmatpush.msra.mxu0 0.0
        %2745 = vmatpush.msra.mxu0 0.0
        %2746 = vmatpush.msra.mxu0 %v2247
        %2747 = vmatpush.msra.mxu0 %v2246
        %2748 = vmatmul.f32.gmra.mxu0 %v2730
        %v2749 = vpop.f32.mrf.mxu0
        %v2750 = vadd.f32 %v2727, %v2749
        %2751 = vdwg.mxu0
        %v2752 = vsub.f32 0.0, %v2750
        %v2753 = vmul.f32 %v2752, 1.442695
        %v2754 = vpow.pop %v2753
        %v2755 = vadd.f32 %v2754, 1.0
        %v2756 = vrcp.pop %v2755
        %v2757 = vmul.f32 %v2756, %v2718
        %v2758 = vmul.f32 %v2756, %v2721
        %v2759 = vmul.f32 %v2756, %v2724
        %v2761 = vsel %vm2418, %v2757, 0
        %v2764 = vsel %vm2418, %v2758, 0
        %v2767 = vsel %vm2418, %v2759, 0
        %2769 = vmatpush.msra.mxu0 0.0
        %2770 = vmatpush.msra.mxu0 0.0
        %2771 = vmatpush.msra.mxu0 0.0
        %2772 = vmatpush.msra.mxu0 0.0
        %2773 = vmatpush.msra.mxu0 0.0
        %2774 = vmatpush.msra.mxu0 0.0
        %2775 = vmatpush.msra.mxu0 0.0
        %2776 = vmatpush.msra.mxu0 0.0
        %2777 = vmatpush.msra.mxu0 0.0
        %2778 = vmatpush.msra.mxu0 0.0
        %2779 = vmatpush.msra.mxu0 0.0
        %2780 = vmatpush.msra.mxu0 0.0
        %2781 = vmatpush.msra.mxu0 0.0
        %2782 = vmatpush.msra.mxu0 0.0
        %2783 = vmatpush.msra.mxu0 %v2250
        %2784 = vmatpush.msra.mxu0 %v2249
        %2785 = vmatmul.f32.gmra.mxu0 %v2761
        %v2786 = vpop.f32.mrf.mxu0
        %v2787 = vadd.f32 0.0, %v2786
        %2788 = vmatmul.f32.gmra.mxu0 %v2764
        %v2789 = vpop.f32.mrf.mxu0
        %v2790 = vadd.f32 0.0, %v2789
        %2791 = vmatmul.f32.gmra.mxu0 %v2767
        %v2792 = vpop.f32.mrf.mxu0
        %v2793 = vadd.f32 0.0, %v2792
        %2794 = vdwg.mxu0
        %v2795 = vmul.f32 %v2757, %v2787
        %v2796 = vmul.f32 %v2758, %v2790
        %v2797 = vmul.f32 %v2759, %v2793
        %v2798 = vsel %vm2418, %v2795, 0.0
        %v2799 = vsel %vm2418, %v2796, 0.0
        %v2800 = vadd.f32 %v2798, %v2799
        %v2801 = vsel %vm2418, %v2797, 0.0
        %v2802 = vadd.f32 %v2800, %v2801
        %vm2803 = vcmp.ge.f32.partialorder %v2802, 0.0
        %v2804 = vsel %vm2803, 1, 0
        %v2805 = vcvt.s32.f32 %v2804
        %v2806 = vmul.f32 %v2787, %v2787
        %v2807 = vmul.f32 %v2790, %v2790
        %v2808 = vmul.f32 %v2793, %v2793
        %v2809 = vsel %vm2418, %v2806, 0.0
        %v2810 = vsel %vm2418, %v2807, 0.0
        %v2811 = vadd.f32 %v2809, %v2810
        %v2812 = vsel %vm2418, %v2808, 0.0
        %v2813 = vadd.f32 %v2811, %v2812
        %v2814 = vadd.f32 %v2813, 1e-06
        %v2815 = vrcp.pop %v2814
        %v2816 = vmul.f32 %v2814, %v2815
        %v2817 = vsub.f32 1.0, %v2816
        %v2818 = vmul.f32 %v2815, %v2817
        %v2819 = vadd.f32 %v2815, %v2818
        %vm2820 = vweird.f32 %v2814
        %vm2821 = vweird.f32 %v2815
        %vm2822 = vmor %vm2820, %vm2821
        %v2823 = vsel %vm2822, %v2815, %v2819
        %v2824 = vand.u32 2147483647, %v2814
        %vm2825 = vcmp.eq.f32.partialorder %v2824, 8.507059e+37
        %v2826 = vand.u32 %v2814, 2147483648
        %v2827 = vor.u32 1.1754944e-38, %v2826
        %v2828 = vsel %vm2825, %v2827, %v2823
        %v2829 = vmul.f32 %v2802, %v2828
        %v2830 = vmul.f32 %v2829, %v2787
        %v2831 = vmul.f32 %v2829, %v2790
        %v2832 = vmul.f32 %v2829, %v2793
        %v2833 = vsub.f32 %v2757, %v2830
        %v2834 = vsub.f32 %v2758, %v2831
        %v2835 = vsub.f32 %v2759, %v2832
        %v2836 = vmul.f32 %v2757, 0.2
        %v2837 = vmul.f32 %v2758, 0.2
        %v2838 = vmul.f32 %v2759, 0.2
        %v2839 = vmul.f32 %v2805, %v2757
        %v2840 = vmul.f32 %v2805, %v2758
        %v2841 = vmul.f32 %v2805, %v2759
        %v2842 = vsub.f32 1.0, %v2805
        %v2843 = vmul.f32 %v2842, %v2833
        %v2844 = vmul.f32 %v2842, %v2834
        %v2845 = vmul.f32 %v2842, %v2835
        %v2846 = vadd.f32 %v2839, %v2843
        %v2847 = vadd.f32 %v2840, %v2844
        %v2848 = vadd.f32 %v2841, %v2845
        %v2849 = vmul.f32 %v2846, 0.8
        %v2850 = vmul.f32 %v2847, 0.8
        %v2851 = vmul.f32 %v2848, 0.8
        %v2852 = vadd.f32 %v2836, %v2849
        %v2853 = vadd.f32 %v2837, %v2850
        %v2854 = vadd.f32 %v2838, %v2851
        %vm2855 = vcmp.ge.f32.partialorder %v2689, 0.0
        %v2856 = vmul.f32 %v2689, 0.01
        %v2857 = vsel %vm2855, %v2689, %v2856
        %v2859 = vperm.slane %v2253, 0
        %v2862 = vsel %vm2418, %v2857, 0
        %2864 = vmatpush.msra.mxu0 0.0
        %2865 = vmatpush.msra.mxu0 0.0
        %2866 = vmatpush.msra.mxu0 0.0
        %2867 = vmatpush.msra.mxu0 0.0
        %2868 = vmatpush.msra.mxu0 0.0
        %2869 = vmatpush.msra.mxu0 0.0
        %2870 = vmatpush.msra.mxu0 0.0
        %2871 = vmatpush.msra.mxu0 0.0
        %2872 = vmatpush.msra.mxu0 0.0
        %2873 = vmatpush.msra.mxu0 0.0
        %2874 = vmatpush.msra.mxu0 0.0
        %2875 = vmatpush.msra.mxu0 0.0
        %2876 = vmatpush.msra.mxu0 0.0
        %2877 = vmatpush.msra.mxu0 0.0
        %2878 = vmatpush.msra.mxu0 %v2252
        %2879 = vmatpush.msra.mxu0 %v2251
        %2880 = vmatmul.f32.gmra.mxu0 %v2862
        %v2881 = vpop.f32.mrf.mxu0
        %v2882 = vadd.f32 %v2859, %v2881
        %2883 = vdwg.mxu0
        %v2884 = vmul.f32 %v2519, %v2882
        %v2886 = vperm.slane %v2256, 0
        %2888 = vmatpush.msra.mxu0 0.0
        %2889 = vmatpush.msra.mxu0 0.0
        %2890 = vmatpush.msra.mxu0 0.0
        %2891 = vmatpush.msra.mxu0 0.0
        %2892 = vmatpush.msra.mxu0 0.0
        %2893 = vmatpush.msra.mxu0 0.0
        %2894 = vmatpush.msra.mxu0 0.0
        %2895 = vmatpush.msra.mxu0 0.0
        %2896 = vmatpush.msra.mxu0 0.0
        %2897 = vmatpush.msra.mxu0 0.0
        %2898 = vmatpush.msra.mxu0 0.0
        %2899 = vmatpush.msra.mxu0 0.0
        %2900 = vmatpush.msra.mxu0 0.0
        %2901 = vmatpush.msra.mxu0 0.0
        %2902 = vmatpush.msra.mxu0 %v2255
        %2903 = vmatpush.msra.mxu0 %v2254
        %2904 = vmatmul.f32.gmra.mxu0 %v2862
        %v2905 = vpop.f32.mrf.mxu0
        %v2906 = vadd.f32 %v2886, %v2905
        %2907 = vdwg.mxu0
        %v2909 = vperm.slane %v2261, 0
        %2911 = vmatpush.msra.mxu0 0.0
        %2912 = vmatpush.msra.mxu0 0.0
        %2913 = vmatpush.msra.mxu0 0.0
        %2914 = vmatpush.msra.mxu0 0.0
        %2915 = vmatpush.msra.mxu0 0.0
        %2916 = vmatpush.msra.mxu0 0.0
        %2917 = vmatpush.msra.mxu0 0.0
        %2918 = vmatpush.msra.mxu0 0.0
        %2919 = vmatpush.msra.mxu0 0.0
        %2920 = vmatpush.msra.mxu0 0.0
        %2921 = vmatpush.msra.mxu0 0.0
        %2922 = vmatpush.msra.mxu0 0.0
        %2923 = vmatpush.msra.mxu0 %v2260
        %2924 = vmatpush.msra.mxu0 %v2259
        %2925 = vmatpush.msra.mxu0 %v2258
        %2926 = vmatpush.msra.mxu0 %v2257
        %2927 = vmatmul.f32.gmra.mxu0 %v2560
        %v2928 = vpop.f32.mrf.mxu0
        %v2929 = vadd.f32 %v2909, %v2928
        %2930 = vdwg.mxu0
        %v2931 = vmul.f32 %v2906, %v2587
        %v2932 = vmul.f32 %v2906, %v2588
        %v2933 = vmul.f32 %v2906, %v2589
        %v2935 = vsel %vm2418, %v2852, 0
        %v2938 = vsel %vm2418, %v2853, 0
        %v2941 = vsel %vm2418, %v2854, 0
        %2943 = vmatpush.msra.mxu0 0.0
        %2944 = vmatpush.msra.mxu0 0.0
        %2945 = vmatpush.msra.mxu0 0.0
        %2946 = vmatpush.msra.mxu0 0.0
        %2947 = vmatpush.msra.mxu0 0.0
        %2948 = vmatpush.msra.mxu0 0.0
        %2949 = vmatpush.msra.mxu0 0.0
        %2950 = vmatpush.msra.mxu0 0.0
        %2951 = vmatpush.msra.mxu0 0.0
        %2952 = vmatpush.msra.mxu0 0.0
        %2953 = vmatpush.msra.mxu0 0.0
        %2954 = vmatpush.msra.mxu0 0.0
        %2955 = vmatpush.msra.mxu0 0.0
        %2956 = vmatpush.msra.mxu0 0.0
        %2957 = vmatpush.msra.mxu0 %v2263
        %2958 = vmatpush.msra.mxu0 %v2262
        %2959 = vmatmul.f32.gmra.mxu0 %v2935
        %v2960 = vpop.f32.mrf.mxu0
        %v2961 = vadd.f32 0.0, %v2960
        %2962 = vmatmul.f32.gmra.mxu0 %v2938
        %v2963 = vpop.f32.mrf.mxu0
        %v2964 = vadd.f32 0.0, %v2963
        %2965 = vmatmul.f32.gmra.mxu0 %v2941
        %v2966 = vpop.f32.mrf.mxu0
        %v2967 = vadd.f32 0.0, %v2966
        %2968 = vdwg.mxu0
        %v2970 = vperm.slane %v2264, 0
        %v2972 = vadd.f32 %v2961, %v2970
        %v2973 = vadd.f32 %v2964, %v2970
        %v2974 = vadd.f32 %v2967, %v2970
        %v2975 = vmul.f32 %v2929, %v2972
        %v2976 = vmul.f32 %v2929, %v2973
        %v2977 = vmul.f32 %v2929, %v2974
        %v2978 = vadd.f32 %v2931, %v2975
        %v2979 = vadd.f32 %v2932, %v2976
        %v2980 = vadd.f32 %v2933, %v2977
        %v2982 = vsel %vm2418, %v2978, 0
        %v2985 = vsel %vm2418, %v2979, 0
        %v2988 = vsel %vm2418, %v2980, 0
        %2990 = vmatpush.msra.mxu0 0.0
        %2991 = vmatpush.msra.mxu0 0.0
        %2992 = vmatpush.msra.mxu0 0.0
        %2993 = vmatpush.msra.mxu0 0.0
        %2994 = vmatpush.msra.mxu0 0.0
        %2995 = vmatpush.msra.mxu0 0.0
        %2996 = vmatpush.msra.mxu0 0.0
        %2997 = vmatpush.msra.mxu0 0.0
        %2998 = vmatpush.msra.mxu0 0.0
        %2999 = vmatpush.msra.mxu0 0.0
        %3000 = vmatpush.msra.mxu0 0.0
        %3001 = vmatpush.msra.mxu0 0.0
        %3002 = vmatpush.msra.mxu0 0.0
        %3003 = vmatpush.msra.mxu0 0.0
        %3004 = vmatpush.msra.mxu0 %v2266
        %3005 = vmatpush.msra.mxu0 %v2265
        %3006 = vmatmul.f32.gmra.mxu0 %v2982
        %v3007 = vpop.f32.mrf.mxu0
        %v3008 = vadd.f32 0.0, %v3007
        %3009 = vmatmul.f32.gmra.mxu0 %v2985
        %v3010 = vpop.f32.mrf.mxu0
        %v3011 = vadd.f32 0.0, %v3010
        %3012 = vmatmul.f32.gmra.mxu0 %v2988
        %v3013 = vpop.f32.mrf.mxu0
        %v3014 = vadd.f32 0.0, %v3013
        %3015 = vdwg.mxu0
        %v3016 = vmul.f32 %v3008, %v3008
        %v3017 = vmul.f32 %v3011, %v3011
        %v3018 = vmul.f32 %v3014, %v3014
        %v3019 = vsel %vm2418, %v3016, 0.0
        %v3020 = vsel %vm2418, %v3017, 0.0
        %v3021 = vadd.f32 %v3019, %v3020
        %v3022 = vsel %vm2418, %v3018, 0.0
        %v3023 = vadd.f32 %v3021, %v3022
        %v3024 = vrsqrt.pop %v3023
        %v3025 = vmul.f32 %v3024, %v3023
        %v3026 = vmul.f32 %v3025, %v3024
        %v3027 = vmul.f32 0.5, %v3026
        %v3028 = vsub.f32 1.5, %v3027
        %v3029 = vmul.f32 %v3024, %v3028
        %v3030 = vmul.f32 %v3023, %v3029
        %vm3031 = vcmp.eq.f32.partialorder %v3023, inf
        %v3032 = vsel %vm3031, %v3023, %v3030
        %vm3033 = vcmp.eq.f32.partialorder %v3023, 0.0
        %v3034 = vand.u32 %v3023, 2147483648
        %v3035 = vsel %vm3033, %v3034, %v3032
        %v3037 = vsel %vm2474, %v2884, 0
        %3039 = vmatpush.msra.mxu0 0.0
        %3040 = vmatpush.msra.mxu0 0.0
        %3041 = vmatpush.msra.mxu0 0.0
        %3042 = vmatpush.msra.mxu0 0.0
        %3043 = vmatpush.msra.mxu0 0.0
        %3044 = vmatpush.msra.mxu0 0.0
        %3045 = vmatpush.msra.mxu0 0.0
        %3046 = vmatpush.msra.mxu0 0.0
        %3047 = vmatpush.msra.mxu0 0.0
        %3048 = vmatpush.msra.mxu0 0.0
        %3049 = vmatpush.msra.mxu0 0.0
        %3050 = vmatpush.msra.mxu0 0.0
        %3051 = vmatpush.msra.mxu0 %v2274
        %3052 = vmatpush.msra.mxu0 %v2273
        %3053 = vmatpush.msra.mxu0 %v2272
        %3054 = vmatpush.msra.mxu0 %v2271
        %3055 = vmatmul.f32.gmra.mxu0 %v3037
        %v3056 = vpop.f32.mrf.mxu0
        %v3057 = vadd.f32 0.0, %v3056
        %3058 = vdwg.mxu0
        %v3060 = vsel %vm2418, %v3035, 0
        %3062 = vmatpush.msra.mxu0 0.0
        %3063 = vmatpush.msra.mxu0 0.0
        %3064 = vmatpush.msra.mxu0 0.0
        %3065 = vmatpush.msra.mxu0 0.0
        %3066 = vmatpush.msra.mxu0 0.0
        %3067 = vmatpush.msra.mxu0 0.0
        %3068 = vmatpush.msra.mxu0 0.0
        %3069 = vmatpush.msra.mxu0 0.0
        %3070 = vmatpush.msra.mxu0 0.0
        %3071 = vmatpush.msra.mxu0 0.0
        %3072 = vmatpush.msra.mxu0 0.0
        %3073 = vmatpush.msra.mxu0 0.0
        %3074 = vmatpush.msra.mxu0 0.0
        %3075 = vmatpush.msra.mxu0 0.0
        %3076 = vmatpush.msra.mxu0 %v2270
        %3077 = vmatpush.msra.mxu0 %v2269
        %3078 = vmatmul.f32.gmra.mxu0 %v3060
        %v3079 = vpop.f32.mrf.mxu0
        %v3080 = vadd.f32 %v3057, %v3079
        %3081 = vdwg.mxu0
        %v3083 = vsel %vm2418, %v3008, 0
        %v3086 = vsel %vm2418, %v3011, 0
        %v3089 = vsel %vm2418, %v3014, 0
        %3091 = vmatpush.msra.mxu0 0.0
        %3092 = vmatpush.msra.mxu0 0.0
        %3093 = vmatpush.msra.mxu0 0.0
        %3094 = vmatpush.msra.mxu0 0.0
        %3095 = vmatpush.msra.mxu0 0.0
        %3096 = vmatpush.msra.mxu0 0.0
        %3097 = vmatpush.msra.mxu0 0.0
        %3098 = vmatpush.msra.mxu0 0.0
        %3099 = vmatpush.msra.mxu0 0.0
        %3100 = vmatpush.msra.mxu0 0.0
        %3101 = vmatpush.msra.mxu0 0.0
        %3102 = vmatpush.msra.mxu0 0.0
        %3103 = vmatpush.msra.mxu0 0.0
        %3104 = vmatpush.msra.mxu0 0.0
        %3105 = vmatpush.msra.mxu0 %v2268
        %3106 = vmatpush.msra.mxu0 %v2267
        %3107 = vmatmul.f32.gmra.mxu0 %v3083
        %v3108 = vpop.f32.mrf.mxu0
        %v3109 = vadd.f32 0.0, %v3108
        %3110 = vmatmul.f32.gmra.mxu0 %v3086
        %v3111 = vpop.f32.mrf.mxu0
        %v3112 = vadd.f32 0.0, %v3111
        %3113 = vmatmul.f32.gmra.mxu0 %v3089
        %v3114 = vpop.f32.mrf.mxu0
        %v3115 = vadd.f32 0.0, %v3114
        %3116 = vdwg.mxu0
        %v3118 = vperm.slane %v2279, 0
        %v3121 = vsel %vm2474, %v3080, 0
        %3123 = vmatpush.msra.mxu0 0.0
        %3124 = vmatpush.msra.mxu0 0.0
        %3125 = vmatpush.msra.mxu0 0.0
        %3126 = vmatpush.msra.mxu0 0.0
        %3127 = vmatpush.msra.mxu0 0.0
        %3128 = vmatpush.msra.mxu0 0.0
        %3129 = vmatpush.msra.mxu0 0.0
        %3130 = vmatpush.msra.mxu0 0.0
        %3131 = vmatpush.msra.mxu0 0.0
        %3132 = vmatpush.msra.mxu0 0.0
        %3133 = vmatpush.msra.mxu0 0.0
        %3134 = vmatpush.msra.mxu0 0.0
        %3135 = vmatpush.msra.mxu0 %v2278
        %3136 = vmatpush.msra.mxu0 %v2277
        %3137 = vmatpush.msra.mxu0 %v2276
        %3138 = vmatpush.msra.mxu0 %v2275
        %3139 = vmatmul.f32.gmra.mxu0 %v3121
        %v3140 = vpop.f32.mrf.mxu0
        %v3141 = vadd.f32 %v3118, %v3140
        %3142 = vdwg.mxu0
        %v3143 = vsub.f32 0.0, %v3141
        %v3144 = vmul.f32 %v3143, 1.442695
        %v3145 = vpow.pop %v3144
        %v3146 = vadd.f32 %v3145, 1.0
        %v3147 = vrcp.pop %v3146
        %v3148 = vmul.f32 %v3147, %v3109
        %v3149 = vmul.f32 %v3147, %v3112
        %v3150 = vmul.f32 %v3147, %v3115
        %v3151 = vmul.f32 %v2359, 0.31415927
        %v3152 = vand.u32 2147483647, %v3151
        %vm3153 = vcmp.le.f32.partialorder %v3152, 0.7853982
        %vm3154 = vcmp.lt.s32.totalorder %v3151, 0
        %v3155 = vand.u32 %v3151, 2139095040
        %v3156 = vshrl.u32 %v3155, 23
        %v3157 = vsub.s32 %v3156, 127
        %v3158 = vand.u32 2147483647, %v3151
        %v3159 = vand.u32 %v3158, 8388607
        %v3160 = vor.u32 %v3159, 8388608
        %v3161 = vsub.s32 0, %v3160
        %v3162 = vadd.s32 %v3157, 1
        %vm3163 = vcmp.gt.s32.totalorder %v3162, 0
        %v3164 = vsel %vm3163, %v3162, 0
        %v3165 = vshrl.u32 %v3164, 5
        %v3166 = vand.u32 %v3164, 31
        %v3167 = vsub.s32 32, %v3166
        %v3168 = vshrl.u32 683565275, %v3167
        %v3169 = vshll.u32 683565275, %v3166
        %v3170 = vshrl.u32 2475754826, %v3167
        %v3171 = vor.u32 %v3169, %v3170
        %v3172 = vshll.u32 2475754826, %v3166
        %v3173 = vshrl.u32 2131351028, %v3167
        %v3174 = vor.u32 %v3172, %v3173
        %v3175 = vshll.u32 2131351028, %v3166
        %v3176 = vshrl.u32 2102212464, %v3167
        %v3177 = vor.u32 %v3175, %v3176
        %v3178 = vshll.u32 2102212464, %v3166
        %v3179 = vshrl.u32 920167782, %v3167
        %v3180 = vor.u32 %v3178, %v3179
        %v3181 = vshll.u32 920167782, %v3166
        %v3182 = vshrl.u32 1326507024, %v3167
        %v3183 = vor.u32 %v3181, %v3182
        %vm3184 = vcmp.lt.s32.totalorder %v3165, 1
        %vm3185 = vcmp.lt.s32.totalorder %v3165, 2
        %vm3186 = vcmp.lt.s32.totalorder %v3165, 3
        %vm3187 = vcmp.lt.s32.totalorder %v3165, 4
        %v3188 = vsel %vm3184, %v3168, %v3171
        %v3189 = vsel %vm3187, %v3177, 2102212464
        %v3190 = vsel %vm3186, %v3174, %v3189
        %v3191 = vsel %vm3185, %v3188, %v3190
        %v3192 = vsel %vm3184, %v3171, %v3174
        %v3193 = vsel %vm3187, %v3180, 920167782
        %v3194 = vsel %vm3186, %v3177, %v3193
        %v3195 = vsel %vm3185, %v3192, %v3194
        %v3196 = vsel %vm3184, %v3174, %v3177
        %v3197 = vsel %vm3187, %v3183, 1326507024
        %v3198 = vsel %vm3186, %v3180, %v3197
        %v3199 = vsel %vm3185, %v3196, %v3198
        %v3200 = vshll.u32 %v3160, 8
        %v3201 = vand.u32 %v3200, 65535
        %v3202 = vshrl.u32 %v3200, 16
        %v3203 = vand.u32 %v3199, 65535
        %v3204 = vshrl.u32 %v3199, 16
        %v3205 = vmul.u32 %v3201, %v3203
        %v3206 = vmul.u32 %v3201, %v3204
        %v3207 = vmul.u32 %v3202, %v3203
        %v3208 = vmul.u32 %v3202, %v3204
        %v3209 = vshll.u32 %v3206, 16
        %v3210 = vshrl.u32 %v3206, 16
        %v3211 = vshll.u32 %v3207, 16
        %v3212 = vshrl.u32 %v3207, 16
        %vm3213 = vc.u32 %v3205, %v3209
        %v3214 = vsel %vm3213, 1, 0
        %v3215 = vadd.s32 %v3205, %v3209
        %v3216 = vadd.s32 %v3208, %v3214
        %vm3217 = vc.u32 %v3215, %v3211
        %v3218 = vsel %vm3217, 1, 0
        %v3219 = vadd.s32 %v3215, %v3211
        %v3220 = vadd.s32 %v3216, %v3218
        %v3221 = vadd.s32 %v3220, %v3210
        %v3222 = vadd.s32 %v3221, %v3212
        %v3223 = vand.u32 %v3200, 65535
        %v3224 = vshrl.u32 %v3200, 16
        %v3225 = vand.u32 %v3195, 65535
        %v3226 = vshrl.u32 %v3195, 16
        %v3227 = vmul.u32 %v3223, %v3225
        %v3228 = vmul.u32 %v3223, %v3226
        %v3229 = vmul.u32 %v3224, %v3225
        %v3230 = vmul.u32 %v3224, %v3226
        %v3231 = vshll.u32 %v3228, 16
        %v3232 = vshrl.u32 %v3228, 16
        %v3233 = vshll.u32 %v3229, 16
        %v3234 = vshrl.u32 %v3229, 16
        %vm3235 = vc.u32 %v3227, %v3231
        %v3236 = vsel %vm3235, 1, 0
        %v3237 = vadd.s32 %v3227, %v3231
        %v3238 = vadd.s32 %v3230, %v3236
        %vm3239 = vc.u32 %v3237, %v3233
        %v3240 = vsel %vm3239, 1, 0
        %v3241 = vadd.s32 %v3237, %v3233
        %v3242 = vadd.s32 %v3238, %v3240
        %v3243 = vadd.s32 %v3242, %v3232
        %v3244 = vadd.s32 %v3243, %v3234
        %v3245 = vmul.u32 %v3200, %v3191
        %v3246 = vadd.s32 %v3222, %v3241
        %vm3247 = vc.u32 %v3222, %v3241
        %v3248 = vadd.s32 %v3244, 1
        %v3249 = vsel %vm3247, %v3248, %v3244
        %v3250 = vadd.s32 %v3245, %v3249
        %v3251 = vadd.s32 %v3250, 536870912
        %v3252 = vshrl.u32 %v3251, 30
        %v3253 = vshll.u32 %v3252, 30
        %v3254 = vsub.s32 %v3250, %v3253
        %vm3255 = vcmp.lt.s32.totalorder %v3254, 0
        %v3256 = vsub.s32 0, %v3254
        %v3257 = vsel %vm3255, %v3256, %v3254
        %v3258 = vclz %v3257
        %v3259 = vsub.s32 %v3258, 2
        %vm3260 = vcmp.gt.s32.totalorder 0, %v3259
        %v3261 = vsel %vm3260, 0, %v3259
        %v3262 = vsub.s32 32, %v3261
        %v3263 = vshll.u32 %v3254, %v3261
        %v3264 = vshrl.u32 %v3246, %v3262
        %v3265 = vor.u32 %v3263, %v3264
        %v3266 = vsub.s32 4294967266, %v3261
        %v3267 = vadd.s32 %v3266, 127
        %v3268 = vshll.u32 %v3267, 23
        %v3269 = vor.u32 4788187, %v3268
        %v3270 = vand.u32 2147483647, %v3269
        %v3272 = vcvt.s32.f32 %v3265
        %v3273 = vmul.f32 %v3272, %v3270
        %v3274 = vxor.u32 %v3273, 2147483648
        %v3275 = vsel %vm3154, %v3274, %v3273
        %v3276 = vsub.s32 4, %v3252
        %v3277 = vsel %vm3154, %v3276, %v3252
        %v3278 = vsel %vm3153, %v3151, %v3275
        %v3279 = vsel %vm3153, 0, %v3277
        %v3280 = vmul.f32 %v3278, %v3278
        %v3281 = vmul.f32 %v3280, -0.001358992
        %v3282 = vadd.f32 %v3281, 0.041655596
        %v3283 = vmul.f32 %v3280, %v3282
        %v3284 = vadd.f32 %v3283, -0.4999988
        %v3285 = vmul.f32 %v3280, %v3284
        %v3286 = vadd.f32 1.0, %v3285
        %v3287 = vmul.f32 %v3278, %v3278
        %v3288 = vmul.f32 %v3287, -0.00019511016
        %v3289 = vadd.f32 %v3288, 0.008332121
        %v3290 = vmul.f32 %v3287, %v3289
        %v3291 = vadd.f32 %v3290, -0.16666654
        %v3292 = vmul.f32 %v3287, %v3291
        %v3293 = vadd.f32 %v3292, 1.0
        %v3294 = vmul.f32 %v3293, %v3278
        %vm3295 = vweird.f32 %v3151
        %v3296 = vand.u32 %v3279, 3
        %vm3297 = vcmp.lt.s32.totalorder %v3296, 2
        %vm3298 = vcmp.eq.s32.totalorder %v3296, 0
        %v3299 = vxor.u32 %v3294, 2147483648
        %v3300 = vsel %vm3298, %v3286, %v3299
        %vm3301 = vcmp.eq.s32.totalorder %v3296, 2
        %v3302 = vxor.u32 %v3286, 2147483648
        %v3303 = vsel %vm3301, %v3302, %v3294
        %v3304 = vsel %vm3297, %v3300, %v3303
        %v3305 = vsel %vm3295, nan, %v3304
        %v3306 = vadd.f32 %v3305, 1.0
        %v3307 = vmul.f32 %v3306, 0.5
        %vm3308 = vcmp.le.f32.partialorder %v2359, 10.0
        %v3309 = vsel %vm3308, 1, 0
        %v3310 = vcvt.s32.f32 %v3309
        %v3311 = vmul.f32 %v3307, %v3310
        %3313 = vset.pattern.permute.xlu0 0
        %3314 = vperm.xlu0 %3313, %v3311
        %v3315 = vpop.permute.xlu0 %3314
        %v3317 = vmul.f32 %v3080, %v3315
        %v3318 = vmul.f32 %v3148, %v3315
        %v3319 = vmul.f32 %v3149, %v3315
        %v3320 = vmul.f32 %v3150, %v3315
        %v3321 = vlaneseq
        %v3322 = vand.u32 %v3321, 127
        %3323 = vset.pattern.permute.xlu0 0
        %3324 = vperm.xlu0 %3323, %v2338
        %v3325 = vpop.permute.xlu0 %3324
        %vm3326 = vcmp.eq.s32.totalorder %v3325, %v3322
        %v3327 = vsel %vm3326, 1, 0
        %v3328 = vcvt.s32.f32 %v3327
        %v3329 = vld [vmem:[#allocation2] sm:$0xff]
        %3330 = vxpose.xlu0.b32.start [1/16] %v3328, 128
        %3331 = vxpose.xlu0.b32.cont [2/16] 0.0, 128
        %3332 = vxpose.xlu0.b32.cont [3/16] 0.0, 128
        %3333 = vxpose.xlu0.b32.cont [4/16] 0.0, 128
        %3334 = vxpose.xlu0.b32.cont [5/16] 0.0, 128
        %3335 = vxpose.xlu0.b32.cont [6/16] 0.0, 128
        %3336 = vxpose.xlu0.b32.cont [7/16] 0.0, 128
        %3337 = vxpose.xlu0.b32.cont [8/16] 0.0, 128
        %3338 = vxpose.xlu0.b32.cont [9/16] 0.0, 128
        %3339 = vxpose.xlu0.b32.cont [10/16] 0.0, 128
        %3340 = vxpose.xlu0.b32.cont [11/16] 0.0, 128
        %3341 = vxpose.xlu0.b32.cont [12/16] 0.0, 128
        %3342 = vxpose.xlu0.b32.cont [13/16] 0.0, 128
        %3343 = vxpose.xlu0.b32.cont [14/16] 0.0, 128
        %3344 = vxpose.xlu0.b32.cont [15/16] 0.0, 128
        %3345 = vxpose.xlu0.b32.end [16/16] 0.0, 128
        %v3346 = vpop.trf.xlu0
        %v3347 = vpop.trf.xlu0
        %v3348 = vpop.trf.xlu0
        %v3349 = vpop.trf.xlu0
        %v3350 = vpop.trf.xlu0
        %v3351 = vpop.trf.xlu0
        %v3352 = vpop.trf.xlu0
        %v3353 = vpop.trf.xlu0
        %v3354 = vpop.trf.xlu0
        %v3355 = vpop.trf.xlu0
        %v3356 = vpop.trf.xlu0
        %v3357 = vpop.trf.xlu0
        %v3358 = vpop.trf.xlu0
        %v3359 = vpop.trf.xlu0
        %v3360 = vpop.trf.xlu0
        %v3361 = vpop.trf.xlu0
        %vm3362 = vcmask 64512
        %v3364 = vsel %vm3362, %v3346, 0
        %3366 = vmatpush.msra.mxu0 0.0
        %3367 = vmatpush.msra.mxu0 0.0
        %3368 = vmatpush.msra.mxu0 0.0
        %3369 = vmatpush.msra.mxu0 0.0
        %3370 = vmatpush.msra.mxu0 0.0
        %3371 = vmatpush.msra.mxu0 0.0
        %3372 = vmatpush.msra.mxu0 0.0
        %3373 = vmatpush.msra.mxu0 0.0
        %3374 = vmatpush.msra.mxu0 0.0
        %3375 = vmatpush.msra.mxu0 0.0
        %3376 = vmatpush.msra.mxu0 0.0
        %3377 = vmatpush.msra.mxu0 0.0
        %3378 = vmatpush.msra.mxu0 0.0
        %3379 = vmatpush.msra.mxu0 0.0
        %3380 = vmatpush.msra.mxu0 0.0
        %3381 = vmatpush.msra.mxu0 %v3317
        %3382 = vmatmul.f32.gmra.mxu0 %v3364
        %v3383 = vpop.f32.mrf.mxu0
        %v3384 = vadd.f32 0.0, %v3383
        %3385 = vdwg.mxu0
        %v3386 = vadd.f32 %v3329, %v3384
        %3387 = vst.msk [vmem:[#allocation2] sm:$0xff] %vm2474, %v3386
        %v3388 = vld [vmem:[#allocation3] sm:$0xff]
        %3389 = vmatpush.msra.mxu0 0.0
        %3390 = vmatpush.msra.mxu0 0.0
        %3391 = vmatpush.msra.mxu0 0.0
        %3392 = vmatpush.msra.mxu0 0.0
        %3393 = vmatpush.msra.mxu0 0.0
        %3394 = vmatpush.msra.mxu0 0.0
        %3395 = vmatpush.msra.mxu0 0.0
        %3396 = vmatpush.msra.mxu0 0.0
        %3397 = vmatpush.msra.mxu0 0.0
        %3398 = vmatpush.msra.mxu0 0.0
        %3399 = vmatpush.msra.mxu0 0.0
        %3400 = vmatpush.msra.mxu0 0.0
        %3401 = vmatpush.msra.mxu0 0.0
        %3402 = vmatpush.msra.mxu0 0.0
        %3403 = vmatpush.msra.mxu0 0.0
        %3404 = vmatpush.msra.mxu0 %v3318
        %3405 = vmatmul.f32.gmra.mxu0 %v3364
        %v3406 = vpop.f32.mrf.mxu0
        %v3407 = vadd.f32 0.0, %v3406
        %3408 = vdwg.mxu0
        %v3409 = vadd.f32 %v3388, %v3407
        %3410 = vst.msk [vmem:[#allocation3] sm:$0xff] %vm2418, %v3409
        %s3411 = scalar_lea.vmem [#allocation3], 8
        %v3412 = vld [vmem:[%s3411] sm:$0xff]
        %3413 = vmatpush.msra.mxu0 0.0
        %3414 = vmatpush.msra.mxu0 0.0
        %3415 = vmatpush.msra.mxu0 0.0
        %3416 = vmatpush.msra.mxu0 0.0
        %3417 = vmatpush.msra.mxu0 0.0
        %3418 = vmatpush.msra.mxu0 0.0
        %3419 = vmatpush.msra.mxu0 0.0
        %3420 = vmatpush.msra.mxu0 0.0
        %3421 = vmatpush.msra.mxu0 0.0
        %3422 = vmatpush.msra.mxu0 0.0
        %3423 = vmatpush.msra.mxu0 0.0
        %3424 = vmatpush.msra.mxu0 0.0
        %3425 = vmatpush.msra.mxu0 0.0
        %3426 = vmatpush.msra.mxu0 0.0
        %3427 = vmatpush.msra.mxu0 0.0
        %3428 = vmatpush.msra.mxu0 %v3319
        %3429 = vmatmul.f32.gmra.mxu0 %v3364
        %v3430 = vpop.f32.mrf.mxu0
        %v3431 = vadd.f32 0.0, %v3430
        %3432 = vdwg.mxu0
        %v3433 = vadd.f32 %v3412, %v3431
        %3434 = vst.msk [vmem:[%s3411] sm:$0xff] %vm2418, %v3433
        %s3435 = scalar_lea.vmem [#allocation3], 16
        %v3436 = vld [vmem:[%s3435] sm:$0xff]
        %3437 = vmatpush.msra.mxu0 0.0
        %3438 = vmatpush.msra.mxu0 0.0
        %3439 = vmatpush.msra.mxu0 0.0
        %3440 = vmatpush.msra.mxu0 0.0
        %3441 = vmatpush.msra.mxu0 0.0
        %3442 = vmatpush.msra.mxu0 0.0
        %3443 = vmatpush.msra.mxu0 0.0
        %3444 = vmatpush.msra.mxu0 0.0
        %3445 = vmatpush.msra.mxu0 0.0
        %3446 = vmatpush.msra.mxu0 0.0
        %3447 = vmatpush.msra.mxu0 0.0
        %3448 = vmatpush.msra.mxu0 0.0
        %3449 = vmatpush.msra.mxu0 0.0
        %3450 = vmatpush.msra.mxu0 0.0
        %3451 = vmatpush.msra.mxu0 0.0
        %3452 = vmatpush.msra.mxu0 %v3320
        %3453 = vmatmul.f32.gmra.mxu0 %v3364
        %v3454 = vpop.f32.mrf.mxu0
        %v3455 = vadd.f32 0.0, %v3454
        %3456 = vdwg.mxu0
        %v3457 = vadd.f32 %v3436, %v3455
        %3458 = vst.msk [vmem:[%s3435] sm:$0xff] %vm2418, %v3457
        %p3459 = scmp.eq.s32.totalorder %s139, 1
        // Predicated region
        $region433: #{tpu_custom_call.1} parent=299 // pred_check
          %p3460 = pneg %p3459
        $region434: #{tpu_custom_call.1} parent=299 // pred_check_branch
          %3462 = sbr.rel (%p3460) target = $region436
        $region435: #{tpu_custom_call.1} parent=299 // pred_region
          %v3463 = vld [vmem:[%s11] sm:$0xff]
          %v3464 = vld [vmem:[%s13] sm:$0xff]
          %v3465 = vld [vmem:[%s13 + $0x8] sm:$0xff]
          %v3466 = vld [vmem:[%s13 + $0x10] sm:$0xff]
          %v3468 = vsel %vm2418, %v3464, 0
          %v3471 = vsel %vm2418, %v3465, 0
          %v3474 = vsel %vm2418, %v3466, 0
          %3476 = vmatpush.msra.mxu0 0.0
          %3477 = vmatpush.msra.mxu0 0.0
          %3478 = vmatpush.msra.mxu0 0.0
          %3479 = vmatpush.msra.mxu0 0.0
          %3480 = vmatpush.msra.mxu0 0.0
          %3481 = vmatpush.msra.mxu0 0.0
          %3482 = vmatpush.msra.mxu0 0.0
          %3483 = vmatpush.msra.mxu0 0.0
          %3484 = vmatpush.msra.mxu0 0.0
          %3485 = vmatpush.msra.mxu0 0.0
          %3486 = vmatpush.msra.mxu0 0.0
          %3487 = vmatpush.msra.mxu0 0.0
          %3488 = vmatpush.msra.mxu0 0.0
          %3489 = vmatpush.msra.mxu0 0.0
          %3490 = vmatpush.msra.mxu0 %v2281
          %3491 = vmatpush.msra.mxu0 %v2280
          %3492 = vmatmul.f32.gmra.mxu0 %v3468
          %v3493 = vpop.f32.mrf.mxu0
          %v3494 = vadd.f32 0.0, %v3493
          %3495 = vmatmul.f32.gmra.mxu0 %v3471
          %v3496 = vpop.f32.mrf.mxu0
          %v3497 = vadd.f32 0.0, %v3496
          %3498 = vmatmul.f32.gmra.mxu0 %v3474
          %v3499 = vpop.f32.mrf.mxu0
          %v3500 = vadd.f32 0.0, %v3499
          %3501 = vdwg.mxu0
          %v3502 = vmul.f32 %v3494, %v3494
          %v3503 = vmul.f32 %v3497, %v3497
          %v3504 = vmul.f32 %v3500, %v3500
          %v3505 = vsel %vm2418, %v3502, 0.0
          %v3506 = vsel %vm2418, %v3503, 0.0
          %v3507 = vadd.f32 %v3505, %v3506
          %v3508 = vsel %vm2418, %v3504, 0.0
          %v3509 = vadd.f32 %v3507, %v3508
          %v3510 = vrsqrt.pop %v3509
          %v3511 = vmul.f32 %v3510, %v3509
          %v3512 = vmul.f32 %v3511, %v3510
          %v3513 = vmul.f32 0.5, %v3512
          %v3514 = vsub.f32 1.5, %v3513
          %v3515 = vmul.f32 %v3510, %v3514
          %v3516 = vmul.f32 %v3509, %v3515
          %vm3517 = vcmp.eq.f32.partialorder %v3509, inf
          %v3518 = vsel %vm3517, %v3509, %v3516
          %vm3519 = vcmp.eq.f32.partialorder %v3509, 0.0
          %v3520 = vand.u32 %v3509, 2147483648
          %v3521 = vsel %vm3519, %v3520, %v3518
          %v3523 = vsel %vm2474, %v3463, 0
          %3525 = vmatpush.msra.mxu0 0.0
          %3526 = vmatpush.msra.mxu0 0.0
          %3527 = vmatpush.msra.mxu0 0.0
          %3528 = vmatpush.msra.mxu0 0.0
          %3529 = vmatpush.msra.mxu0 0.0
          %3530 = vmatpush.msra.mxu0 0.0
          %3531 = vmatpush.msra.mxu0 0.0
          %3532 = vmatpush.msra.mxu0 0.0
          %3533 = vmatpush.msra.mxu0 0.0
          %3534 = vmatpush.msra.mxu0 0.0
          %3535 = vmatpush.msra.mxu0 0.0
          %3536 = vmatpush.msra.mxu0 0.0
          %3537 = vmatpush.msra.mxu0 %v2289
          %3538 = vmatpush.msra.mxu0 %v2288
          %3539 = vmatpush.msra.mxu0 %v2287
          %3540 = vmatpush.msra.mxu0 %v2286
          %3541 = vmatmul.f32.gmra.mxu0 %v3523
          %v3542 = vpop.f32.mrf.mxu0
          %v3543 = vadd.f32 0.0, %v3542
          %3544 = vdwg.mxu0
          %v3546 = vsel %vm2418, %v3521, 0
          %3548 = vmatpush.msra.mxu0 0.0
          %3549 = vmatpush.msra.mxu0 0.0
          %3550 = vmatpush.msra.mxu0 0.0
          %3551 = vmatpush.msra.mxu0 0.0
          %3552 = vmatpush.msra.mxu0 0.0
          %3553 = vmatpush.msra.mxu0 0.0
          %3554 = vmatpush.msra.mxu0 0.0
          %3555 = vmatpush.msra.mxu0 0.0
          %3556 = vmatpush.msra.mxu0 0.0
          %3557 = vmatpush.msra.mxu0 0.0
          %3558 = vmatpush.msra.mxu0 0.0
          %3559 = vmatpush.msra.mxu0 0.0
          %3560 = vmatpush.msra.mxu0 0.0
          %3561 = vmatpush.msra.mxu0 0.0
          %3562 = vmatpush.msra.mxu0 %v2285
          %3563 = vmatpush.msra.mxu0 %v2284
          %3564 = vmatmul.f32.gmra.mxu0 %v3546
          %v3565 = vpop.f32.mrf.mxu0
          %v3566 = vadd.f32 %v3543, %v3565
          %3567 = vdwg.mxu0
          %v3569 = vsel %vm2418, %v3494, 0
          %v3572 = vsel %vm2418, %v3497, 0
          %v3575 = vsel %vm2418, %v3500, 0
          %3577 = vmatpush.msra.mxu0 0.0
          %3578 = vmatpush.msra.mxu0 0.0
          %3579 = vmatpush.msra.mxu0 0.0
          %3580 = vmatpush.msra.mxu0 0.0
          %3581 = vmatpush.msra.mxu0 0.0
          %3582 = vmatpush.msra.mxu0 0.0
          %3583 = vmatpush.msra.mxu0 0.0
          %3584 = vmatpush.msra.mxu0 0.0
          %3585 = vmatpush.msra.mxu0 0.0
          %3586 = vmatpush.msra.mxu0 0.0
          %3587 = vmatpush.msra.mxu0 0.0
          %3588 = vmatpush.msra.mxu0 0.0
          %3589 = vmatpush.msra.mxu0 0.0
          %3590 = vmatpush.msra.mxu0 0.0
          %3591 = vmatpush.msra.mxu0 %v2283
          %3592 = vmatpush.msra.mxu0 %v2282
          %3593 = vmatmul.f32.gmra.mxu0 %v3569
          %v3594 = vpop.f32.mrf.mxu0
          %v3595 = vadd.f32 0.0, %v3594
          %3596 = vmatmul.f32.gmra.mxu0 %v3572
          %v3597 = vpop.f32.mrf.mxu0
          %v3598 = vadd.f32 0.0, %v3597
          %3599 = vmatmul.f32.gmra.mxu0 %v3575
          %v3600 = vpop.f32.mrf.mxu0
          %v3601 = vadd.f32 0.0, %v3600
          %3602 = vdwg.mxu0
          %v3604 = vperm.slane %v2294, 0
          %v3607 = vsel %vm2474, %v3566, 0
          %3609 = vmatpush.msra.mxu0 0.0
          %3610 = vmatpush.msra.mxu0 0.0
          %3611 = vmatpush.msra.mxu0 0.0
          %3612 = vmatpush.msra.mxu0 0.0
          %3613 = vmatpush.msra.mxu0 0.0
          %3614 = vmatpush.msra.mxu0 0.0
          %3615 = vmatpush.msra.mxu0 0.0
          %3616 = vmatpush.msra.mxu0 0.0
          %3617 = vmatpush.msra.mxu0 0.0
          %3618 = vmatpush.msra.mxu0 0.0
          %3619 = vmatpush.msra.mxu0 0.0
          %3620 = vmatpush.msra.mxu0 0.0
          %3621 = vmatpush.msra.mxu0 %v2293
          %3622 = vmatpush.msra.mxu0 %v2292
          %3623 = vmatpush.msra.mxu0 %v2291
          %3624 = vmatpush.msra.mxu0 %v2290
          %3625 = vmatmul.f32.gmra.mxu0 %v3607
          %v3626 = vpop.f32.mrf.mxu0
          %v3627 = vadd.f32 %v3604, %v3626
          %3628 = vdwg.mxu0
          %v3629 = vsub.f32 0.0, %v3627
          %v3630 = vmul.f32 %v3629, 1.442695
          %v3631 = vpow.pop %v3630
          %v3632 = vadd.f32 %v3631, 1.0
          %v3633 = vrcp.pop %v3632
          %v3634 = vmul.f32 %v3633, %v3595
          %v3635 = vmul.f32 %v3633, %v3598
          %v3636 = vmul.f32 %v3633, %v3601
          %v3637 = vld [vmem:[#allocation2] sm:$0xff]
          %v3638 = vadd.f32 %v3566, %v3637
          %v3639 = vld [vmem:[#allocation3] sm:$0xff]
          %v3640 = vld [vmem:[#allocation3 + $0x8] sm:$0xff]
          %v3641 = vld [vmem:[#allocation3 + $0x10] sm:$0xff]
          %v3642 = vadd.f32 %v3634, %v3639
          %v3643 = vadd.f32 %v3635, %v3640
          %v3644 = vadd.f32 %v3636, %v3641
          %v3645 = vsel %vm2474, %v3638, 0.0
          %3646 = vadd.xlane.f32.xlu0 %v3645
          %v3647 = vpop.xlane.xlu0 %3646
          %v3648 = vrcp.pop 32.0
          %v3649 = vmul.f32 32.0, %v3648
          %v3650 = vsub.f32 1.0, %v3649
          %v3651 = vmul.f32 %v3648, %v3650
          %v3652 = vadd.f32 %v3648, %v3651
          %vm3653 = vweird.f32 %v3648
          %v3654 = vsel %vm3653, %v3648, %v3652
          %v3655 = vmul.f32 %v3647, %v3654
          %v3656 = vsub.f32 %v3638, %v3655
          %v3657 = vmul.f32 %v3656, %v3656
          %v3658 = vsel %vm2474, %v3657, 0.0
          %3659 = vadd.xlane.f32.xlu0 %v3658
          %v3660 = vpop.xlane.xlu0 %3659
          %v3661 = vmul.f32 %v3660, %v3654
          %v3662 = vadd.f32 %v3661, 1e-05
          %v3663 = vrsqrt.pop %v3662
          %v3664 = vmul.f32 %v3663, %v3662
          %v3665 = vmul.f32 %v3664, %v3663
          %v3666 = vmul.f32 0.5, %v3665
          %v3667 = vsub.f32 1.5, %v3666
          %v3668 = vmul.f32 %v3663, %v3667
          %vm3669 = vweird.f32 %v3662
          %vm3670 = vweird.f32 %v3663
          %vm3671 = vmor %vm3669, %vm3670
          %v3672 = vsel %vm3671, %v3663, %v3668
          %v3673 = vmul.f32 %v3656, %v3672
          %v3675 = vperm.slane %v2295, 0
          %v3677 = vmul.f32 %v3673, %v3675
          %v3679 = vperm.slane %v2296, 0
          %v3681 = vadd.f32 %v3677, %v3679
          %v3682 = vsel %vm2418, %v3642, 0.0
          %v3683 = vsel %vm2418, %v3643, 0.0
          %v3684 = vadd.f32 %v3682, %v3683
          %v3685 = vsel %vm2418, %v3644, 0.0
          %v3686 = vadd.f32 %v3684, %v3685
          %v3687 = vsel %vm2418, %v3686, 0.0
          %3688 = vadd.xlane.f32.xlu0 %v3687
          %v3689 = vpop.xlane.xlu0 %3688
          %v3690 = vrcp.pop 48.0
          %v3691 = vmul.f32 48.0, %v3690
          %v3692 = vsub.f32 1.0, %v3691
          %v3693 = vmul.f32 %v3690, %v3692
          %v3694 = vadd.f32 %v3690, %v3693
          %vm3695 = vweird.f32 %v3690
          %v3696 = vsel %vm3695, %v3690, %v3694
          %v3697 = vmul.f32 %v3689, %v3696
          %v3698 = vsub.f32 %v3642, %v3697
          %v3699 = vsub.f32 %v3643, %v3697
          %v3700 = vsub.f32 %v3644, %v3697
          %v3701 = vmul.f32 %v3698, %v3698
          %v3702 = vmul.f32 %v3699, %v3699
          %v3703 = vmul.f32 %v3700, %v3700
          %v3704 = vsel %vm2418, %v3701, 0.0
          %v3705 = vsel %vm2418, %v3702, 0.0
          %v3706 = vadd.f32 %v3704, %v3705
          %v3707 = vsel %vm2418, %v3703, 0.0
          %v3708 = vadd.f32 %v3706, %v3707
          %v3709 = vsel %vm2418, %v3708, 0.0
          %3710 = vadd.xlane.f32.xlu0 %v3709
          %v3711 = vpop.xlane.xlu0 %3710
          %v3712 = vmul.f32 %v3711, %v3696
          %v3713 = vadd.f32 %v3712, 1e-05
          %v3714 = vrsqrt.pop %v3713
          %v3715 = vmul.f32 %v3714, %v3713
          %v3716 = vmul.f32 %v3715, %v3714
          %v3717 = vmul.f32 0.5, %v3716
          %v3718 = vsub.f32 1.5, %v3717
          %v3719 = vmul.f32 %v3714, %v3718
          %vm3720 = vweird.f32 %v3713
          %vm3721 = vweird.f32 %v3714
          %vm3722 = vmor %vm3720, %vm3721
          %v3723 = vsel %vm3722, %v3714, %v3719
          %v3724 = vmul.f32 %v3698, %v3723
          %v3725 = vmul.f32 %v3699, %v3723
          %v3726 = vmul.f32 %v3700, %v3723
          %v3730 = vperm.slane %v2297, 0
          %v3731 = vperm.slane %v2298, 0
          %v3732 = vperm.slane %v2299, 0
          %v3736 = vmul.f32 %v3724, %v3730
          %v3737 = vmul.f32 %v3725, %v3731
          %v3738 = vmul.f32 %v3726, %v3732
          %v3742 = vperm.slane %v2300, 0
          %v3743 = vperm.slane %v2301, 0
          %v3744 = vperm.slane %v2302, 0
          %v3748 = vadd.f32 %v3736, %v3742
          %v3749 = vadd.f32 %v3737, %v3743
          %v3750 = vadd.f32 %v3738, %v3744
          %vm3751 = vcmp.ge.f32.partialorder %v3681, 0.0
          %v3752 = vmul.f32 %v3681, 0.01
          %v3753 = vsel %vm3751, %v3681, %v3752
          %v3755 = vsel %vm2418, %v3748, 0
          %v3758 = vsel %vm2418, %v3749, 0
          %v3761 = vsel %vm2418, %v3750, 0
          %3763 = vmatpush.msra.mxu0 0.0
          %3764 = vmatpush.msra.mxu0 0.0
          %3765 = vmatpush.msra.mxu0 0.0
          %3766 = vmatpush.msra.mxu0 0.0
          %3767 = vmatpush.msra.mxu0 0.0
          %3768 = vmatpush.msra.mxu0 0.0
          %3769 = vmatpush.msra.mxu0 0.0
          %3770 = vmatpush.msra.mxu0 0.0
          %3771 = vmatpush.msra.mxu0 0.0
          %3772 = vmatpush.msra.mxu0 0.0
          %3773 = vmatpush.msra.mxu0 0.0
          %3774 = vmatpush.msra.mxu0 0.0
          %3775 = vmatpush.msra.mxu0 0.0
          %3776 = vmatpush.msra.mxu0 0.0
          %3777 = vmatpush.msra.mxu0 %v2304
          %3778 = vmatpush.msra.mxu0 %v2303
          %3779 = vmatmul.f32.gmra.mxu0 %v3755
          %v3780 = vpop.f32.mrf.mxu0
          %v3781 = vadd.f32 0.0, %v3780
          %3782 = vmatmul.f32.gmra.mxu0 %v3758
          %v3783 = vpop.f32.mrf.mxu0
          %v3784 = vadd.f32 0.0, %v3783
          %3785 = vmatmul.f32.gmra.mxu0 %v3761
          %v3786 = vpop.f32.mrf.mxu0
          %v3787 = vadd.f32 0.0, %v3786
          %3788 = vdwg.mxu0
          %v3789 = vmul.f32 %v3748, %v3781
          %v3790 = vmul.f32 %v3749, %v3784
          %v3791 = vmul.f32 %v3750, %v3787
          %v3792 = vsel %vm2418, %v3789, 0.0
          %v3793 = vsel %vm2418, %v3790, 0.0
          %v3794 = vadd.f32 %v3792, %v3793
          %v3795 = vsel %vm2418, %v3791, 0.0
          %v3796 = vadd.f32 %v3794, %v3795
          %vm3797 = vcmp.ge.f32.partialorder %v3796, 0.0
          %v3798 = vsel %vm3797, 1, 0
          %v3799 = vcvt.s32.f32 %v3798
          %v3800 = vmul.f32 %v3781, %v3781
          %v3801 = vmul.f32 %v3784, %v3784
          %v3802 = vmul.f32 %v3787, %v3787
          %v3803 = vsel %vm2418, %v3800, 0.0
          %v3804 = vsel %vm2418, %v3801, 0.0
          %v3805 = vadd.f32 %v3803, %v3804
          %v3806 = vsel %vm2418, %v3802, 0.0
          %v3807 = vadd.f32 %v3805, %v3806
          %v3808 = vadd.f32 %v3807, 1e-06
          %v3809 = vrcp.pop %v3808
          %v3810 = vmul.f32 %v3808, %v3809
          %v3811 = vsub.f32 1.0, %v3810
          %v3812 = vmul.f32 %v3809, %v3811
          %v3813 = vadd.f32 %v3809, %v3812
          %vm3814 = vweird.f32 %v3808
          %vm3815 = vweird.f32 %v3809
          %vm3816 = vmor %vm3814, %vm3815
          %v3817 = vsel %vm3816, %v3809, %v3813
          %v3818 = vand.u32 2147483647, %v3808
          %vm3819 = vcmp.eq.f32.partialorder %v3818, 8.507059e+37
          %v3820 = vand.u32 %v3808, 2147483648
          %v3821 = vor.u32 1.1754944e-38, %v3820
          %v3822 = vsel %vm3819, %v3821, %v3817
          %v3823 = vmul.f32 %v3796, %v3822
          %v3824 = vmul.f32 %v3823, %v3781
          %v3825 = vmul.f32 %v3823, %v3784
          %v3826 = vmul.f32 %v3823, %v3787
          %v3827 = vsub.f32 %v3748, %v3824
          %v3828 = vsub.f32 %v3749, %v3825
          %v3829 = vsub.f32 %v3750, %v3826
          %v3830 = vmul.f32 %v3748, 0.2
          %v3831 = vmul.f32 %v3749, 0.2
          %v3832 = vmul.f32 %v3750, 0.2
          %v3833 = vmul.f32 %v3799, %v3748
          %v3834 = vmul.f32 %v3799, %v3749
          %v3835 = vmul.f32 %v3799, %v3750
          %v3836 = vsub.f32 1.0, %v3799
          %v3837 = vmul.f32 %v3836, %v3827
          %v3838 = vmul.f32 %v3836, %v3828
          %v3839 = vmul.f32 %v3836, %v3829
          %v3840 = vadd.f32 %v3833, %v3837
          %v3841 = vadd.f32 %v3834, %v3838
          %v3842 = vadd.f32 %v3835, %v3839
          %v3843 = vmul.f32 %v3840, 0.8
          %v3844 = vmul.f32 %v3841, 0.8
          %v3845 = vmul.f32 %v3842, 0.8
          %v3846 = vadd.f32 %v3830, %v3843
          %v3847 = vadd.f32 %v3831, %v3844
          %v3848 = vadd.f32 %v3832, %v3845
          %v3850 = vsel %vm2418, %v3846, 0
          %v3853 = vsel %vm2418, %v3847, 0
          %v3856 = vsel %vm2418, %v3848, 0
          %3858 = vmatpush.msra.mxu0 0.0
          %3859 = vmatpush.msra.mxu0 0.0
          %3860 = vmatpush.msra.mxu0 0.0
          %3861 = vmatpush.msra.mxu0 0.0
          %3862 = vmatpush.msra.mxu0 0.0
          %3863 = vmatpush.msra.mxu0 0.0
          %3864 = vmatpush.msra.mxu0 0.0
          %3865 = vmatpush.msra.mxu0 0.0
          %3866 = vmatpush.msra.mxu0 0.0
          %3867 = vmatpush.msra.mxu0 0.0
          %3868 = vmatpush.msra.mxu0 0.0
          %3869 = vmatpush.msra.mxu0 0.0
          %3870 = vmatpush.msra.mxu0 0.0
          %3871 = vmatpush.msra.mxu0 0.0
          %3872 = vmatpush.msra.mxu0 %v2306
          %3873 = vmatpush.msra.mxu0 %v2305
          %3874 = vmatmul.f32.gmra.mxu0 %v3850
          %v3875 = vpop.f32.mrf.mxu0
          %v3876 = vadd.f32 0.0, %v3875
          %3877 = vmatmul.f32.gmra.mxu0 %v3853
          %v3878 = vpop.f32.mrf.mxu0
          %v3879 = vadd.f32 0.0, %v3878
          %3880 = vmatmul.f32.gmra.mxu0 %v3856
          %v3881 = vpop.f32.mrf.mxu0
          %v3882 = vadd.f32 0.0, %v3881
          %3883 = vdwg.mxu0
          %v3884 = vmul.f32 %v3876, %v3876
          %v3885 = vmul.f32 %v3879, %v3879
          %v3886 = vmul.f32 %v3882, %v3882
          %v3887 = vsel %vm2418, %v3884, 0.0
          %v3888 = vsel %vm2418, %v3885, 0.0
          %v3889 = vadd.f32 %v3887, %v3888
          %v3890 = vsel %vm2418, %v3886, 0.0
          %v3891 = vadd.f32 %v3889, %v3890
          %v3892 = vrsqrt.pop %v3891
          %v3893 = vmul.f32 %v3892, %v3891
          %v3894 = vmul.f32 %v3893, %v3892
          %v3895 = vmul.f32 0.5, %v3894
          %v3896 = vsub.f32 1.5, %v3895
          %v3897 = vmul.f32 %v3892, %v3896
          %v3898 = vmul.f32 %v3891, %v3897
          %vm3899 = vcmp.eq.f32.partialorder %v3891, inf
          %v3900 = vsel %vm3899, %v3891, %v3898
          %vm3901 = vcmp.eq.f32.partialorder %v3891, 0.0
          %v3902 = vand.u32 %v3891, 2147483648
          %v3903 = vsel %vm3901, %v3902, %v3900
          %v3905 = vsel %vm2474, %v3753, 0
          %3907 = vmatpush.msra.mxu0 0.0
          %3908 = vmatpush.msra.mxu0 0.0
          %3909 = vmatpush.msra.mxu0 0.0
          %3910 = vmatpush.msra.mxu0 0.0
          %3911 = vmatpush.msra.mxu0 0.0
          %3912 = vmatpush.msra.mxu0 0.0
          %3913 = vmatpush.msra.mxu0 0.0
          %3914 = vmatpush.msra.mxu0 0.0
          %3915 = vmatpush.msra.mxu0 0.0
          %3916 = vmatpush.msra.mxu0 0.0
          %3917 = vmatpush.msra.mxu0 0.0
          %3918 = vmatpush.msra.mxu0 0.0
          %3919 = vmatpush.msra.mxu0 %v2314
          %3920 = vmatpush.msra.mxu0 %v2313
          %3921 = vmatpush.msra.mxu0 %v2312
          %3922 = vmatpush.msra.mxu0 %v2311
          %3923 = vmatmul.f32.gmra.mxu0 %v3905
          %v3924 = vpop.f32.mrf.mxu0
          %v3925 = vadd.f32 0.0, %v3924
          %3926 = vdwg.mxu0
          %v3928 = vsel %vm2418, %v3903, 0
          %3930 = vmatpush.msra.mxu0 0.0
          %3931 = vmatpush.msra.mxu0 0.0
          %3932 = vmatpush.msra.mxu0 0.0
          %3933 = vmatpush.msra.mxu0 0.0
          %3934 = vmatpush.msra.mxu0 0.0
          %3935 = vmatpush.msra.mxu0 0.0
          %3936 = vmatpush.msra.mxu0 0.0
          %3937 = vmatpush.msra.mxu0 0.0
          %3938 = vmatpush.msra.mxu0 0.0
          %3939 = vmatpush.msra.mxu0 0.0
          %3940 = vmatpush.msra.mxu0 0.0
          %3941 = vmatpush.msra.mxu0 0.0
          %3942 = vmatpush.msra.mxu0 0.0
          %3943 = vmatpush.msra.mxu0 0.0
          %3944 = vmatpush.msra.mxu0 %v2310
          %3945 = vmatpush.msra.mxu0 %v2309
          %3946 = vmatmul.f32.gmra.mxu0 %v3928
          %v3947 = vpop.f32.mrf.mxu0
          %v3948 = vadd.f32 %v3925, %v3947
          %3949 = vdwg.mxu0
          %v3951 = vsel %vm2418, %v3876, 0
          %v3954 = vsel %vm2418, %v3879, 0
          %v3957 = vsel %vm2418, %v3882, 0
          %3959 = vmatpush.msra.mxu0 0.0
          %3960 = vmatpush.msra.mxu0 0.0
          %3961 = vmatpush.msra.mxu0 0.0
          %3962 = vmatpush.msra.mxu0 0.0
          %3963 = vmatpush.msra.mxu0 0.0
          %3964 = vmatpush.msra.mxu0 0.0
          %3965 = vmatpush.msra.mxu0 0.0
          %3966 = vmatpush.msra.mxu0 0.0
          %3967 = vmatpush.msra.mxu0 0.0
          %3968 = vmatpush.msra.mxu0 0.0
          %3969 = vmatpush.msra.mxu0 0.0
          %3970 = vmatpush.msra.mxu0 0.0
          %3971 = vmatpush.msra.mxu0 0.0
          %3972 = vmatpush.msra.mxu0 0.0
          %3973 = vmatpush.msra.mxu0 %v2308
          %3974 = vmatpush.msra.mxu0 %v2307
          %3975 = vmatmul.f32.gmra.mxu0 %v3951
          %v3976 = vpop.f32.mrf.mxu0
          %v3977 = vadd.f32 0.0, %v3976
          %3978 = vmatmul.f32.gmra.mxu0 %v3954
          %v3979 = vpop.f32.mrf.mxu0
          %v3980 = vadd.f32 0.0, %v3979
          %3981 = vmatmul.f32.gmra.mxu0 %v3957
          %v3982 = vpop.f32.mrf.mxu0
          %v3983 = vadd.f32 0.0, %v3982
          %3984 = vdwg.mxu0
          %v3986 = vperm.slane %v2319, 0
          %v3989 = vsel %vm2474, %v3948, 0
          %3991 = vmatpush.msra.mxu0 0.0
          %3992 = vmatpush.msra.mxu0 0.0
          %3993 = vmatpush.msra.mxu0 0.0
          %3994 = vmatpush.msra.mxu0 0.0
          %3995 = vmatpush.msra.mxu0 0.0
          %3996 = vmatpush.msra.mxu0 0.0
          %3997 = vmatpush.msra.mxu0 0.0
          %3998 = vmatpush.msra.mxu0 0.0
          %3999 = vmatpush.msra.mxu0 0.0
          %4000 = vmatpush.msra.mxu0 0.0
          %4001 = vmatpush.msra.mxu0 0.0
          %4002 = vmatpush.msra.mxu0 0.0
          %4003 = vmatpush.msra.mxu0 %v2318
          %4004 = vmatpush.msra.mxu0 %v2317
          %4005 = vmatpush.msra.mxu0 %v2316
          %4006 = vmatpush.msra.mxu0 %v2315
          %4007 = vmatmul.f32.gmra.mxu0 %v3989
          %v4008 = vpop.f32.mrf.mxu0
          %v4009 = vadd.f32 %v3986, %v4008
          %4010 = vdwg.mxu0
          %v4011 = vsub.f32 0.0, %v4009
          %v4012 = vmul.f32 %v4011, 1.442695
          %v4013 = vpow.pop %v4012
          %v4014 = vadd.f32 %v4013, 1.0
          %v4015 = vrcp.pop %v4014
          %v4016 = vmul.f32 %v4015, %v3977
          %v4017 = vmul.f32 %v4015, %v3980
          %v4018 = vmul.f32 %v4015, %v3983
          %4019 = vst.msk [vmem:[#allocation53] sm:$0xff] %vm2474, %v3948
          %4020 = vst.msk [vmem:[#allocation54] sm:$0xff] %vm2418, %v4016
          %4021 = vst.msk [vmem:[#allocation54 + $0x8] sm:$0xff] %vm2418, %v4017
          %4022 = vst.msk [vmem:[#allocation54 + $0x10] sm:$0xff] %vm2418, %v4018
        $region436: #{tpu_custom_call.1} parent=299 // pred_fallthru
          _
        // Predicated region
        $region437: #{tpu_custom_call.1} parent=299 // pred_check
          %p4023 = pneg %p1290
        $region438: #{tpu_custom_call.1} parent=299 // pred_check_branch
          %4025 = sbr.rel (%p4023) target = $region440
        $region439: #{tpu_custom_call.1} parent=299 // pred_region
          %4027 = vsyncadd [#allocation8], 0
          %s4029 = sshll.u32 [#allocation53], 4
          %s4030 = int_to_ptr.vmem [resolvable:$true] %s4029
          %s4031 = sshll.u32 %s107, 4
          %s4032 = int_to_ptr.hbm [resolvable:$true] %s4031
          %4034 = dma.vmem_to_hbm [thread:$0]  %s4030, 128, %s4032, [#allocation8]
        $region440: #{tpu_custom_call.1} parent=299 // pred_fallthru
          _
        // Predicated region
        $region441: #{tpu_custom_call.1} parent=299 // pred_check
          %p4035 = pneg %p1311
        $region442: #{tpu_custom_call.1} parent=299 // pred_check_branch
          %4037 = sbr.rel (%p4035) target = $region444
        $region443: #{tpu_custom_call.1} parent=299 // pred_region
          %4039 = vsyncadd [#allocation55], 0
          %s4040 = sshll.u32 [#allocation54], 4
          %s4041 = int_to_ptr.vmem [resolvable:$true] %s4040
          %s4042 = sshll.u32 %s109, 4
          %s4043 = int_to_ptr.hbm [resolvable:$true] %s4042
          %4048 = dma.vmem_to_hbm [thread:$0]  %s4041, 384, %s4043, [#allocation55], 128, 128, 8
        $region444: #{tpu_custom_call.1} parent=299 // pred_fallthru
          _
        // Predicated region
        $region445: #{tpu_custom_call.1} parent=299 // pred_check
          %p4049 = pneg %p1290
        $region446: #{tpu_custom_call.1} parent=299 // pred_check_branch
          %4051 = sbr.rel (%p4049) target = $region448
        $region447: #{tpu_custom_call.1} parent=299 // pred_region
          %4053 = dma.done [#allocation8], 128
        $region448: #{tpu_custom_call.1} parent=299 // pred_fallthru
          _
        // Predicated region
        $region449: #{tpu_custom_call.1} parent=299 // pred_check
          %p4054 = pneg %p1311
        $region450: #{tpu_custom_call.1} parent=299 // pred_check_branch
          %4056 = sbr.rel (%p4054) target = $region452
        $region451: #{tpu_custom_call.1} parent=299 // pred_region
          %4058 = dma.done [#allocation55], 384
        $region452: #{tpu_custom_call.1} parent=299 // pred_fallthru
          _
      $region300: #{tpu_custom_call.1} parent=5 // pred_fallthru
        _
      %p4059 = scmp.le.s32.totalorder 2, %s134
      // Predicated region
      $region453: #{tpu_custom_call.1} parent=5 // pred_check
        %p4060 = pneg %p4059
      $region454: #{tpu_custom_call.1} parent=5 // pred_check_branch
        %4062 = sbr.rel (%p4060) target = $region456
      $region455: #{tpu_custom_call.1} parent=5 // pred_region
        %s4063 = ssub.s32 %s134, 2
      $region456: #{tpu_custom_call.1} parent=5 // pred_fallthru
        _
    $region6: #{tpu_custom_call.1} parent=1 // loop_footer
      %s138 = sadd.s32 1, %s134
    $region7: #{tpu_custom_call.1} parent=1 // loop_footer_branch
      %133 = sbr.rel target = $region3
    $region8: #{tpu_custom_call.1} parent=1 // loop_exit
      _
    %4064 = vsyncpa [#allocation7], 1
    %s4065 = scalar_lea.sflag [#allocation7], 1
    %4066 = vsyncpa %s4065, 1
    %4067 = vsyncpa [#allocation10], 1
    %4068 = vsyncpa [#allocation13], 1
    %4069 = vsyncpa [#allocation16], 1
    %4070 = vsyncpa [#allocation19], 1
    %4071 = vsyncpa [#allocation22], 1
    %4072 = vsyncpa [#allocation25], 1
    %4073 = vsyncpa [#allocation28], 1
    %4074 = vsyncpa [#allocation31], 1
    %4075 = vsyncpa [#allocation34], 1
    %4076 = vsyncpa [#allocation37], 1
    %4077 = vsyncpa [#allocation40], 1
    %4078 = vsyncpa [#allocation43], 1
    %4079 = vsyncpa [#allocation46], 1
    %4080 = vsyncpa [#allocation49], 1
    %4081 = vsyncpa [#allocation52], 1
    %4082 = vsyncpa [#allocation8], 1
    %s4083 = scalar_lea.sflag [#allocation8], 1
    %4084 = vsyncpa %s4083, 1
    %4085 = vsyncpa [#allocation55], 1

</llo_original>
